<compile_context>
chip_gen: v7x
topology: tpu7x:2x2x1
jax: 0.10.0
libtpu: 0.0.40
codegen_flags: <defaults>
</compile_context>

<pallas_src>
import jax
import jax.numpy as jnp
from jax.experimental import pallas as pl
from jax.experimental.pallas import tpu as pltpu

IMAGE_SIZE = 784
HIDDEN_SIZE = 400
HIDDEN_PAD = 512          # 4 * 128 lanes
Z_SIZE = 20


def _vae_kernel(x_ref, eps_ref,
                w1_ref, b1_ref, w23_ref, b23_ref,
                w4_ref, b4_ref, w5_ref, b5_ref,
                xrec_ref, muvar_ref):
    # ---- Encoder: h = relu(x @ W1 + b1) ------------------------------------
    x16 = x_ref[...].astype(jnp.bfloat16)                        # [TM, 784]
    h = jnp.dot(x16, w1_ref[...], preferred_element_type=jnp.float32)
    h = jnp.maximum(h + b1_ref[...], 0.0)                        # [TM, 512] f32

    # ---- Fused mu/logvar head: hw = h @ [W2 | W3] + [b2 | b3] ---------------
    hw = jnp.dot(h.astype(jnp.bfloat16), w23_ref[...],
                 preferred_element_type=jnp.float32) + b23_ref[...]   # [TM, 2Z]
    mu = hw[:, :Z_SIZE]
    logvar = hw[:, Z_SIZE:]

    # ---- Reparameterize: z = mu + eps * exp(logvar / 2) ---------------------
    z = mu + eps_ref[...] * jnp.exp(logvar * 0.5)                # [TM, 20] f32

    # ---- Decoder: x_rec = sigmoid(relu(z @ W4 + b4) @ W5 + b5) --------------
    h2 = jnp.dot(z, w4_ref[...], preferred_element_type=jnp.float32)
    h2 = jnp.maximum(h2 + b4_ref[...], 0.0)                      # [TM, 512] f32

    logits = jnp.dot(h2.astype(jnp.bfloat16), w5_ref[...],
                     preferred_element_type=jnp.float32) + b5_ref[...]
    xrec_ref[...] = jax.nn.sigmoid(logits)                       # [TM, 784]
    muvar_ref[...] = hw                                          # packed mu|logvar


def _round_up(n, m):
    return ((n + m - 1) // m) * m


def vae_forward(x, eps, params, *, block_m=256):
    """x: [B, 784] f32, eps: [B, 20] f32 (the randn_like draw), params from
    prepare_params(). Returns (x_reconst [B,784], mu [B,20], logvar [B,20])."""
    B = x.shape[0]
    tm = min(block_m, _round_up(B, 8))
    bp = _round_up(B, tm)
    if bp != B:
        x = jnp.pad(x, ((0, bp - B), (0, 0)))
        eps = jnp.pad(eps, ((0, bp - B), (0, 0)))

    weights = (params["w1"], params["b1"], params["w23"], params["b23"],
               params["w4"], params["b4"], params["w5"], params["b5"])

    grid = (bp // tm,)
    row_spec = lambda cols: pl.BlockSpec((tm, cols), lambda i: (i, 0))
    in_specs = ([row_spec(IMAGE_SIZE), row_spec(Z_SIZE)]
                + [pl.BlockSpec(w.shape, lambda i: (0, 0)) for w in weights])
    out_specs = (row_spec(IMAGE_SIZE), row_spec(2 * Z_SIZE))

    flops = 2 * bp * (IMAGE_SIZE * HIDDEN_PAD + HIDDEN_PAD * 2 * Z_SIZE
                      + Z_SIZE * HIDDEN_PAD + HIDDEN_PAD * IMAGE_SIZE)
    transcendentals = bp * (Z_SIZE + IMAGE_SIZE)            # exp + sigmoid
    bytes_accessed = (int(x.size) * 4 + int(eps.size) * 4
                      + bp * (IMAGE_SIZE + 2 * Z_SIZE) * 4
                      + sum(int(w.size) * w.dtype.itemsize for w in weights))

    xrec, muvar = pl.pallas_call(
        _vae_kernel,
        grid=grid,
        in_specs=in_specs,
        out_specs=out_specs,
        out_shape=(
            jax.ShapeDtypeStruct((bp, IMAGE_SIZE), jnp.float32),
            jax.ShapeDtypeStruct((bp, 2 * Z_SIZE), jnp.float32),
        ),
        compiler_params=pltpu.CompilerParams(
            dimension_semantics=("parallel",),
            vmem_limit_bytes=32 * 1024 * 1024,
        ),
        cost_estimate=pl.CostEstimate(flops=int(flops),
                                      transcendentals=int(transcendentals),
                                      bytes_accessed=int(bytes_accessed)),
    )(x, eps, *weights)

    if bp != B:
        xrec, muvar = xrec[:B], muvar[:B]
    return xrec, muvar[:, :Z_SIZE], muvar[:, Z_SIZE:]


def init_params(key):
    """nn.Linear-style init (U[-1/sqrt(fan_in), +]); weights stored [in, out]."""
    def linear(key, fan_in, fan_out):
        kw, kb = jax.random.split(key)
        bound = 1.0 / jnp.sqrt(jnp.float32(fan_in))
        w = jax.random.uniform(kw, (fan_in, fan_out), jnp.float32, -bound, bound)
        b = jax.random.uniform(kb, (1, fan_out), jnp.float32, -bound, bound)
        return w, b

    k1, k2, k3, k4, k5 = jax.random.split(key, 5)
    w1, b1 = linear(k1, IMAGE_SIZE, HIDDEN_SIZE)
    w2, b2 = linear(k2, HIDDEN_SIZE, Z_SIZE)
    w3, b3 = linear(k3, HIDDEN_SIZE, Z_SIZE)
    w4, b4 = linear(k4, Z_SIZE, HIDDEN_SIZE)
    w5, b5 = linear(k5, HIDDEN_SIZE, IMAGE_SIZE)
    return dict(w1=w1, b1=b1, w2=w2, b2=b2, w3=w3, b3=b3,
                w4=w4, b4=b4, w5=w5, b5=b5)


def _pad_axis(a, axis, new_size):
    pad = [(0, 0)] * a.ndim
    pad[axis] = (0, new_size - a.shape[axis])
    return jnp.pad(a, pad)


def prepare_params(p):
    """One-time prep: fuse the mu/logvar heads, zero-pad the hidden dim to 512
    lanes, and cast the big weights to bf16 (biases & accumulation stay f32)."""
    w23 = jnp.concatenate([p["w2"], p["w3"]], axis=1)            # [400, 2Z]
    b23 = jnp.concatenate([p["b2"], p["b3"]], axis=1)            # [1, 2Z]
    return dict(
        w1=_pad_axis(p["w1"], 1, HIDDEN_PAD).astype(jnp.bfloat16),   # [784, 512]
        b1=_pad_axis(p["b1"], 1, HIDDEN_PAD),                        # [1, 512]
        w23=_pad_axis(w23, 0, HIDDEN_PAD).astype(jnp.bfloat16),      # [512, 2Z]
        b23=b23,                                                     # [1, 2Z]
        # w4 has K=20 and is only ~40 KiB; keep it f32 so the z @ w4 matmul is
        # a plain f32 pass (bf16 would save nothing in bytes here).
        w4=_pad_axis(p["w4"], 1, HIDDEN_PAD),                        # [20, 512]
        b4=_pad_axis(p["b4"], 1, HIDDEN_PAD),                        # [1, 512]
        w5=_pad_axis(p["w5"], 0, HIDDEN_PAD).astype(jnp.bfloat16),   # [512, 784]
        b5=p["b5"],                                                  # [1, 784]
    )


def reference_forward(x, eps, p):
    """Pure-JAX reference using the same prepared (bf16/padded) params."""
    bf = lambda a: a.astype(jnp.bfloat16)
    mm = lambda a, w: jnp.dot(a, w, preferred_element_type=jnp.float32)
    h = jnp.maximum(mm(bf(x), p["w1"]) + p["b1"], 0.0)
    hw = mm(bf(h), p["w23"]) + p["b23"]
    mu, logvar = hw[:, :Z_SIZE], hw[:, Z_SIZE:]
    z = mu + eps * jnp.exp(logvar * 0.5)
    h2 = jnp.maximum(mm(z, p["w4"]) + p["b4"], 0.0)
    return jax.nn.sigmoid(mm(bf(h2), p["w5"]) + p["b5"]), mu, logvar


if __name__ == "__main__":
    key = jax.random.PRNGKey(0)
    kp, kdata = jax.random.split(key)
    params = prepare_params(init_params(kp))

    # Small single-grid-step test plus a multi-step / ragged-batch test.
    for B, bm in ((8, 256), (40, 16)):
        kx, keps = jax.random.split(jax.random.fold_in(kdata, B))
        x = jax.random.uniform(kx, (B, IMAGE_SIZE), jnp.float32)   # "image" batch
        eps = jax.random.normal(keps, (B, Z_SIZE), jnp.float32)    # randn_like(std)

        x_rec, mu, logvar = jax.block_until_ready(
            vae_forward(x, eps, params, block_m=bm))

        r_rec, r_mu, r_lv = reference_forward(x, eps, params)
        assert x_rec.shape == (B, IMAGE_SIZE) and mu.shape == (B, Z_SIZE)
        assert jnp.allclose(x_rec, r_rec, atol=2e-3, rtol=2e-3)
        assert jnp.allclose(mu, r_mu, atol=2e-3, rtol=2e-3)
        assert jnp.allclose(logvar, r_lv, atol=2e-3, rtol=2e-3)

    print("KERNEL_OK")
</pallas_src>

<mosaic_0001>
module attributes {stable_mosaic.version = 11 : i64} {
  func.func @_vae_kernel(%arg0: i32, %arg1: memref<8x784xf32, #tpu.memory_space<vmem>>, %arg2: memref<8x20xf32, #tpu.memory_space<vmem>>, %arg3: memref<784x512xbf16, #tpu.memory_space<vmem>>, %arg4: memref<1x512xf32, #tpu.memory_space<vmem>>, %arg5: memref<512x40xbf16, #tpu.memory_space<vmem>>, %arg6: memref<1x40xf32, #tpu.memory_space<vmem>>, %arg7: memref<20x512xf32, #tpu.memory_space<vmem>>, %arg8: memref<1x512xf32, #tpu.memory_space<vmem>>, %arg9: memref<512x784xbf16, #tpu.memory_space<vmem>>, %arg10: memref<1x784xf32, #tpu.memory_space<vmem>>, %arg11: memref<8x784xf32, #tpu.memory_space<vmem>>, %arg12: memref<8x40xf32, #tpu.memory_space<vmem>>) attributes {dimension_semantics = [#tpu.dimension_semantics<parallel>], iteration_bounds = array<i64: 1>, scalar_prefetch = 0 : i64, scratch_operands = 0 : i64, tpu.core_type = #tpu.core_type<tc>, window_params = [{transform_indices = @transform_0, window_bounds = array<i64: 8, 784>}, {transform_indices = @transform_1, window_bounds = array<i64: 8, 20>}, {pipeline_mode = #tpu.pipeline_mode<synchronous>, transform_indices = @transform_2, window_bounds = array<i64: 784, 512>}, {pipeline_mode = #tpu.pipeline_mode<synchronous>, transform_indices = @transform_3, window_bounds = array<i64: 1, 512>}, {pipeline_mode = #tpu.pipeline_mode<synchronous>, transform_indices = @transform_4, window_bounds = array<i64: 512, 40>}, {pipeline_mode = #tpu.pipeline_mode<synchronous>, transform_indices = @transform_5, window_bounds = array<i64: 1, 40>}, {pipeline_mode = #tpu.pipeline_mode<synchronous>, transform_indices = @transform_6, window_bounds = array<i64: 20, 512>}, {pipeline_mode = #tpu.pipeline_mode<synchronous>, transform_indices = @transform_7, window_bounds = array<i64: 1, 512>}, {pipeline_mode = #tpu.pipeline_mode<synchronous>, transform_indices = @transform_8, window_bounds = array<i64: 512, 784>}, {pipeline_mode = #tpu.pipeline_mode<synchronous>, transform_indices = @transform_9, window_bounds = array<i64: 1, 784>}, {transform_indices = @transform_10, window_bounds = array<i64: 8, 784>}, {transform_indices = @transform_11, window_bounds = array<i64: 8, 40>}]} {
    %c0 = arith.constant 0 : index
    %c0_0 = arith.constant 0 : index
    %0 = vector.load %arg1[%c0, %c0_0] : memref<8x784xf32, #tpu.memory_space<vmem>>, vector<8x784xf32>
    %1 = arith.truncf %0 : vector<8x784xf32> to vector<8x784xbf16>
    %c0_1 = arith.constant 0 : index
    %c0_2 = arith.constant 0 : index
    %2 = vector.load %arg3[%c0_1, %c0_2] : memref<784x512xbf16, #tpu.memory_space<vmem>>, vector<784x512xbf16>
    %cst = arith.constant dense<0.000000e+00> : vector<8x512xf32>
    %3 = tpu.matmul %1, %2, %cst {dimension_numbers = #tpu.dot_dimension_numbers<[1], [0], [0], [1], [0, 0, 1, 1], [], []>} : vector<8x784xbf16>, vector<784x512xbf16>, vector<8x512xf32> -> vector<8x512xf32>
    %c0_3 = arith.constant 0 : index
    %c0_4 = arith.constant 0 : index
    %4 = vector.load %arg4[%c0_3, %c0_4] : memref<1x512xf32, #tpu.memory_space<vmem>>, vector<1x512xf32>
    %5 = vector.broadcast %4 : vector<1x512xf32> to vector<8x512xf32>
    %6 = arith.addf %3, %5 : vector<8x512xf32>
    %cst_5 = arith.constant 0.000000e+00 : f32
    %7 = vector.broadcast %cst_5 : f32 to vector<8x512xf32>
    %8 = arith.maximumf %6, %7 : vector<8x512xf32>
    %9 = arith.truncf %8 : vector<8x512xf32> to vector<8x512xbf16>
    %c0_6 = arith.constant 0 : index
    %c0_7 = arith.constant 0 : index
    %10 = vector.load %arg5[%c0_6, %c0_7] : memref<512x40xbf16, #tpu.memory_space<vmem>>, vector<512x40xbf16>
    %cst_8 = arith.constant dense<0.000000e+00> : vector<8x40xf32>
    %11 = tpu.matmul %9, %10, %cst_8 {dimension_numbers = #tpu.dot_dimension_numbers<[1], [0], [0], [1], [0, 0, 1, 1], [], []>} : vector<8x512xbf16>, vector<512x40xbf16>, vector<8x40xf32> -> vector<8x40xf32>
    %c0_9 = arith.constant 0 : index
    %c0_10 = arith.constant 0 : index
    %12 = vector.load %arg6[%c0_9, %c0_10] : memref<1x40xf32, #tpu.memory_space<vmem>>, vector<1x40xf32>
    %13 = vector.broadcast %12 : vector<1x40xf32> to vector<8x40xf32>
    %14 = arith.addf %11, %13 : vector<8x40xf32>
    %15 = vector.extract_strided_slice %14 {offsets = [0, 0], sizes = [8, 20], strides = [1, 1]} : vector<8x40xf32> to vector<8x20xf32>
    %16 = vector.extract_strided_slice %14 {offsets = [0, 20], sizes = [8, 20], strides = [1, 1]} : vector<8x40xf32> to vector<8x20xf32>
    %c0_11 = arith.constant 0 : index
    %c0_12 = arith.constant 0 : index
    %17 = vector.load %arg2[%c0_11, %c0_12] : memref<8x20xf32, #tpu.memory_space<vmem>>, vector<8x20xf32>
    %cst_13 = arith.constant 5.000000e-01 : f32
    %18 = vector.broadcast %cst_13 : f32 to vector<8x20xf32>
    %19 = arith.mulf %16, %18 : vector<8x20xf32>
    %20 = math.exp %19 : vector<8x20xf32>
    %21 = arith.mulf %17, %20 : vector<8x20xf32>
    %22 = arith.addf %15, %21 : vector<8x20xf32>
    %c0_14 = arith.constant 0 : index
    %c0_15 = arith.constant 0 : index
    %23 = vector.load %arg7[%c0_14, %c0_15] : memref<20x512xf32, #tpu.memory_space<vmem>>, vector<20x512xf32>
    %cst_16 = arith.constant dense<0.000000e+00> : vector<8x512xf32>
    %24 = tpu.matmul %22, %23, %cst_16 {dimension_numbers = #tpu.dot_dimension_numbers<[1], [0], [0], [1], [0, 0, 1, 1], [], []>} : vector<8x20xf32>, vector<20x512xf32>, vector<8x512xf32> -> vector<8x512xf32>
    %c0_17 = arith.constant 0 : index
    %c0_18 = arith.constant 0 : index
    %25 = vector.load %arg8[%c0_17, %c0_18] : memref<1x512xf32, #tpu.memory_space<vmem>>, vector<1x512xf32>
    %26 = vector.broadcast %25 : vector<1x512xf32> to vector<8x512xf32>
    %27 = arith.addf %24, %26 : vector<8x512xf32>
    %cst_19 = arith.constant 0.000000e+00 : f32
    %28 = vector.broadcast %cst_19 : f32 to vector<8x512xf32>
    %29 = arith.maximumf %27, %28 : vector<8x512xf32>
    %30 = arith.truncf %29 : vector<8x512xf32> to vector<8x512xbf16>
    %c0_20 = arith.constant 0 : index
    %c0_21 = arith.constant 0 : index
    %31 = vector.load %arg9[%c0_20, %c0_21] : memref<512x784xbf16, #tpu.memory_space<vmem>>, vector<512x784xbf16>
    %cst_22 = arith.constant dense<0.000000e+00> : vector<8x784xf32>
    %32 = tpu.matmul %30, %31, %cst_22 {dimension_numbers = #tpu.dot_dimension_numbers<[1], [0], [0], [1], [0, 0, 1, 1], [], []>} : vector<8x512xbf16>, vector<512x784xbf16>, vector<8x784xf32> -> vector<8x784xf32>
    %c0_23 = arith.constant 0 : index
    %c0_24 = arith.constant 0 : index
    %33 = vector.load %arg10[%c0_23, %c0_24] : memref<1x784xf32, #tpu.memory_space<vmem>>, vector<1x784xf32>
    %34 = vector.broadcast %33 : vector<1x784xf32> to vector<8x784xf32>
    %35 = arith.addf %32, %34 : vector<8x784xf32>
    %36 = arith.negf %35 : vector<8x784xf32>
    %37 = math.exp %36 : vector<8x784xf32>
    %cst_25 = arith.constant 1.000000e+00 : f32
    %38 = vector.broadcast %cst_25 : f32 to vector<8x784xf32>
    %39 = arith.addf %38, %37 : vector<8x784xf32>
    %40 = arith.divf %38, %39 : vector<8x784xf32>
    %c0_26 = arith.constant 0 : index
    %c0_27 = arith.constant 0 : index
    %41 = vector.load %arg11[%c0_26, %c0_27] : memref<8x784xf32, #tpu.memory_space<vmem>>, vector<8x784xf32>
    tpu.vector_store %arg11[%c0_26, %c0_27], %40 {strides = array<i32>} : memref<8x784xf32, #tpu.memory_space<vmem>>, vector<8x784xf32>,
    %c0_28 = arith.constant 0 : index
    %c0_29 = arith.constant 0 : index
    %42 = vector.load %arg12[%c0_28, %c0_29] : memref<8x40xf32, #tpu.memory_space<vmem>>, vector<8x40xf32>
    tpu.vector_store %arg12[%c0_28, %c0_29], %14 {strides = array<i32>} : memref<8x40xf32, #tpu.memory_space<vmem>>, vector<8x40xf32>,
    return
  }
  func.func @transform_0(%arg0: i32) -> (i32, i32) {
    %c0_i32 = arith.constant 0 : i32
    %c0_i32_0 = arith.constant 0 : i32
    return %arg0, %c0_i32 : i32, i32
  }
  func.func @transform_1(%arg0: i32) -> (i32, i32) {
    %c0_i32 = arith.constant 0 : i32
    %c0_i32_0 = arith.constant 0 : i32
    return %arg0, %c0_i32 : i32, i32
  }
  func.func @transform_2(%arg0: i32) -> (i32, i32) {
    %c0_i32 = arith.constant 0 : i32
    %c0_i32_0 = arith.constant 0 : i32
    %c0_i32_1 = arith.constant 0 : i32
    return %c0_i32, %c0_i32_0 : i32, i32
  }
  func.func @transform_3(%arg0: i32) -> (i32, i32) {
    %c0_i32 = arith.constant 0 : i32
    %c0_i32_0 = arith.constant 0 : i32
    %c0_i32_1 = arith.constant 0 : i32
    return %c0_i32, %c0_i32_0 : i32, i32
  }
  func.func @transform_4(%arg0: i32) -> (i32, i32) {
    %c0_i32 = arith.constant 0 : i32
    %c0_i32_0 = arith.constant 0 : i32
    %c0_i32_1 = arith.constant 0 : i32
    return %c0_i32, %c0_i32_0 : i32, i32
  }
  func.func @transform_5(%arg0: i32) -> (i32, i32) {
    %c0_i32 = arith.constant 0 : i32
    %c0_i32_0 = arith.constant 0 : i32
    %c0_i32_1 = arith.constant 0 : i32
    return %c0_i32, %c0_i32_0 : i32, i32
  }
  func.func @transform_6(%arg0: i32) -> (i32, i32) {
    %c0_i32 = arith.constant 0 : i32
    %c0_i32_0 = arith.constant 0 : i32
    %c0_i32_1 = arith.constant 0 : i32
    return %c0_i32, %c0_i32_0 : i32, i32
  }
  func.func @transform_7(%arg0: i32) -> (i32, i32) {
    %c0_i32 = arith.constant 0 : i32
    %c0_i32_0 = arith.constant 0 : i32
    %c0_i32_1 = arith.constant 0 : i32
    return %c0_i32, %c0_i32_0 : i32, i32
  }
  func.func @transform_8(%arg0: i32) -> (i32, i32) {
    %c0_i32 = arith.constant 0 : i32
    %c0_i32_0 = arith.constant 0 : i32
    %c0_i32_1 = arith.constant 0 : i32
    return %c0_i32, %c0_i32_0 : i32, i32
  }
  func.func @transform_9(%arg0: i32) -> (i32, i32) {
    %c0_i32 = arith.constant 0 : i32
    %c0_i32_0 = arith.constant 0 : i32
    %c0_i32_1 = arith.constant 0 : i32
    return %c0_i32, %c0_i32_0 : i32, i32
  }
  func.func @transform_10(%arg0: i32) -> (i32, i32) {
    %c0_i32 = arith.constant 0 : i32
    %c0_i32_0 = arith.constant 0 : i32
    return %arg0, %c0_i32 : i32, i32
  }
  func.func @transform_11(%arg0: i32) -> (i32, i32) {
    %c0_i32 = arith.constant 0 : i32
    %c0_i32_0 = arith.constant 0 : i32
    return %arg0, %c0_i32 : i32, i32
  }
}

</mosaic_0001>

<llo_original>
// kernel: tpu_custom_call.1
$region0: #{tpu_custom_call.1}
  #allocation0 [shape = 'u32[]', space=smem, size = 0x4, offset = 0x4, fixed_abs, tag = 'smem constant byte address 0x4 - core index']
  #allocation1 [shape = 'u32[144,128]{1,0:T(1,128)}', space=vmem, size = 0x12000, scoped, tag = 'internal scratch']
  %s0 = inlined_call_operand.vmem [shape: f32[8,784], index: 0, kind: input, shape index: {}]
  %s1 = inlined_call_operand.vmem [shape: f32[8,20], index: 1, kind: input, shape index: {}]
  %s2 = inlined_call_operand.vmem [shape: bf16[784,512], index: 2, kind: input, shape index: {}]
  %s3 = inlined_call_operand.vmem [shape: f32[1,512], index: 3, kind: input, shape index: {}]
  %s4 = inlined_call_operand.vmem [shape: bf16[512,40], index: 4, kind: input, shape index: {}]
  %s5 = inlined_call_operand.vmem [shape: f32[1,40], index: 5, kind: input, shape index: {}]
  %s6 = inlined_call_operand.vmem [shape: f32[20,512], index: 6, kind: input, shape index: {}]
  %s7 = inlined_call_operand.vmem [shape: f32[1,512], index: 7, kind: input, shape index: {}]
  %s8 = inlined_call_operand.vmem [shape: bf16[512,784], index: 8, kind: input, shape index: {}]
  %s9 = inlined_call_operand.vmem [shape: f32[1,784], index: 9, kind: input, shape index: {}]
  %s10 = inlined_call_operand.hbm [shape: f32[8,784], index: 10, kind: output, shape index: {0}]
  %s11 = inlined_call_operand.hbm [shape: f32[8,40], index: 11, kind: output, shape index: {1}]
  %12 = xla_tuple %s10, %s11
  %s13 = sld [smem:[#allocation0]]
  $region58: #{tpu_custom_call.1} parent=0
    _
  %s15 = ssub.s32 1, %s13
  %s16 = scalar_select 0, %s15, %s13
  $region1: #{tpu_custom_call.1} parent=0
    #allocation2 [shape = 'u8[28672]{0}', space=vmem, size = 0x7000, scoped, tag = 'output window, operand 0, single buffered']
    #allocation3 [shape = 's32[1]{0}', space=sflag, size = 0x4, scoped, tag = 'scoped memory for tpu_custom_call.1']
    #allocation4 [shape = 'u8[4096]{0}', space=vmem, size = 0x1000, scoped, tag = 'output window, operand 1, single buffered']
    #allocation5 [shape = 's32[1]{0}', space=sflag, size = 0x4, scoped, tag = 'scoped memory for tpu_custom_call.1']
    %17 = vsyncpa [#allocation3], 0
    %18 = vsyncpa [#allocation5], 0
    // Predicated region
    $region2: #{tpu_custom_call.1} parent=1 // pred_check
      _
    $region3: #{tpu_custom_call.1} parent=1 // pred_check_branch
      %20 = sbr.rel (0) target = $region5
    $region4: #{tpu_custom_call.1} parent=1 // pred_region
      _
    $region5: #{tpu_custom_call.1} parent=1 // pred_fallthru
      _
    // Predicated region
    $region6: #{tpu_custom_call.1} parent=1 // pred_check
      _
    $region7: #{tpu_custom_call.1} parent=1 // pred_check_branch
      %22 = sbr.rel (0) target = $region9
    $region8: #{tpu_custom_call.1} parent=1 // pred_region
      _
    $region9: #{tpu_custom_call.1} parent=1 // pred_fallthru
      _
    // Predicated region
    $region10: #{tpu_custom_call.1} parent=1 // pred_check
      _
    $region11: #{tpu_custom_call.1} parent=1 // pred_check_branch
      %24 = sbr.rel (0) target = $region13
    $region12: #{tpu_custom_call.1} parent=1 // pred_region
      _
    $region13: #{tpu_custom_call.1} parent=1 // pred_fallthru
      _
    // Predicated region
    $region14: #{tpu_custom_call.1} parent=1 // pred_check
      _
    $region15: #{tpu_custom_call.1} parent=1 // pred_check_branch
      %26 = sbr.rel (0) target = $region17
    $region16: #{tpu_custom_call.1} parent=1 // pred_region
      _
    $region17: #{tpu_custom_call.1} parent=1 // pred_fallthru
      _
    // Predicated region
    $region18: #{tpu_custom_call.1} parent=1 // pred_check
      _
    $region19: #{tpu_custom_call.1} parent=1 // pred_check_branch
      %28 = sbr.rel (0) target = $region21
    $region20: #{tpu_custom_call.1} parent=1 // pred_region
      _
    $region21: #{tpu_custom_call.1} parent=1 // pred_fallthru
      _
    // Predicated region
    $region22: #{tpu_custom_call.1} parent=1 // pred_check
      _
    $region23: #{tpu_custom_call.1} parent=1 // pred_check_branch
      %30 = sbr.rel (0) target = $region25
    $region24: #{tpu_custom_call.1} parent=1 // pred_region
      _
    $region25: #{tpu_custom_call.1} parent=1 // pred_fallthru
      _
    // Predicated region
    $region26: #{tpu_custom_call.1} parent=1 // pred_check
      _
    $region27: #{tpu_custom_call.1} parent=1 // pred_check_branch
      %32 = sbr.rel (0) target = $region29
    $region28: #{tpu_custom_call.1} parent=1 // pred_region
      _
    $region29: #{tpu_custom_call.1} parent=1 // pred_fallthru
      _
    // Predicated region
    $region30: #{tpu_custom_call.1} parent=1 // pred_check
      _
    $region31: #{tpu_custom_call.1} parent=1 // pred_check_branch
      %34 = sbr.rel (0) target = $region33
    $region32: #{tpu_custom_call.1} parent=1 // pred_region
      _
    $region33: #{tpu_custom_call.1} parent=1 // pred_fallthru
      _
    // Predicated region
    $region34: #{tpu_custom_call.1} parent=1 // pred_check
      _
    $region35: #{tpu_custom_call.1} parent=1 // pred_check_branch
      %36 = sbr.rel (0) target = $region37
    $region36: #{tpu_custom_call.1} parent=1 // pred_region
      _
    $region37: #{tpu_custom_call.1} parent=1 // pred_fallthru
      _
    // Predicated region
    $region38: #{tpu_custom_call.1} parent=1 // pred_check
      _
    $region39: #{tpu_custom_call.1} parent=1 // pred_check_branch
      %38 = sbr.rel (0) target = $region41
    $region40: #{tpu_custom_call.1} parent=1 // pred_region
      _
    $region41: #{tpu_custom_call.1} parent=1 // pred_fallthru
      _
    %v40 = vld [vmem:[%s0] sm:$0xff]
    %v41 = vld [vmem:[%s0 + $0x8] sm:$0xff]
    %v42 = vld [vmem:[%s0 + $0x10] sm:$0xff]
    %v43 = vld [vmem:[%s0 + $0x18] sm:$0xff]
    %v44 = vld [vmem:[%s0 + $0x20] sm:$0xff]
    %v45 = vld [vmem:[%s0 + $0x28] sm:$0xff]
    %v46 = vld [vmem:[%s0 + $0x30] sm:$0xff]
    %v47 = vpack.c.bf16 %v40, %v40
    %v48 = vpack.c.bf16 %v41, %v41
    %v49 = vpack.c.bf16 %v42, %v42
    %v50 = vpack.c.bf16 %v43, %v43
    %v51 = vpack.c.bf16 %v44, %v44
    %v52 = vpack.c.bf16 %v45, %v45
    %v53 = vpack.c.bf16 %v46, %v46
    %v54 = vld [vmem:[%s2] sm:$0xff]
    %v55 = vld [vmem:[%s2 + $0x8] sm:$0xff]
    %v56 = vld [vmem:[%s2 + $0x10] sm:$0xff]
    %v57 = vld [vmem:[%s2 + $0x18] sm:$0xff]
    %v58 = vld [vmem:[%s2 + $0x20] sm:$0xff]
    %v59 = vld [vmem:[%s2 + $0x28] sm:$0xff]
    %v60 = vld [vmem:[%s2 + $0x30] sm:$0xff]
    %v61 = vld [vmem:[%s2 + $0x38] sm:$0xff]
    %v62 = vld [vmem:[%s2 + $0x40] sm:$0xff]
    %v63 = vld [vmem:[%s2 + $0x48] sm:$0xff]
    %v64 = vld [vmem:[%s2 + $0x50] sm:$0xff]
    %v65 = vld [vmem:[%s2 + $0x58] sm:$0xff]
    %v66 = vld [vmem:[%s2 + $0x60] sm:$0xff]
    %v67 = vld [vmem:[%s2 + $0x68] sm:$0xff]
    %v68 = vld [vmem:[%s2 + $0x70] sm:$0xff]
    %v69 = vld [vmem:[%s2 + $0x78] sm:$0xff]
    %v70 = vld [vmem:[%s2 + $0x80] sm:$0xff]
    %v71 = vld [vmem:[%s2 + $0x88] sm:$0xff]
    %v72 = vld [vmem:[%s2 + $0x90] sm:$0xff]
    %v73 = vld [vmem:[%s2 + $0x98] sm:$0xff]
    %v74 = vld [vmem:[%s2 + $0xa0] sm:$0xff]
    %v75 = vld [vmem:[%s2 + $0xa8] sm:$0xff]
    %v76 = vld [vmem:[%s2 + $0xb0] sm:$0xff]
    %v77 = vld [vmem:[%s2 + $0xb8] sm:$0xff]
    %v78 = vld [vmem:[%s2 + $0xc0] sm:$0xff]
    %v79 = vld [vmem:[%s2 + $0xc8] sm:$0xff]
    %v80 = vld [vmem:[%s2 + $0xd0] sm:$0xff]
    %v81 = vld [vmem:[%s2 + $0xd8] sm:$0xff]
    %v82 = vld [vmem:[%s2 + $0xe0] sm:$0xff]
    %v83 = vld [vmem:[%s2 + $0xe8] sm:$0xff]
    %v84 = vld [vmem:[%s2 + $0xf0] sm:$0xff]
    %v85 = vld [vmem:[%s2 + $0xf8] sm:$0xff]
    %v86 = vld [vmem:[%s2 + $0x100] sm:$0xff]
    %v87 = vld [vmem:[%s2 + $0x108] sm:$0xff]
    %v88 = vld [vmem:[%s2 + $0x110] sm:$0xff]
    %v89 = vld [vmem:[%s2 + $0x118] sm:$0xff]
    %v90 = vld [vmem:[%s2 + $0x120] sm:$0xff]
    %v91 = vld [vmem:[%s2 + $0x128] sm:$0xff]
    %v92 = vld [vmem:[%s2 + $0x130] sm:$0xff]
    %v93 = vld [vmem:[%s2 + $0x138] sm:$0xff]
    %v94 = vld [vmem:[%s2 + $0x140] sm:$0xff]
    %v95 = vld [vmem:[%s2 + $0x148] sm:$0xff]
    %v96 = vld [vmem:[%s2 + $0x150] sm:$0xff]
    %v97 = vld [vmem:[%s2 + $0x158] sm:$0xff]
    %v98 = vld [vmem:[%s2 + $0x160] sm:$0xff]
    %v99 = vld [vmem:[%s2 + $0x168] sm:$0xff]
    %v100 = vld [vmem:[%s2 + $0x170] sm:$0xff]
    %v101 = vld [vmem:[%s2 + $0x178] sm:$0xff]
    %v102 = vld [vmem:[%s2 + $0x180] sm:$0xff]
    %v103 = vld [vmem:[%s2 + $0x188] sm:$0xff]
    %v104 = vld [vmem:[%s2 + $0x190] sm:$0xff]
    %v105 = vld [vmem:[%s2 + $0x198] sm:$0xff]
    %v106 = vld [vmem:[%s2 + $0x1a0] sm:$0xff]
    %v107 = vld [vmem:[%s2 + $0x1a8] sm:$0xff]
    %v108 = vld [vmem:[%s2 + $0x1b0] sm:$0xff]
    %v109 = vld [vmem:[%s2 + $0x1b8] sm:$0xff]
    %v110 = vld [vmem:[%s2 + $0x1c0] sm:$0xff]
    %v111 = vld [vmem:[%s2 + $0x1c8] sm:$0xff]
    %v112 = vld [vmem:[%s2 + $0x1d0] sm:$0xff]
    %v113 = vld [vmem:[%s2 + $0x1d8] sm:$0xff]
    %v114 = vld [vmem:[%s2 + $0x1e0] sm:$0xff]
    %v115 = vld [vmem:[%s2 + $0x1e8] sm:$0xff]
    %v116 = vld [vmem:[%s2 + $0x1f0] sm:$0xff]
    %v117 = vld [vmem:[%s2 + $0x1f8] sm:$0xff]
    %v118 = vld [vmem:[%s2 + $0x200] sm:$0xff]
    %v119 = vld [vmem:[%s2 + $0x208] sm:$0xff]
    %v120 = vld [vmem:[%s2 + $0x210] sm:$0xff]
    %v121 = vld [vmem:[%s2 + $0x218] sm:$0xff]
    %v122 = vld [vmem:[%s2 + $0x220] sm:$0xff]
    %v123 = vld [vmem:[%s2 + $0x228] sm:$0xff]
    %v124 = vld [vmem:[%s2 + $0x230] sm:$0xff]
    %v125 = vld [vmem:[%s2 + $0x238] sm:$0xff]
    %v126 = vld [vmem:[%s2 + $0x240] sm:$0xff]
    %v127 = vld [vmem:[%s2 + $0x248] sm:$0xff]
    %v128 = vld [vmem:[%s2 + $0x250] sm:$0xff]
    %v129 = vld [vmem:[%s2 + $0x258] sm:$0xff]
    %v130 = vld [vmem:[%s2 + $0x260] sm:$0xff]
    %v131 = vld [vmem:[%s2 + $0x268] sm:$0xff]
    %v132 = vld [vmem:[%s2 + $0x270] sm:$0xff]
    %v133 = vld [vmem:[%s2 + $0x278] sm:$0xff]
    %v134 = vld [vmem:[%s2 + $0x280] sm:$0xff]
    %v135 = vld [vmem:[%s2 + $0x288] sm:$0xff]
    %v136 = vld [vmem:[%s2 + $0x290] sm:$0xff]
    %v137 = vld [vmem:[%s2 + $0x298] sm:$0xff]
    %v138 = vld [vmem:[%s2 + $0x2a0] sm:$0xff]
    %v139 = vld [vmem:[%s2 + $0x2a8] sm:$0xff]
    %v140 = vld [vmem:[%s2 + $0x2b0] sm:$0xff]
    %v141 = vld [vmem:[%s2 + $0x2b8] sm:$0xff]
    %v142 = vld [vmem:[%s2 + $0x2c0] sm:$0xff]
    %v143 = vld [vmem:[%s2 + $0x2c8] sm:$0xff]
    %v144 = vld [vmem:[%s2 + $0x2d0] sm:$0xff]
    %v145 = vld [vmem:[%s2 + $0x2d8] sm:$0xff]
    %v146 = vld [vmem:[%s2 + $0x2e0] sm:$0xff]
    %v147 = vld [vmem:[%s2 + $0x2e8] sm:$0xff]
    %v148 = vld [vmem:[%s2 + $0x2f0] sm:$0xff]
    %v149 = vld [vmem:[%s2 + $0x2f8] sm:$0xff]
    %v150 = vld [vmem:[%s2 + $0x300] sm:$0xff]
    %v151 = vld [vmem:[%s2 + $0x308] sm:$0xff]
    %v152 = vld [vmem:[%s2 + $0x310] sm:$0xff]
    %v153 = vld [vmem:[%s2 + $0x318] sm:$0xff]
    %v154 = vld [vmem:[%s2 + $0x320] sm:$0xff]
    %v155 = vld [vmem:[%s2 + $0x328] sm:$0xff]
    %v156 = vld [vmem:[%s2 + $0x330] sm:$0xff]
    %v157 = vld [vmem:[%s2 + $0x338] sm:$0xff]
    %v158 = vld [vmem:[%s2 + $0x340] sm:$0xff]
    %v159 = vld [vmem:[%s2 + $0x348] sm:$0xff]
    %v160 = vld [vmem:[%s2 + $0x350] sm:$0xff]
    %v161 = vld [vmem:[%s2 + $0x358] sm:$0xff]
    %v162 = vld [vmem:[%s2 + $0x360] sm:$0xff]
    %v163 = vld [vmem:[%s2 + $0x368] sm:$0xff]
    %v164 = vld [vmem:[%s2 + $0x370] sm:$0xff]
    %v165 = vld [vmem:[%s2 + $0x378] sm:$0xff]
    %v166 = vld [vmem:[%s2 + $0x380] sm:$0xff]
    %v167 = vld [vmem:[%s2 + $0x388] sm:$0xff]
    %v168 = vld [vmem:[%s2 + $0x390] sm:$0xff]
    %v169 = vld [vmem:[%s2 + $0x398] sm:$0xff]
    %v170 = vld [vmem:[%s2 + $0x3a0] sm:$0xff]
    %v171 = vld [vmem:[%s2 + $0x3a8] sm:$0xff]
    %v172 = vld [vmem:[%s2 + $0x3b0] sm:$0xff]
    %v173 = vld [vmem:[%s2 + $0x3b8] sm:$0xff]
    %v174 = vld [vmem:[%s2 + $0x3c0] sm:$0xff]
    %v175 = vld [vmem:[%s2 + $0x3c8] sm:$0xff]
    %v176 = vld [vmem:[%s2 + $0x3d0] sm:$0xff]
    %v177 = vld [vmem:[%s2 + $0x3d8] sm:$0xff]
    %v178 = vld [vmem:[%s2 + $0x3e0] sm:$0xff]
    %v179 = vld [vmem:[%s2 + $0x3e8] sm:$0xff]
    %v180 = vld [vmem:[%s2 + $0x3f0] sm:$0xff]
    %v181 = vld [vmem:[%s2 + $0x3f8] sm:$0xff]
    %v182 = vld [vmem:[%s2 + $0x400] sm:$0xff]
    %v183 = vld [vmem:[%s2 + $0x408] sm:$0xff]
    %v184 = vld [vmem:[%s2 + $0x410] sm:$0xff]
    %v185 = vld [vmem:[%s2 + $0x418] sm:$0xff]
    %v186 = vld [vmem:[%s2 + $0x420] sm:$0xff]
    %v187 = vld [vmem:[%s2 + $0x428] sm:$0xff]
    %v188 = vld [vmem:[%s2 + $0x430] sm:$0xff]
    %v189 = vld [vmem:[%s2 + $0x438] sm:$0xff]
    %v190 = vld [vmem:[%s2 + $0x440] sm:$0xff]
    %v191 = vld [vmem:[%s2 + $0x448] sm:$0xff]
    %v192 = vld [vmem:[%s2 + $0x450] sm:$0xff]
    %v193 = vld [vmem:[%s2 + $0x458] sm:$0xff]
    %v194 = vld [vmem:[%s2 + $0x460] sm:$0xff]
    %v195 = vld [vmem:[%s2 + $0x468] sm:$0xff]
    %v196 = vld [vmem:[%s2 + $0x470] sm:$0xff]
    %v197 = vld [vmem:[%s2 + $0x478] sm:$0xff]
    %v198 = vld [vmem:[%s2 + $0x480] sm:$0xff]
    %v199 = vld [vmem:[%s2 + $0x488] sm:$0xff]
    %v200 = vld [vmem:[%s2 + $0x490] sm:$0xff]
    %v201 = vld [vmem:[%s2 + $0x498] sm:$0xff]
    %v202 = vld [vmem:[%s2 + $0x4a0] sm:$0xff]
    %v203 = vld [vmem:[%s2 + $0x4a8] sm:$0xff]
    %v204 = vld [vmem:[%s2 + $0x4b0] sm:$0xff]
    %v205 = vld [vmem:[%s2 + $0x4b8] sm:$0xff]
    %v206 = vld [vmem:[%s2 + $0x4c0] sm:$0xff]
    %v207 = vld [vmem:[%s2 + $0x4c8] sm:$0xff]
    %v208 = vld [vmem:[%s2 + $0x4d0] sm:$0xff]
    %v209 = vld [vmem:[%s2 + $0x4d8] sm:$0xff]
    %v210 = vld [vmem:[%s2 + $0x4e0] sm:$0xff]
    %v211 = vld [vmem:[%s2 + $0x4e8] sm:$0xff]
    %v212 = vld [vmem:[%s2 + $0x4f0] sm:$0xff]
    %v213 = vld [vmem:[%s2 + $0x4f8] sm:$0xff]
    %v214 = vld [vmem:[%s2 + $0x500] sm:$0xff]
    %v215 = vld [vmem:[%s2 + $0x508] sm:$0xff]
    %v216 = vld [vmem:[%s2 + $0x510] sm:$0xff]
    %v217 = vld [vmem:[%s2 + $0x518] sm:$0xff]
    %v218 = vld [vmem:[%s2 + $0x520] sm:$0xff]
    %v219 = vld [vmem:[%s2 + $0x528] sm:$0xff]
    %v220 = vld [vmem:[%s2 + $0x530] sm:$0xff]
    %v221 = vld [vmem:[%s2 + $0x538] sm:$0xff]
    %v222 = vld [vmem:[%s2 + $0x540] sm:$0xff]
    %v223 = vld [vmem:[%s2 + $0x548] sm:$0xff]
    %v224 = vld [vmem:[%s2 + $0x550] sm:$0xff]
    %v225 = vld [vmem:[%s2 + $0x558] sm:$0xff]
    %v226 = vld [vmem:[%s2 + $0x560] sm:$0xff]
    %v227 = vld [vmem:[%s2 + $0x568] sm:$0xff]
    %v228 = vld [vmem:[%s2 + $0x570] sm:$0xff]
    %v229 = vld [vmem:[%s2 + $0x578] sm:$0xff]
    %v230 = vld [vmem:[%s2 + $0x580] sm:$0xff]
    %v231 = vld [vmem:[%s2 + $0x588] sm:$0xff]
    %v232 = vld [vmem:[%s2 + $0x590] sm:$0xff]
    %v233 = vld [vmem:[%s2 + $0x598] sm:$0xff]
    %v234 = vld [vmem:[%s2 + $0x5a0] sm:$0xff]
    %v235 = vld [vmem:[%s2 + $0x5a8] sm:$0xff]
    %v236 = vld [vmem:[%s2 + $0x5b0] sm:$0xff]
    %v237 = vld [vmem:[%s2 + $0x5b8] sm:$0xff]
    %v238 = vld [vmem:[%s2 + $0x5c0] sm:$0xff]
    %v239 = vld [vmem:[%s2 + $0x5c8] sm:$0xff]
    %v240 = vld [vmem:[%s2 + $0x5d0] sm:$0xff]
    %v241 = vld [vmem:[%s2 + $0x5d8] sm:$0xff]
    %v242 = vld [vmem:[%s2 + $0x5e0] sm:$0xff]
    %v243 = vld [vmem:[%s2 + $0x5e8] sm:$0xff]
    %v244 = vld [vmem:[%s2 + $0x5f0] sm:$0xff]
    %v245 = vld [vmem:[%s2 + $0x5f8] sm:$0xff]
    %v246 = vld [vmem:[%s2 + $0x600] sm:$0xff]
    %v247 = vld [vmem:[%s2 + $0x608] sm:$0xff]
    %v248 = vld [vmem:[%s2 + $0x610] sm:$0xff]
    %v249 = vld [vmem:[%s2 + $0x618] sm:$0xff]
    %v250 = vld [vmem:[%s3] sm:$0xf]
    %v252 = vlaneseq
    %v253 = vshrl.u32 %v252, 7
    %v254 = vsub.s32 0, %v253
    %v255 = vrot.slane %v250, %v254
    %v256 = vlaneseq
    %v257 = vshrl.u32 %v256, 7
    %v258 = vsub.s32 1, %v257
    %v259 = vrot.slane %v250, %v258
    %v260 = vlaneseq
    %v261 = vshrl.u32 %v260, 7
    %v262 = vsub.s32 2, %v261
    %v263 = vrot.slane %v250, %v262
    %v264 = vlaneseq
    %v265 = vshrl.u32 %v264, 7
    %v266 = vsub.s32 3, %v265
    %v267 = vrot.slane %v250, %v266
    %v468 = vunpack.c.l.b16 %v54
    %v469 = vunpack.c.h.b16 %v54
    %v470 = vunpack.c.l.b16 %v55
    %v471 = vunpack.c.h.b16 %v55
    %v472 = vunpack.c.l.b16 %v56
    %v473 = vunpack.c.h.b16 %v56
    %v474 = vunpack.c.l.b16 %v57
    %v475 = vunpack.c.h.b16 %v57
    %v476 = vunpack.c.l.b16 %v58
    %v477 = vunpack.c.h.b16 %v58
    %v478 = vunpack.c.l.b16 %v59
    %v479 = vunpack.c.h.b16 %v59
    %v480 = vunpack.c.l.b16 %v60
    %v481 = vunpack.c.h.b16 %v60
    %v482 = vunpack.c.l.b16 %v61
    %v483 = vunpack.c.h.b16 %v61
    %v484 = vunpack.c.l.b16 %v62
    %v485 = vunpack.c.h.b16 %v62
    %v486 = vunpack.c.l.b16 %v63
    %v487 = vunpack.c.h.b16 %v63
    %v488 = vunpack.c.l.b16 %v64
    %v489 = vunpack.c.h.b16 %v64
    %v490 = vunpack.c.l.b16 %v65
    %v491 = vunpack.c.h.b16 %v65
    %v492 = vunpack.c.l.b16 %v66
    %v493 = vunpack.c.h.b16 %v66
    %v494 = vunpack.c.l.b16 %v67
    %v495 = vunpack.c.h.b16 %v67
    %v496 = vunpack.c.l.b16 %v68
    %v497 = vunpack.c.h.b16 %v68
    %v498 = vunpack.c.l.b16 %v69
    %v499 = vunpack.c.h.b16 %v69
    %v500 = vunpack.c.l.b16 %v70
    %v501 = vunpack.c.h.b16 %v70
    %v502 = vunpack.c.l.b16 %v71
    %v503 = vunpack.c.h.b16 %v71
    %v504 = vunpack.c.l.b16 %v72
    %v505 = vunpack.c.h.b16 %v72
    %v506 = vunpack.c.l.b16 %v73
    %v507 = vunpack.c.h.b16 %v73
    %v508 = vunpack.c.l.b16 %v74
    %v509 = vunpack.c.h.b16 %v74
    %v510 = vunpack.c.l.b16 %v75
    %v511 = vunpack.c.h.b16 %v75
    %v512 = vunpack.c.l.b16 %v76
    %v513 = vunpack.c.h.b16 %v76
    %v514 = vunpack.c.l.b16 %v77
    %v515 = vunpack.c.h.b16 %v77
    %v516 = vunpack.c.l.b16 %v78
    %v517 = vunpack.c.h.b16 %v78
    %v518 = vunpack.c.l.b16 %v79
    %v519 = vunpack.c.h.b16 %v79
    %v520 = vunpack.c.l.b16 %v80
    %v521 = vunpack.c.h.b16 %v80
    %v522 = vunpack.c.l.b16 %v81
    %v523 = vunpack.c.h.b16 %v81
    %v524 = vunpack.c.l.b16 %v82
    %v525 = vunpack.c.h.b16 %v82
    %v526 = vunpack.c.l.b16 %v83
    %v527 = vunpack.c.h.b16 %v83
    %v528 = vunpack.c.l.b16 %v84
    %v529 = vunpack.c.h.b16 %v84
    %v530 = vunpack.c.l.b16 %v85
    %v531 = vunpack.c.h.b16 %v85
    %v532 = vunpack.c.l.b16 %v86
    %v533 = vunpack.c.h.b16 %v86
    %v534 = vunpack.c.l.b16 %v87
    %v535 = vunpack.c.h.b16 %v87
    %v536 = vunpack.c.l.b16 %v88
    %v537 = vunpack.c.h.b16 %v88
    %v538 = vunpack.c.l.b16 %v89
    %v539 = vunpack.c.h.b16 %v89
    %v540 = vunpack.c.l.b16 %v90
    %v541 = vunpack.c.h.b16 %v90
    %v542 = vunpack.c.l.b16 %v91
    %v543 = vunpack.c.h.b16 %v91
    %v544 = vunpack.c.l.b16 %v92
    %v545 = vunpack.c.h.b16 %v92
    %v546 = vunpack.c.l.b16 %v93
    %v547 = vunpack.c.h.b16 %v93
    %v548 = vunpack.c.l.b16 %v94
    %v549 = vunpack.c.h.b16 %v94
    %v550 = vunpack.c.l.b16 %v95
    %v551 = vunpack.c.h.b16 %v95
    %v552 = vunpack.c.l.b16 %v96
    %v553 = vunpack.c.h.b16 %v96
    %v554 = vunpack.c.l.b16 %v97
    %v555 = vunpack.c.h.b16 %v97
    %v556 = vunpack.c.l.b16 %v98
    %v557 = vunpack.c.h.b16 %v98
    %v558 = vunpack.c.l.b16 %v99
    %v559 = vunpack.c.h.b16 %v99
    %v560 = vunpack.c.l.b16 %v100
    %v561 = vunpack.c.h.b16 %v100
    %v562 = vunpack.c.l.b16 %v101
    %v563 = vunpack.c.h.b16 %v101
    %v564 = vunpack.c.l.b16 %v102
    %v565 = vunpack.c.h.b16 %v102
    %v566 = vunpack.c.l.b16 %v103
    %v567 = vunpack.c.h.b16 %v103
    %v568 = vunpack.c.l.b16 %v104
    %v569 = vunpack.c.h.b16 %v104
    %v570 = vunpack.c.l.b16 %v105
    %v571 = vunpack.c.h.b16 %v105
    %v572 = vunpack.c.l.b16 %v106
    %v573 = vunpack.c.h.b16 %v106
    %v574 = vunpack.c.l.b16 %v107
    %v575 = vunpack.c.h.b16 %v107
    %v576 = vunpack.c.l.b16 %v108
    %v577 = vunpack.c.h.b16 %v108
    %v578 = vunpack.c.l.b16 %v109
    %v579 = vunpack.c.h.b16 %v109
    %v580 = vunpack.c.l.b16 %v110
    %v581 = vunpack.c.h.b16 %v110
    %v582 = vunpack.c.l.b16 %v111
    %v583 = vunpack.c.h.b16 %v111
    %v584 = vunpack.c.l.b16 %v112
    %v585 = vunpack.c.h.b16 %v112
    %v586 = vunpack.c.l.b16 %v113
    %v587 = vunpack.c.h.b16 %v113
    %v588 = vunpack.c.l.b16 %v114
    %v589 = vunpack.c.h.b16 %v114
    %v590 = vunpack.c.l.b16 %v115
    %v591 = vunpack.c.h.b16 %v115
    %v592 = vunpack.c.l.b16 %v116
    %v593 = vunpack.c.h.b16 %v116
    %v594 = vunpack.c.l.b16 %v117
    %v595 = vunpack.c.h.b16 %v117
    %v596 = vunpack.c.l.b16 %v118
    %v597 = vunpack.c.h.b16 %v118
    %v598 = vunpack.c.l.b16 %v119
    %v599 = vunpack.c.h.b16 %v119
    %v600 = vunpack.c.l.b16 %v120
    %v601 = vunpack.c.h.b16 %v120
    %v602 = vunpack.c.l.b16 %v121
    %v603 = vunpack.c.h.b16 %v121
    %v604 = vunpack.c.l.b16 %v122
    %v605 = vunpack.c.h.b16 %v122
    %v606 = vunpack.c.l.b16 %v123
    %v607 = vunpack.c.h.b16 %v123
    %v608 = vunpack.c.l.b16 %v124
    %v609 = vunpack.c.h.b16 %v124
    %v610 = vunpack.c.l.b16 %v125
    %v611 = vunpack.c.h.b16 %v125
    %v612 = vunpack.c.l.b16 %v126
    %v613 = vunpack.c.h.b16 %v126
    %v614 = vunpack.c.l.b16 %v127
    %v615 = vunpack.c.h.b16 %v127
    %v616 = vunpack.c.l.b16 %v128
    %v617 = vunpack.c.h.b16 %v128
    %v618 = vunpack.c.l.b16 %v129
    %v619 = vunpack.c.h.b16 %v129
    %v620 = vunpack.c.l.b16 %v130
    %v621 = vunpack.c.h.b16 %v130
    %v622 = vunpack.c.l.b16 %v131
    %v623 = vunpack.c.h.b16 %v131
    %v624 = vunpack.c.l.b16 %v132
    %v625 = vunpack.c.h.b16 %v132
    %v626 = vunpack.c.l.b16 %v133
    %v627 = vunpack.c.h.b16 %v133
    %v628 = vunpack.c.l.b16 %v134
    %v629 = vunpack.c.h.b16 %v134
    %v630 = vunpack.c.l.b16 %v135
    %v631 = vunpack.c.h.b16 %v135
    %v632 = vunpack.c.l.b16 %v136
    %v633 = vunpack.c.h.b16 %v136
    %v634 = vunpack.c.l.b16 %v137
    %v635 = vunpack.c.h.b16 %v137
    %v636 = vunpack.c.l.b16 %v138
    %v637 = vunpack.c.h.b16 %v138
    %v638 = vunpack.c.l.b16 %v139
    %v639 = vunpack.c.h.b16 %v139
    %v640 = vunpack.c.l.b16 %v140
    %v641 = vunpack.c.h.b16 %v140
    %v642 = vunpack.c.l.b16 %v141
    %v643 = vunpack.c.h.b16 %v141
    %v644 = vunpack.c.l.b16 %v142
    %v645 = vunpack.c.h.b16 %v142
    %v646 = vunpack.c.l.b16 %v143
    %v647 = vunpack.c.h.b16 %v143
    %v648 = vunpack.c.l.b16 %v144
    %v649 = vunpack.c.h.b16 %v144
    %v650 = vunpack.c.l.b16 %v145
    %v651 = vunpack.c.h.b16 %v145
    %v652 = vunpack.c.l.b16 %v146
    %v653 = vunpack.c.h.b16 %v146
    %v654 = vunpack.c.l.b16 %v147
    %v655 = vunpack.c.h.b16 %v147
    %v656 = vunpack.c.l.b16 %v148
    %v657 = vunpack.c.h.b16 %v148
    %v658 = vunpack.c.l.b16 %v149
    %v659 = vunpack.c.h.b16 %v149
    %v660 = vunpack.c.l.b16 %v150
    %v661 = vunpack.c.h.b16 %v150
    %v662 = vunpack.c.l.b16 %v151
    %v663 = vunpack.c.h.b16 %v151
    %v664 = vunpack.c.l.b16 %v152
    %v665 = vunpack.c.h.b16 %v152
    %v666 = vunpack.c.l.b16 %v153
    %v667 = vunpack.c.h.b16 %v153
    %v668 = vunpack.c.l.b16 %v154
    %v669 = vunpack.c.h.b16 %v154
    %v670 = vunpack.c.l.b16 %v155
    %v671 = vunpack.c.h.b16 %v155
    %v672 = vunpack.c.l.b16 %v156
    %v673 = vunpack.c.h.b16 %v156
    %v674 = vunpack.c.l.b16 %v157
    %v675 = vunpack.c.h.b16 %v157
    %v676 = vunpack.c.l.b16 %v158
    %v677 = vunpack.c.h.b16 %v158
    %v678 = vunpack.c.l.b16 %v159
    %v679 = vunpack.c.h.b16 %v159
    %v680 = vunpack.c.l.b16 %v160
    %v681 = vunpack.c.h.b16 %v160
    %v682 = vunpack.c.l.b16 %v161
    %v683 = vunpack.c.h.b16 %v161
    %v684 = vunpack.c.l.b16 %v162
    %v685 = vunpack.c.h.b16 %v162
    %v686 = vunpack.c.l.b16 %v163
    %v687 = vunpack.c.h.b16 %v163
    %v688 = vunpack.c.l.b16 %v164
    %v689 = vunpack.c.h.b16 %v164
    %v690 = vunpack.c.l.b16 %v165
    %v691 = vunpack.c.h.b16 %v165
    %v692 = vunpack.c.l.b16 %v166
    %v693 = vunpack.c.h.b16 %v166
    %v694 = vunpack.c.l.b16 %v167
    %v695 = vunpack.c.h.b16 %v167
    %v696 = vunpack.c.l.b16 %v168
    %v697 = vunpack.c.h.b16 %v168
    %v698 = vunpack.c.l.b16 %v169
    %v699 = vunpack.c.h.b16 %v169
    %v700 = vunpack.c.l.b16 %v170
    %v701 = vunpack.c.h.b16 %v170
    %v702 = vunpack.c.l.b16 %v171
    %v703 = vunpack.c.h.b16 %v171
    %v704 = vunpack.c.l.b16 %v172
    %v705 = vunpack.c.h.b16 %v172
    %v706 = vunpack.c.l.b16 %v173
    %v707 = vunpack.c.h.b16 %v173
    %v708 = vunpack.c.l.b16 %v174
    %v709 = vunpack.c.h.b16 %v174
    %v710 = vunpack.c.l.b16 %v175
    %v711 = vunpack.c.h.b16 %v175
    %v712 = vunpack.c.l.b16 %v176
    %v713 = vunpack.c.h.b16 %v176
    %v714 = vunpack.c.l.b16 %v177
    %v715 = vunpack.c.h.b16 %v177
    %v716 = vunpack.c.l.b16 %v178
    %v717 = vunpack.c.h.b16 %v178
    %v718 = vunpack.c.l.b16 %v179
    %v719 = vunpack.c.h.b16 %v179
    %v720 = vunpack.c.l.b16 %v180
    %v721 = vunpack.c.h.b16 %v180
    %v722 = vunpack.c.l.b16 %v181
    %v723 = vunpack.c.h.b16 %v181
    %v724 = vunpack.c.l.b16 %v182
    %v725 = vunpack.c.h.b16 %v182
    %v726 = vunpack.c.l.b16 %v183
    %v727 = vunpack.c.h.b16 %v183
    %v728 = vunpack.c.l.b16 %v184
    %v729 = vunpack.c.h.b16 %v184
    %v730 = vunpack.c.l.b16 %v185
    %v731 = vunpack.c.h.b16 %v185
    %v732 = vunpack.c.l.b16 %v186
    %v733 = vunpack.c.h.b16 %v186
    %v734 = vunpack.c.l.b16 %v187
    %v735 = vunpack.c.h.b16 %v187
    %v736 = vunpack.c.l.b16 %v188
    %v737 = vunpack.c.h.b16 %v188
    %v738 = vunpack.c.l.b16 %v189
    %v739 = vunpack.c.h.b16 %v189
    %v740 = vunpack.c.l.b16 %v190
    %v741 = vunpack.c.h.b16 %v190
    %v742 = vunpack.c.l.b16 %v191
    %v743 = vunpack.c.h.b16 %v191
    %v744 = vunpack.c.l.b16 %v192
    %v745 = vunpack.c.h.b16 %v192
    %v746 = vunpack.c.l.b16 %v193
    %v747 = vunpack.c.h.b16 %v193
    %v748 = vunpack.c.l.b16 %v194
    %v749 = vunpack.c.h.b16 %v194
    %v750 = vunpack.c.l.b16 %v195
    %v751 = vunpack.c.h.b16 %v195
    %v752 = vunpack.c.l.b16 %v196
    %v753 = vunpack.c.h.b16 %v196
    %v754 = vunpack.c.l.b16 %v197
    %v755 = vunpack.c.h.b16 %v197
    %v756 = vunpack.c.l.b16 %v198
    %v757 = vunpack.c.h.b16 %v198
    %v758 = vunpack.c.l.b16 %v199
    %v759 = vunpack.c.h.b16 %v199
    %v760 = vunpack.c.l.b16 %v200
    %v761 = vunpack.c.h.b16 %v200
    %v762 = vunpack.c.l.b16 %v201
    %v763 = vunpack.c.h.b16 %v201
    %v764 = vunpack.c.l.b16 %v202
    %v765 = vunpack.c.h.b16 %v202
    %v766 = vunpack.c.l.b16 %v203
    %v767 = vunpack.c.h.b16 %v203
    %v768 = vunpack.c.l.b16 %v204
    %v769 = vunpack.c.h.b16 %v204
    %v770 = vunpack.c.l.b16 %v205
    %v771 = vunpack.c.h.b16 %v205
    %v772 = vunpack.c.l.b16 %v206
    %v773 = vunpack.c.h.b16 %v206
    %v774 = vunpack.c.l.b16 %v207
    %v775 = vunpack.c.h.b16 %v207
    %v776 = vunpack.c.l.b16 %v208
    %v777 = vunpack.c.h.b16 %v208
    %v778 = vunpack.c.l.b16 %v209
    %v779 = vunpack.c.h.b16 %v209
    %v780 = vunpack.c.l.b16 %v210
    %v781 = vunpack.c.h.b16 %v210
    %v782 = vunpack.c.l.b16 %v211
    %v783 = vunpack.c.h.b16 %v211
    %v784 = vunpack.c.l.b16 %v212
    %v785 = vunpack.c.h.b16 %v212
    %v786 = vunpack.c.l.b16 %v213
    %v787 = vunpack.c.h.b16 %v213
    %v788 = vunpack.c.l.b16 %v214
    %v789 = vunpack.c.h.b16 %v214
    %v790 = vunpack.c.l.b16 %v215
    %v791 = vunpack.c.h.b16 %v215
    %v792 = vunpack.c.l.b16 %v216
    %v793 = vunpack.c.h.b16 %v216
    %v794 = vunpack.c.l.b16 %v217
    %v795 = vunpack.c.h.b16 %v217
    %v796 = vunpack.c.l.b16 %v218
    %v797 = vunpack.c.h.b16 %v218
    %v798 = vunpack.c.l.b16 %v219
    %v799 = vunpack.c.h.b16 %v219
    %v800 = vunpack.c.l.b16 %v220
    %v801 = vunpack.c.h.b16 %v220
    %v802 = vunpack.c.l.b16 %v221
    %v803 = vunpack.c.h.b16 %v221
    %v804 = vunpack.c.l.b16 %v222
    %v805 = vunpack.c.h.b16 %v222
    %v806 = vunpack.c.l.b16 %v223
    %v807 = vunpack.c.h.b16 %v223
    %v808 = vunpack.c.l.b16 %v224
    %v809 = vunpack.c.h.b16 %v224
    %v810 = vunpack.c.l.b16 %v225
    %v811 = vunpack.c.h.b16 %v225
    %v812 = vunpack.c.l.b16 %v226
    %v813 = vunpack.c.h.b16 %v226
    %v814 = vunpack.c.l.b16 %v227
    %v815 = vunpack.c.h.b16 %v227
    %v816 = vunpack.c.l.b16 %v228
    %v817 = vunpack.c.h.b16 %v228
    %v818 = vunpack.c.l.b16 %v229
    %v819 = vunpack.c.h.b16 %v229
    %v820 = vunpack.c.l.b16 %v230
    %v821 = vunpack.c.h.b16 %v230
    %v822 = vunpack.c.l.b16 %v231
    %v823 = vunpack.c.h.b16 %v231
    %v824 = vunpack.c.l.b16 %v232
    %v825 = vunpack.c.h.b16 %v232
    %v826 = vunpack.c.l.b16 %v233
    %v827 = vunpack.c.h.b16 %v233
    %v828 = vunpack.c.l.b16 %v234
    %v829 = vunpack.c.h.b16 %v234
    %v830 = vunpack.c.l.b16 %v235
    %v831 = vunpack.c.h.b16 %v235
    %v832 = vunpack.c.l.b16 %v236
    %v833 = vunpack.c.h.b16 %v236
    %v834 = vunpack.c.l.b16 %v237
    %v835 = vunpack.c.h.b16 %v237
    %v836 = vunpack.c.l.b16 %v238
    %v837 = vunpack.c.h.b16 %v238
    %v838 = vunpack.c.l.b16 %v239
    %v839 = vunpack.c.h.b16 %v239
    %v840 = vunpack.c.l.b16 %v240
    %v841 = vunpack.c.h.b16 %v240
    %v842 = vunpack.c.l.b16 %v241
    %v843 = vunpack.c.h.b16 %v241
    %v844 = vunpack.c.l.b16 %v242
    %v845 = vunpack.c.h.b16 %v242
    %v846 = vunpack.c.l.b16 %v243
    %v847 = vunpack.c.h.b16 %v243
    %v848 = vunpack.c.l.b16 %v244
    %v849 = vunpack.c.h.b16 %v244
    %v850 = vunpack.c.l.b16 %v245
    %v851 = vunpack.c.h.b16 %v245
    %v852 = vunpack.c.l.b16 %v246
    %v853 = vunpack.c.h.b16 %v246
    %v854 = vunpack.c.l.b16 %v247
    %v855 = vunpack.c.h.b16 %v247
    %v856 = vunpack.c.l.b16 %v248
    %v857 = vunpack.c.h.b16 %v248
    %v858 = vunpack.c.l.b16 %v249
    %v859 = vunpack.c.h.b16 %v249
    %v860 = vpack.c.b16 %v472, %v468
    %v861 = vpack.c.b16 %v473, %v469
    %v862 = vpack.c.b16 %v474, %v470
    %v863 = vpack.c.b16 %v475, %v471
    %v864 = vpack.c.b16 %v480, %v476
    %v865 = vpack.c.b16 %v481, %v477
    %v866 = vpack.c.b16 %v482, %v478
    %v867 = vpack.c.b16 %v483, %v479
    %v868 = vpack.c.b16 %v488, %v484
    %v869 = vpack.c.b16 %v489, %v485
    %v870 = vpack.c.b16 %v490, %v486
    %v871 = vpack.c.b16 %v491, %v487
    %v872 = vpack.c.b16 %v496, %v492
    %v873 = vpack.c.b16 %v497, %v493
    %v874 = vpack.c.b16 %v498, %v494
    %v875 = vpack.c.b16 %v499, %v495
    %v876 = vpack.c.b16 %v504, %v500
    %v877 = vpack.c.b16 %v505, %v501
    %v878 = vpack.c.b16 %v506, %v502
    %v879 = vpack.c.b16 %v507, %v503
    %v880 = vpack.c.b16 %v512, %v508
    %v881 = vpack.c.b16 %v513, %v509
    %v882 = vpack.c.b16 %v514, %v510
    %v883 = vpack.c.b16 %v515, %v511
    %v884 = vpack.c.b16 %v520, %v516
    %v885 = vpack.c.b16 %v521, %v517
    %v886 = vpack.c.b16 %v522, %v518
    %v887 = vpack.c.b16 %v523, %v519
    %v888 = vpack.c.b16 %v528, %v524
    %v889 = vpack.c.b16 %v529, %v525
    %v890 = vpack.c.b16 %v530, %v526
    %v891 = vpack.c.b16 %v531, %v527
    %v892 = vpack.c.b16 %v536, %v532
    %v893 = vpack.c.b16 %v537, %v533
    %v894 = vpack.c.b16 %v538, %v534
    %v895 = vpack.c.b16 %v539, %v535
    %v896 = vpack.c.b16 %v544, %v540
    %v897 = vpack.c.b16 %v545, %v541
    %v898 = vpack.c.b16 %v546, %v542
    %v899 = vpack.c.b16 %v547, %v543
    %v900 = vpack.c.b16 %v552, %v548
    %v901 = vpack.c.b16 %v553, %v549
    %v902 = vpack.c.b16 %v554, %v550
    %v903 = vpack.c.b16 %v555, %v551
    %v904 = vpack.c.b16 %v560, %v556
    %v905 = vpack.c.b16 %v561, %v557
    %v906 = vpack.c.b16 %v562, %v558
    %v907 = vpack.c.b16 %v563, %v559
    %v908 = vpack.c.b16 %v568, %v564
    %v909 = vpack.c.b16 %v569, %v565
    %v910 = vpack.c.b16 %v570, %v566
    %v911 = vpack.c.b16 %v571, %v567
    %v912 = vpack.c.b16 %v576, %v572
    %v913 = vpack.c.b16 %v577, %v573
    %v914 = vpack.c.b16 %v578, %v574
    %v915 = vpack.c.b16 %v579, %v575
    %v916 = vpack.c.b16 %v584, %v580
    %v917 = vpack.c.b16 %v585, %v581
    %v918 = vpack.c.b16 %v586, %v582
    %v919 = vpack.c.b16 %v587, %v583
    %v920 = vpack.c.b16 %v592, %v588
    %v921 = vpack.c.b16 %v593, %v589
    %v922 = vpack.c.b16 %v594, %v590
    %v923 = vpack.c.b16 %v595, %v591
    %v924 = vpack.c.b16 %v600, %v596
    %v925 = vpack.c.b16 %v601, %v597
    %v926 = vpack.c.b16 %v602, %v598
    %v927 = vpack.c.b16 %v603, %v599
    %v928 = vpack.c.b16 %v608, %v604
    %v929 = vpack.c.b16 %v609, %v605
    %v930 = vpack.c.b16 %v610, %v606
    %v931 = vpack.c.b16 %v611, %v607
    %v932 = vpack.c.b16 %v616, %v612
    %v933 = vpack.c.b16 %v617, %v613
    %v934 = vpack.c.b16 %v618, %v614
    %v935 = vpack.c.b16 %v619, %v615
    %v936 = vpack.c.b16 %v624, %v620
    %v937 = vpack.c.b16 %v625, %v621
    %v938 = vpack.c.b16 %v626, %v622
    %v939 = vpack.c.b16 %v627, %v623
    %v940 = vpack.c.b16 %v632, %v628
    %v941 = vpack.c.b16 %v633, %v629
    %v942 = vpack.c.b16 %v634, %v630
    %v943 = vpack.c.b16 %v635, %v631
    %v944 = vpack.c.b16 %v640, %v636
    %v945 = vpack.c.b16 %v641, %v637
    %v946 = vpack.c.b16 %v642, %v638
    %v947 = vpack.c.b16 %v643, %v639
    %v948 = vpack.c.b16 %v648, %v644
    %v949 = vpack.c.b16 %v649, %v645
    %v950 = vpack.c.b16 %v650, %v646
    %v951 = vpack.c.b16 %v651, %v647
    %v952 = vpack.c.b16 %v656, %v652
    %v953 = vpack.c.b16 %v657, %v653
    %v954 = vpack.c.b16 %v658, %v654
    %v955 = vpack.c.b16 %v659, %v655
    %v956 = vpack.c.b16 %v664, %v660
    %v957 = vpack.c.b16 %v665, %v661
    %v958 = vpack.c.b16 %v666, %v662
    %v959 = vpack.c.b16 %v667, %v663
    %v960 = vpack.c.b16 %v672, %v668
    %v961 = vpack.c.b16 %v673, %v669
    %v962 = vpack.c.b16 %v674, %v670
    %v963 = vpack.c.b16 %v675, %v671
    %v964 = vpack.c.b16 %v680, %v676
    %v965 = vpack.c.b16 %v681, %v677
    %v966 = vpack.c.b16 %v682, %v678
    %v967 = vpack.c.b16 %v683, %v679
    %v968 = vpack.c.b16 %v688, %v684
    %v969 = vpack.c.b16 %v689, %v685
    %v970 = vpack.c.b16 %v690, %v686
    %v971 = vpack.c.b16 %v691, %v687
    %v972 = vpack.c.b16 %v696, %v692
    %v973 = vpack.c.b16 %v697, %v693
    %v974 = vpack.c.b16 %v698, %v694
    %v975 = vpack.c.b16 %v699, %v695
    %v976 = vpack.c.b16 %v704, %v700
    %v977 = vpack.c.b16 %v705, %v701
    %v978 = vpack.c.b16 %v706, %v702
    %v979 = vpack.c.b16 %v707, %v703
    %v980 = vpack.c.b16 %v712, %v708
    %v981 = vpack.c.b16 %v713, %v709
    %v982 = vpack.c.b16 %v714, %v710
    %v983 = vpack.c.b16 %v715, %v711
    %v984 = vpack.c.b16 %v720, %v716
    %v985 = vpack.c.b16 %v721, %v717
    %v986 = vpack.c.b16 %v722, %v718
    %v987 = vpack.c.b16 %v723, %v719
    %v988 = vpack.c.b16 %v728, %v724
    %v989 = vpack.c.b16 %v729, %v725
    %v990 = vpack.c.b16 %v730, %v726
    %v991 = vpack.c.b16 %v731, %v727
    %v992 = vpack.c.b16 %v736, %v732
    %v993 = vpack.c.b16 %v737, %v733
    %v994 = vpack.c.b16 %v738, %v734
    %v995 = vpack.c.b16 %v739, %v735
    %v996 = vpack.c.b16 %v744, %v740
    %v997 = vpack.c.b16 %v745, %v741
    %v998 = vpack.c.b16 %v746, %v742
    %v999 = vpack.c.b16 %v747, %v743
    %v1000 = vpack.c.b16 %v752, %v748
    %v1001 = vpack.c.b16 %v753, %v749
    %v1002 = vpack.c.b16 %v754, %v750
    %v1003 = vpack.c.b16 %v755, %v751
    %v1004 = vpack.c.b16 %v760, %v756
    %v1005 = vpack.c.b16 %v761, %v757
    %v1006 = vpack.c.b16 %v762, %v758
    %v1007 = vpack.c.b16 %v763, %v759
    %v1008 = vpack.c.b16 %v768, %v764
    %v1009 = vpack.c.b16 %v769, %v765
    %v1010 = vpack.c.b16 %v770, %v766
    %v1011 = vpack.c.b16 %v771, %v767
    %v1012 = vpack.c.b16 %v776, %v772
    %v1013 = vpack.c.b16 %v777, %v773
    %v1014 = vpack.c.b16 %v778, %v774
    %v1015 = vpack.c.b16 %v779, %v775
    %v1016 = vpack.c.b16 %v784, %v780
    %v1017 = vpack.c.b16 %v785, %v781
    %v1018 = vpack.c.b16 %v786, %v782
    %v1019 = vpack.c.b16 %v787, %v783
    %v1020 = vpack.c.b16 %v792, %v788
    %v1021 = vpack.c.b16 %v793, %v789
    %v1022 = vpack.c.b16 %v794, %v790
    %v1023 = vpack.c.b16 %v795, %v791
    %v1024 = vpack.c.b16 %v800, %v796
    %v1025 = vpack.c.b16 %v801, %v797
    %v1026 = vpack.c.b16 %v802, %v798
    %v1027 = vpack.c.b16 %v803, %v799
    %v1028 = vpack.c.b16 %v808, %v804
    %v1029 = vpack.c.b16 %v809, %v805
    %v1030 = vpack.c.b16 %v810, %v806
    %v1031 = vpack.c.b16 %v811, %v807
    %v1032 = vpack.c.b16 %v816, %v812
    %v1033 = vpack.c.b16 %v817, %v813
    %v1034 = vpack.c.b16 %v818, %v814
    %v1035 = vpack.c.b16 %v819, %v815
    %v1036 = vpack.c.b16 %v824, %v820
    %v1037 = vpack.c.b16 %v825, %v821
    %v1038 = vpack.c.b16 %v826, %v822
    %v1039 = vpack.c.b16 %v827, %v823
    %v1040 = vpack.c.b16 %v832, %v828
    %v1041 = vpack.c.b16 %v833, %v829
    %v1042 = vpack.c.b16 %v834, %v830
    %v1043 = vpack.c.b16 %v835, %v831
    %v1044 = vpack.c.b16 %v840, %v836
    %v1045 = vpack.c.b16 %v841, %v837
    %v1046 = vpack.c.b16 %v842, %v838
    %v1047 = vpack.c.b16 %v843, %v839
    %v1048 = vpack.c.b16 %v848, %v844
    %v1049 = vpack.c.b16 %v849, %v845
    %v1050 = vpack.c.b16 %v850, %v846
    %v1051 = vpack.c.b16 %v851, %v847
    %v1052 = vpack.c.b16 %v856, %v852
    %v1053 = vpack.c.b16 %v857, %v853
    %v1054 = vpack.c.b16 %v858, %v854
    %v1055 = vpack.c.b16 %v859, %v855
    %vm1252 = vcmask 130048
    %v1254 = vsel %vm1252, %v53, 0
    %1256 = vmatprep.subr.bf16.mxu0 %v861
    %1257 = vmatpush1.bf16.msra.mxu0 %v860
    %1258 = vmatprep.subr.bf16.mxu0 %v865
    %1259 = vmatpush1.bf16.msra.mxu0 %v864
    %1260 = vmatprep.subr.bf16.mxu0 %v869
    %1261 = vmatpush1.bf16.msra.mxu0 %v868
    %1262 = vmatprep.subr.bf16.mxu0 %v873
    %1263 = vmatpush1.bf16.msra.mxu0 %v872
    %1264 = vmatprep.subr.bf16.mxu0 %v877
    %1265 = vmatpush1.bf16.msra.mxu0 %v876
    %1266 = vmatprep.subr.bf16.mxu0 %v881
    %1267 = vmatpush1.bf16.msra.mxu0 %v880
    %1268 = vmatprep.subr.bf16.mxu0 %v885
    %1269 = vmatpush1.bf16.msra.mxu0 %v884
    %1270 = vmatprep.subr.bf16.mxu0 %v889
    %1271 = vmatpush1.bf16.msra.mxu0 %v888
    %1272 = vmatprep.subr.bf16.mxu0 %v893
    %1273 = vmatpush1.bf16.msra.mxu0 %v892
    %1274 = vmatprep.subr.bf16.mxu0 %v897
    %1275 = vmatpush1.bf16.msra.mxu0 %v896
    %1276 = vmatprep.subr.bf16.mxu0 %v901
    %1277 = vmatpush1.bf16.msra.mxu0 %v900
    %1278 = vmatprep.subr.bf16.mxu0 %v905
    %1279 = vmatpush1.bf16.msra.mxu0 %v904
    %1280 = vmatprep.subr.bf16.mxu0 %v909
    %1281 = vmatpush1.bf16.msra.mxu0 %v908
    %1282 = vmatprep.subr.bf16.mxu0 %v913
    %1283 = vmatpush1.bf16.msra.mxu0 %v912
    %1284 = vmatprep.subr.bf16.mxu0 %v917
    %1285 = vmatpush1.bf16.msra.mxu0 %v916
    %1286 = vmatprep.subr.bf16.mxu0 %v921
    %1287 = vmatpush1.bf16.msra.mxu0 %v920
    %1288 = vmatprep.mubr.bf16.mxu0 %v48
    %1289 = vmatmul.mubr.bf16.gmra.mrb[0].mxu0 %v47
    %v1290 = vpop.f32.mrb[0].mxu0
    %v1291 = vadd.f32 %v255, %v1290
    %v1292 = vpop.f32.mrb[0].mxu0
    %v1293 = vadd.f32 %v259, %v1292
    %v1294 = vpop.f32.mrb[0].mxu0
    %v1295 = vpop.f32.mrb[0].mxu0
    %1296 = vdwg.mxu0
    %1297 = vmatprep.subr.bf16.mxu0 %v925
    %1298 = vmatpush1.bf16.msra.mxu0 %v924
    %1299 = vmatprep.subr.bf16.mxu0 %v929
    %1300 = vmatpush1.bf16.msra.mxu0 %v928
    %1301 = vmatprep.subr.bf16.mxu0 %v933
    %1302 = vmatpush1.bf16.msra.mxu0 %v932
    %1303 = vmatprep.subr.bf16.mxu0 %v937
    %1304 = vmatpush1.bf16.msra.mxu0 %v936
    %1305 = vmatprep.subr.bf16.mxu0 %v941
    %1306 = vmatpush1.bf16.msra.mxu0 %v940
    %1307 = vmatprep.subr.bf16.mxu0 %v945
    %1308 = vmatpush1.bf16.msra.mxu0 %v944
    %1309 = vmatprep.subr.bf16.mxu0 %v949
    %1310 = vmatpush1.bf16.msra.mxu0 %v948
    %1311 = vmatprep.subr.bf16.mxu0 %v953
    %1312 = vmatpush1.bf16.msra.mxu0 %v952
    %1313 = vmatprep.subr.bf16.mxu0 %v957
    %1314 = vmatpush1.bf16.msra.mxu0 %v956
    %1315 = vmatprep.subr.bf16.mxu0 %v961
    %1316 = vmatpush1.bf16.msra.mxu0 %v960
    %1317 = vmatprep.subr.bf16.mxu0 %v965
    %1318 = vmatpush1.bf16.msra.mxu0 %v964
    %1319 = vmatprep.subr.bf16.mxu0 %v969
    %1320 = vmatpush1.bf16.msra.mxu0 %v968
    %1321 = vmatprep.subr.bf16.mxu0 %v973
    %1322 = vmatpush1.bf16.msra.mxu0 %v972
    %1323 = vmatprep.subr.bf16.mxu0 %v977
    %1324 = vmatpush1.bf16.msra.mxu0 %v976
    %1325 = vmatprep.subr.bf16.mxu0 %v981
    %1326 = vmatpush1.bf16.msra.mxu0 %v980
    %1327 = vmatprep.subr.bf16.mxu0 %v985
    %1328 = vmatpush1.bf16.msra.mxu0 %v984
    %1329 = vmatprep.mubr.bf16.mxu0 %v50
    %1330 = vmatmul.mubr.bf16.gmra.mrb[0].mxu0 %v49
    %v1331 = vpop.f32.mrb[0].mxu0
    %v1332 = vadd.f32 %v1291, %v1331
    %v1333 = vpop.f32.mrb[0].mxu0
    %v1334 = vadd.f32 %v1293, %v1333
    %v1335 = vpop.f32.mrb[0].mxu0
    %v1336 = vpop.f32.mrb[0].mxu0
    %1337 = vdwg.mxu0
    %1338 = vmatprep.subr.bf16.mxu0 %v989
    %1339 = vmatpush1.bf16.msra.mxu0 %v988
    %1340 = vmatprep.subr.bf16.mxu0 %v993
    %1341 = vmatpush1.bf16.msra.mxu0 %v992
    %1342 = vmatprep.subr.bf16.mxu0 %v997
    %1343 = vmatpush1.bf16.msra.mxu0 %v996
    %1344 = vmatprep.subr.bf16.mxu0 %v1001
    %1345 = vmatpush1.bf16.msra.mxu0 %v1000
    %1346 = vmatprep.subr.bf16.mxu0 %v1005
    %1347 = vmatpush1.bf16.msra.mxu0 %v1004
    %1348 = vmatprep.subr.bf16.mxu0 %v1009
    %1349 = vmatpush1.bf16.msra.mxu0 %v1008
    %1350 = vmatprep.subr.bf16.mxu0 %v1013
    %1351 = vmatpush1.bf16.msra.mxu0 %v1012
    %1352 = vmatprep.subr.bf16.mxu0 %v1017
    %1353 = vmatpush1.bf16.msra.mxu0 %v1016
    %1354 = vmatprep.subr.bf16.mxu0 %v1021
    %1355 = vmatpush1.bf16.msra.mxu0 %v1020
    %1356 = vmatprep.subr.bf16.mxu0 %v1025
    %1357 = vmatpush1.bf16.msra.mxu0 %v1024
    %1358 = vmatprep.subr.bf16.mxu0 %v1029
    %1359 = vmatpush1.bf16.msra.mxu0 %v1028
    %1360 = vmatprep.subr.bf16.mxu0 %v1033
    %1361 = vmatpush1.bf16.msra.mxu0 %v1032
    %1362 = vmatprep.subr.bf16.mxu0 %v1037
    %1363 = vmatpush1.bf16.msra.mxu0 %v1036
    %1364 = vmatprep.subr.bf16.mxu0 %v1041
    %1365 = vmatpush1.bf16.msra.mxu0 %v1040
    %1366 = vmatprep.subr.bf16.mxu0 %v1045
    %1367 = vmatpush1.bf16.msra.mxu0 %v1044
    %1368 = vmatprep.subr.bf16.mxu0 %v1049
    %1369 = vmatpush1.bf16.msra.mxu0 %v1048
    %1370 = vmatprep.mubr.bf16.mxu0 %v52
    %1371 = vmatmul.mubr.bf16.gmra.mrb[0].mxu0 %v51
    %v1372 = vpop.f32.mrb[0].mxu0
    %v1373 = vadd.f32 %v1332, %v1372
    %v1374 = vpop.f32.mrb[0].mxu0
    %v1375 = vadd.f32 %v1334, %v1374
    %v1376 = vpop.f32.mrb[0].mxu0
    %v1377 = vpop.f32.mrb[0].mxu0
    %1378 = vdwg.mxu0
    %1379 = vmatprep.subr.bf16.mxu0 %v1053
    %1380 = vmatpush1.bf16.msra.mxu0 %v1052
    %1381 = vmatprep.subr.bf16.mxu0 0
    %1382 = vmatpush1.bf16.msra.mxu0 0
    %1383 = vmatprep.subr.bf16.mxu0 0
    %1384 = vmatpush1.bf16.msra.mxu0 0
    %1385 = vmatprep.subr.bf16.mxu0 0
    %1386 = vmatpush1.bf16.msra.mxu0 0
    %1387 = vmatprep.subr.bf16.mxu0 0
    %1388 = vmatpush1.bf16.msra.mxu0 0
    %1389 = vmatprep.subr.bf16.mxu0 0
    %1390 = vmatpush1.bf16.msra.mxu0 0
    %1391 = vmatprep.subr.bf16.mxu0 0
    %1392 = vmatpush1.bf16.msra.mxu0 0
    %1393 = vmatprep.subr.bf16.mxu0 0
    %1394 = vmatpush1.bf16.msra.mxu0 0
    %1395 = vmatprep.subr.bf16.mxu0 0
    %1396 = vmatpush1.bf16.msra.mxu0 0
    %1397 = vmatprep.subr.bf16.mxu0 0
    %1398 = vmatpush1.bf16.msra.mxu0 0
    %1399 = vmatprep.subr.bf16.mxu0 0
    %1400 = vmatpush1.bf16.msra.mxu0 0
    %1401 = vmatprep.subr.bf16.mxu0 0
    %1402 = vmatpush1.bf16.msra.mxu0 0
    %1403 = vmatprep.subr.bf16.mxu0 0
    %1404 = vmatpush1.bf16.msra.mxu0 0
    %1405 = vmatprep.subr.bf16.mxu0 0
    %1406 = vmatpush1.bf16.msra.mxu0 0
    %1407 = vmatprep.subr.bf16.mxu0 0
    %1408 = vmatpush1.bf16.msra.mxu0 0
    %1409 = vmatprep.subr.bf16.mxu0 0
    %1410 = vmatpush1.bf16.msra.mxu0 0
    %1411 = vmatprep.mubr.bf16.mxu0 0
    %1412 = vmatmul.mubr.bf16.gmra.mrb[0].mxu0 %v1254
    %v1413 = vpop.f32.mrb[0].mxu0
    %v1414 = vadd.f32 %v1373, %v1413
    %v1415 = vpop.f32.mrb[0].mxu0
    %v1416 = vadd.f32 %v1375, %v1415
    %v1417 = vpop.f32.mrb[0].mxu0
    %v1418 = vpop.f32.mrb[0].mxu0
    %1419 = vdwg.mxu0
    %1420 = vmatprep.subr.bf16.mxu0 %v863
    %1421 = vmatpush1.bf16.msra.mxu0 %v862
    %1422 = vmatprep.subr.bf16.mxu0 %v867
    %1423 = vmatpush1.bf16.msra.mxu0 %v866
    %1424 = vmatprep.subr.bf16.mxu0 %v871
    %1425 = vmatpush1.bf16.msra.mxu0 %v870
    %1426 = vmatprep.subr.bf16.mxu0 %v875
    %1427 = vmatpush1.bf16.msra.mxu0 %v874
    %1428 = vmatprep.subr.bf16.mxu0 %v879
    %1429 = vmatpush1.bf16.msra.mxu0 %v878
    %1430 = vmatprep.subr.bf16.mxu0 %v883
    %1431 = vmatpush1.bf16.msra.mxu0 %v882
    %1432 = vmatprep.subr.bf16.mxu0 %v887
    %1433 = vmatpush1.bf16.msra.mxu0 %v886
    %1434 = vmatprep.subr.bf16.mxu0 %v891
    %1435 = vmatpush1.bf16.msra.mxu0 %v890
    %1436 = vmatprep.subr.bf16.mxu0 %v895
    %1437 = vmatpush1.bf16.msra.mxu0 %v894
    %1438 = vmatprep.subr.bf16.mxu0 %v899
    %1439 = vmatpush1.bf16.msra.mxu0 %v898
    %1440 = vmatprep.subr.bf16.mxu0 %v903
    %1441 = vmatpush1.bf16.msra.mxu0 %v902
    %1442 = vmatprep.subr.bf16.mxu0 %v907
    %1443 = vmatpush1.bf16.msra.mxu0 %v906
    %1444 = vmatprep.subr.bf16.mxu0 %v911
    %1445 = vmatpush1.bf16.msra.mxu0 %v910
    %1446 = vmatprep.subr.bf16.mxu0 %v915
    %1447 = vmatpush1.bf16.msra.mxu0 %v914
    %1448 = vmatprep.subr.bf16.mxu0 %v919
    %1449 = vmatpush1.bf16.msra.mxu0 %v918
    %1450 = vmatprep.subr.bf16.mxu0 %v923
    %1451 = vmatpush1.bf16.msra.mxu0 %v922
    %1452 = vmatprep.mubr.bf16.mxu0 %v48
    %1453 = vmatmul.mubr.bf16.gmra.mrb[0].mxu0 %v47
    %v1454 = vpop.f32.mrb[0].mxu0
    %v1455 = vadd.f32 %v263, %v1454
    %v1456 = vpop.f32.mrb[0].mxu0
    %v1457 = vadd.f32 %v267, %v1456
    %v1458 = vpop.f32.mrb[0].mxu0
    %v1459 = vpop.f32.mrb[0].mxu0
    %1460 = vdwg.mxu0
    %1461 = vmatprep.subr.bf16.mxu0 %v927
    %1462 = vmatpush1.bf16.msra.mxu0 %v926
    %1463 = vmatprep.subr.bf16.mxu0 %v931
    %1464 = vmatpush1.bf16.msra.mxu0 %v930
    %1465 = vmatprep.subr.bf16.mxu0 %v935
    %1466 = vmatpush1.bf16.msra.mxu0 %v934
    %1467 = vmatprep.subr.bf16.mxu0 %v939
    %1468 = vmatpush1.bf16.msra.mxu0 %v938
    %1469 = vmatprep.subr.bf16.mxu0 %v943
    %1470 = vmatpush1.bf16.msra.mxu0 %v942
    %1471 = vmatprep.subr.bf16.mxu0 %v947
    %1472 = vmatpush1.bf16.msra.mxu0 %v946
    %1473 = vmatprep.subr.bf16.mxu0 %v951
    %1474 = vmatpush1.bf16.msra.mxu0 %v950
    %1475 = vmatprep.subr.bf16.mxu0 %v955
    %1476 = vmatpush1.bf16.msra.mxu0 %v954
    %1477 = vmatprep.subr.bf16.mxu0 %v959
    %1478 = vmatpush1.bf16.msra.mxu0 %v958
    %1479 = vmatprep.subr.bf16.mxu0 %v963
    %1480 = vmatpush1.bf16.msra.mxu0 %v962
    %1481 = vmatprep.subr.bf16.mxu0 %v967
    %1482 = vmatpush1.bf16.msra.mxu0 %v966
    %1483 = vmatprep.subr.bf16.mxu0 %v971
    %1484 = vmatpush1.bf16.msra.mxu0 %v970
    %1485 = vmatprep.subr.bf16.mxu0 %v975
    %1486 = vmatpush1.bf16.msra.mxu0 %v974
    %1487 = vmatprep.subr.bf16.mxu0 %v979
    %1488 = vmatpush1.bf16.msra.mxu0 %v978
    %1489 = vmatprep.subr.bf16.mxu0 %v983
    %1490 = vmatpush1.bf16.msra.mxu0 %v982
    %1491 = vmatprep.subr.bf16.mxu0 %v987
    %1492 = vmatpush1.bf16.msra.mxu0 %v986
    %1493 = vmatprep.mubr.bf16.mxu0 %v50
    %1494 = vmatmul.mubr.bf16.gmra.mrb[0].mxu0 %v49
    %v1495 = vpop.f32.mrb[0].mxu0
    %v1496 = vadd.f32 %v1455, %v1495
    %v1497 = vpop.f32.mrb[0].mxu0
    %v1498 = vadd.f32 %v1457, %v1497
    %v1499 = vpop.f32.mrb[0].mxu0
    %v1500 = vpop.f32.mrb[0].mxu0
    %1501 = vdwg.mxu0
    %1502 = vmatprep.subr.bf16.mxu0 %v991
    %1503 = vmatpush1.bf16.msra.mxu0 %v990
    %1504 = vmatprep.subr.bf16.mxu0 %v995
    %1505 = vmatpush1.bf16.msra.mxu0 %v994
    %1506 = vmatprep.subr.bf16.mxu0 %v999
    %1507 = vmatpush1.bf16.msra.mxu0 %v998
    %1508 = vmatprep.subr.bf16.mxu0 %v1003
    %1509 = vmatpush1.bf16.msra.mxu0 %v1002
    %1510 = vmatprep.subr.bf16.mxu0 %v1007
    %1511 = vmatpush1.bf16.msra.mxu0 %v1006
    %1512 = vmatprep.subr.bf16.mxu0 %v1011
    %1513 = vmatpush1.bf16.msra.mxu0 %v1010
    %1514 = vmatprep.subr.bf16.mxu0 %v1015
    %1515 = vmatpush1.bf16.msra.mxu0 %v1014
    %1516 = vmatprep.subr.bf16.mxu0 %v1019
    %1517 = vmatpush1.bf16.msra.mxu0 %v1018
    %1518 = vmatprep.subr.bf16.mxu0 %v1023
    %1519 = vmatpush1.bf16.msra.mxu0 %v1022
    %1520 = vmatprep.subr.bf16.mxu0 %v1027
    %1521 = vmatpush1.bf16.msra.mxu0 %v1026
    %1522 = vmatprep.subr.bf16.mxu0 %v1031
    %1523 = vmatpush1.bf16.msra.mxu0 %v1030
    %1524 = vmatprep.subr.bf16.mxu0 %v1035
    %1525 = vmatpush1.bf16.msra.mxu0 %v1034
    %1526 = vmatprep.subr.bf16.mxu0 %v1039
    %1527 = vmatpush1.bf16.msra.mxu0 %v1038
    %1528 = vmatprep.subr.bf16.mxu0 %v1043
    %1529 = vmatpush1.bf16.msra.mxu0 %v1042
    %1530 = vmatprep.subr.bf16.mxu0 %v1047
    %1531 = vmatpush1.bf16.msra.mxu0 %v1046
    %1532 = vmatprep.subr.bf16.mxu0 %v1051
    %1533 = vmatpush1.bf16.msra.mxu0 %v1050
    %1534 = vmatprep.mubr.bf16.mxu0 %v52
    %1535 = vmatmul.mubr.bf16.gmra.mrb[0].mxu0 %v51
    %v1536 = vpop.f32.mrb[0].mxu0
    %v1537 = vadd.f32 %v1496, %v1536
    %v1538 = vpop.f32.mrb[0].mxu0
    %v1539 = vadd.f32 %v1498, %v1538
    %v1540 = vpop.f32.mrb[0].mxu0
    %v1541 = vpop.f32.mrb[0].mxu0
    %1542 = vdwg.mxu0
    %1543 = vmatprep.subr.bf16.mxu0 %v1055
    %1544 = vmatpush1.bf16.msra.mxu0 %v1054
    %1545 = vmatprep.subr.bf16.mxu0 0
    %1546 = vmatpush1.bf16.msra.mxu0 0
    %1547 = vmatprep.subr.bf16.mxu0 0
    %1548 = vmatpush1.bf16.msra.mxu0 0
    %1549 = vmatprep.subr.bf16.mxu0 0
    %1550 = vmatpush1.bf16.msra.mxu0 0
    %1551 = vmatprep.subr.bf16.mxu0 0
    %1552 = vmatpush1.bf16.msra.mxu0 0
    %1553 = vmatprep.subr.bf16.mxu0 0
    %1554 = vmatpush1.bf16.msra.mxu0 0
    %1555 = vmatprep.subr.bf16.mxu0 0
    %1556 = vmatpush1.bf16.msra.mxu0 0
    %1557 = vmatprep.subr.bf16.mxu0 0
    %1558 = vmatpush1.bf16.msra.mxu0 0
    %1559 = vmatprep.subr.bf16.mxu0 0
    %1560 = vmatpush1.bf16.msra.mxu0 0
    %1561 = vmatprep.subr.bf16.mxu0 0
    %1562 = vmatpush1.bf16.msra.mxu0 0
    %1563 = vmatprep.subr.bf16.mxu0 0
    %1564 = vmatpush1.bf16.msra.mxu0 0
    %1565 = vmatprep.subr.bf16.mxu0 0
    %1566 = vmatpush1.bf16.msra.mxu0 0
    %1567 = vmatprep.subr.bf16.mxu0 0
    %1568 = vmatpush1.bf16.msra.mxu0 0
    %1569 = vmatprep.subr.bf16.mxu0 0
    %1570 = vmatpush1.bf16.msra.mxu0 0
    %1571 = vmatprep.subr.bf16.mxu0 0
    %1572 = vmatpush1.bf16.msra.mxu0 0
    %1573 = vmatprep.subr.bf16.mxu0 0
    %1574 = vmatpush1.bf16.msra.mxu0 0
    %1575 = vmatprep.mubr.bf16.mxu0 0
    %1576 = vmatmul.mubr.bf16.gmra.mrb[0].mxu0 %v1254
    %v1577 = vpop.f32.mrb[0].mxu0
    %v1578 = vadd.f32 %v1537, %v1577
    %v1579 = vpop.f32.mrb[0].mxu0
    %v1580 = vadd.f32 %v1539, %v1579
    %v1581 = vpop.f32.mrb[0].mxu0
    %v1582 = vpop.f32.mrb[0].mxu0
    %1583 = vdwg.mxu0
    %v1584 = vmax.f32 %v1414, 0.0
    %v1585 = vmax.f32 %v1416, 0.0
    %v1586 = vmax.f32 %v1578, 0.0
    %v1587 = vmax.f32 %v1580, 0.0
    %v1588 = vpack.c.bf16 %v1584, %v1584
    %v1589 = vpack.c.bf16 %v1585, %v1585
    %v1590 = vpack.c.bf16 %v1586, %v1586
    %v1591 = vpack.c.bf16 %v1587, %v1587
    %v1592 = vld [vmem:[%s4] sm:$0xf]
    %v1593 = vld [vmem:[%s4 + $0x4] sm:$0xf]
    %v1594 = vld [vmem:[%s4 + $0x8] sm:$0xf]
    %v1595 = vld [vmem:[%s4 + $0xc] sm:$0xf]
    %v1596 = vld [vmem:[%s4 + $0x10] sm:$0xf]
    %v1597 = vld [vmem:[%s4 + $0x14] sm:$0xf]
    %v1598 = vld [vmem:[%s4 + $0x18] sm:$0xf]
    %v1599 = vld [vmem:[%s4 + $0x1c] sm:$0xf]
    %v1600 = vld [vmem:[%s4 + $0x20] sm:$0xf]
    %v1601 = vld [vmem:[%s4 + $0x24] sm:$0xf]
    %v1602 = vld [vmem:[%s4 + $0x28] sm:$0xf]
    %v1603 = vld [vmem:[%s4 + $0x2c] sm:$0xf]
    %v1604 = vld [vmem:[%s4 + $0x30] sm:$0xf]
    %v1605 = vld [vmem:[%s4 + $0x34] sm:$0xf]
    %v1606 = vld [vmem:[%s4 + $0x38] sm:$0xf]
    %v1607 = vld [vmem:[%s4 + $0x3c] sm:$0xf]
    %v1608 = vld [vmem:[%s4 + $0x40] sm:$0xf]
    %v1609 = vld [vmem:[%s4 + $0x44] sm:$0xf]
    %v1610 = vld [vmem:[%s4 + $0x48] sm:$0xf]
    %v1611 = vld [vmem:[%s4 + $0x4c] sm:$0xf]
    %v1612 = vld [vmem:[%s4 + $0x50] sm:$0xf]
    %v1613 = vld [vmem:[%s4 + $0x54] sm:$0xf]
    %v1614 = vld [vmem:[%s4 + $0x58] sm:$0xf]
    %v1615 = vld [vmem:[%s4 + $0x5c] sm:$0xf]
    %v1616 = vld [vmem:[%s4 + $0x60] sm:$0xf]
    %v1617 = vld [vmem:[%s4 + $0x64] sm:$0xf]
    %v1618 = vld [vmem:[%s4 + $0x68] sm:$0xf]
    %v1619 = vld [vmem:[%s4 + $0x6c] sm:$0xf]
    %v1620 = vld [vmem:[%s4 + $0x70] sm:$0xf]
    %v1621 = vld [vmem:[%s4 + $0x74] sm:$0xf]
    %v1622 = vld [vmem:[%s4 + $0x78] sm:$0xf]
    %v1623 = vld [vmem:[%s4 + $0x7c] sm:$0xf]
    %v1624 = vld [vmem:[%s4 + $0x80] sm:$0xf]
    %v1625 = vld [vmem:[%s4 + $0x84] sm:$0xf]
    %v1626 = vld [vmem:[%s4 + $0x88] sm:$0xf]
    %v1627 = vld [vmem:[%s4 + $0x8c] sm:$0xf]
    %v1628 = vld [vmem:[%s4 + $0x90] sm:$0xf]
    %v1629 = vld [vmem:[%s4 + $0x94] sm:$0xf]
    %v1630 = vld [vmem:[%s4 + $0x98] sm:$0xf]
    %v1631 = vld [vmem:[%s4 + $0x9c] sm:$0xf]
    %v1632 = vld [vmem:[%s4 + $0xa0] sm:$0xf]
    %v1633 = vld [vmem:[%s4 + $0xa4] sm:$0xf]
    %v1634 = vld [vmem:[%s4 + $0xa8] sm:$0xf]
    %v1635 = vld [vmem:[%s4 + $0xac] sm:$0xf]
    %v1636 = vld [vmem:[%s4 + $0xb0] sm:$0xf]
    %v1637 = vld [vmem:[%s4 + $0xb4] sm:$0xf]
    %v1638 = vld [vmem:[%s4 + $0xb8] sm:$0xf]
    %v1639 = vld [vmem:[%s4 + $0xbc] sm:$0xf]
    %v1640 = vld [vmem:[%s4 + $0xc0] sm:$0xf]
    %v1641 = vld [vmem:[%s4 + $0xc4] sm:$0xf]
    %v1642 = vld [vmem:[%s4 + $0xc8] sm:$0xf]
    %v1643 = vld [vmem:[%s4 + $0xcc] sm:$0xf]
    %v1644 = vld [vmem:[%s4 + $0xd0] sm:$0xf]
    %v1645 = vld [vmem:[%s4 + $0xd4] sm:$0xf]
    %v1646 = vld [vmem:[%s4 + $0xd8] sm:$0xf]
    %v1647 = vld [vmem:[%s4 + $0xdc] sm:$0xf]
    %v1648 = vld [vmem:[%s4 + $0xe0] sm:$0xf]
    %v1649 = vld [vmem:[%s4 + $0xe4] sm:$0xf]
    %v1650 = vld [vmem:[%s4 + $0xe8] sm:$0xf]
    %v1651 = vld [vmem:[%s4 + $0xec] sm:$0xf]
    %v1652 = vld [vmem:[%s4 + $0xf0] sm:$0xf]
    %v1653 = vld [vmem:[%s4 + $0xf4] sm:$0xf]
    %v1654 = vld [vmem:[%s4 + $0xf8] sm:$0xf]
    %v1655 = vld [vmem:[%s4 + $0xfc] sm:$0xf]
    %v1656 = vld [vmem:[%s5] sm:$0x1]
    %v1658 = vlaneseq
    %v1659 = vshrl.u32 %v1658, 7
    %v1660 = vsub.s32 0, %v1659
    %v1661 = vrot.slane %v1656, %v1660
    %v1727 = vunpack.c.l.b16 %v1592
    %v1728 = vunpack.c.l.b16 %v1593
    %v1729 = vunpack.c.l.b16 %v1594
    %v1730 = vunpack.c.l.b16 %v1595
    %v1731 = vunpack.c.l.b16 %v1596
    %v1732 = vunpack.c.l.b16 %v1597
    %v1733 = vunpack.c.l.b16 %v1598
    %v1734 = vunpack.c.l.b16 %v1599
    %v1735 = vunpack.c.l.b16 %v1600
    %v1736 = vunpack.c.l.b16 %v1601
    %v1737 = vunpack.c.l.b16 %v1602
    %v1738 = vunpack.c.l.b16 %v1603
    %v1739 = vunpack.c.l.b16 %v1604
    %v1740 = vunpack.c.l.b16 %v1605
    %v1741 = vunpack.c.l.b16 %v1606
    %v1742 = vunpack.c.l.b16 %v1607
    %v1743 = vunpack.c.l.b16 %v1608
    %v1744 = vunpack.c.l.b16 %v1609
    %v1745 = vunpack.c.l.b16 %v1610
    %v1746 = vunpack.c.l.b16 %v1611
    %v1747 = vunpack.c.l.b16 %v1612
    %v1748 = vunpack.c.l.b16 %v1613
    %v1749 = vunpack.c.l.b16 %v1614
    %v1750 = vunpack.c.l.b16 %v1615
    %v1751 = vunpack.c.l.b16 %v1616
    %v1752 = vunpack.c.l.b16 %v1617
    %v1753 = vunpack.c.l.b16 %v1618
    %v1754 = vunpack.c.l.b16 %v1619
    %v1755 = vunpack.c.l.b16 %v1620
    %v1756 = vunpack.c.l.b16 %v1621
    %v1757 = vunpack.c.l.b16 %v1622
    %v1758 = vunpack.c.l.b16 %v1623
    %v1759 = vunpack.c.l.b16 %v1624
    %v1760 = vunpack.c.l.b16 %v1625
    %v1761 = vunpack.c.l.b16 %v1626
    %v1762 = vunpack.c.l.b16 %v1627
    %v1763 = vunpack.c.l.b16 %v1628
    %v1764 = vunpack.c.l.b16 %v1629
    %v1765 = vunpack.c.l.b16 %v1630
    %v1766 = vunpack.c.l.b16 %v1631
    %v1767 = vunpack.c.l.b16 %v1632
    %v1768 = vunpack.c.l.b16 %v1633
    %v1769 = vunpack.c.l.b16 %v1634
    %v1770 = vunpack.c.l.b16 %v1635
    %v1771 = vunpack.c.l.b16 %v1636
    %v1772 = vunpack.c.l.b16 %v1637
    %v1773 = vunpack.c.l.b16 %v1638
    %v1774 = vunpack.c.l.b16 %v1639
    %v1775 = vunpack.c.l.b16 %v1640
    %v1776 = vunpack.c.l.b16 %v1641
    %v1777 = vunpack.c.l.b16 %v1642
    %v1778 = vunpack.c.l.b16 %v1643
    %v1779 = vunpack.c.l.b16 %v1644
    %v1780 = vunpack.c.l.b16 %v1645
    %v1781 = vunpack.c.l.b16 %v1646
    %v1782 = vunpack.c.l.b16 %v1647
    %v1783 = vunpack.c.l.b16 %v1648
    %v1784 = vunpack.c.l.b16 %v1649
    %v1785 = vunpack.c.l.b16 %v1650
    %v1786 = vunpack.c.l.b16 %v1651
    %v1787 = vunpack.c.l.b16 %v1652
    %v1788 = vunpack.c.l.b16 %v1653
    %v1789 = vunpack.c.l.b16 %v1654
    %v1790 = vunpack.c.l.b16 %v1655
    %v1791 = vpack.c.b16 %v1728, %v1727
    %v1792 = vpack.c.b16 %v1730, %v1729
    %v1793 = vpack.c.b16 %v1732, %v1731
    %v1794 = vpack.c.b16 %v1734, %v1733
    %v1795 = vpack.c.b16 %v1736, %v1735
    %v1796 = vpack.c.b16 %v1738, %v1737
    %v1797 = vpack.c.b16 %v1740, %v1739
    %v1798 = vpack.c.b16 %v1742, %v1741
    %v1799 = vpack.c.b16 %v1744, %v1743
    %v1800 = vpack.c.b16 %v1746, %v1745
    %v1801 = vpack.c.b16 %v1748, %v1747
    %v1802 = vpack.c.b16 %v1750, %v1749
    %v1803 = vpack.c.b16 %v1752, %v1751
    %v1804 = vpack.c.b16 %v1754, %v1753
    %v1805 = vpack.c.b16 %v1756, %v1755
    %v1806 = vpack.c.b16 %v1758, %v1757
    %v1807 = vpack.c.b16 %v1760, %v1759
    %v1808 = vpack.c.b16 %v1762, %v1761
    %v1809 = vpack.c.b16 %v1764, %v1763
    %v1810 = vpack.c.b16 %v1766, %v1765
    %v1811 = vpack.c.b16 %v1768, %v1767
    %v1812 = vpack.c.b16 %v1770, %v1769
    %v1813 = vpack.c.b16 %v1772, %v1771
    %v1814 = vpack.c.b16 %v1774, %v1773
    %v1815 = vpack.c.b16 %v1776, %v1775
    %v1816 = vpack.c.b16 %v1778, %v1777
    %v1817 = vpack.c.b16 %v1780, %v1779
    %v1818 = vpack.c.b16 %v1782, %v1781
    %v1819 = vpack.c.b16 %v1784, %v1783
    %v1820 = vpack.c.b16 %v1786, %v1785
    %v1821 = vpack.c.b16 %v1788, %v1787
    %v1822 = vpack.c.b16 %v1790, %v1789
    %1855 = vmatprep.subr.bf16.mxu0 0
    %1856 = vmatpush1.bf16.msra.mxu0 %v1791
    %1857 = vmatprep.subr.bf16.mxu0 0
    %1858 = vmatpush1.bf16.msra.mxu0 %v1792
    %1859 = vmatprep.subr.bf16.mxu0 0
    %1860 = vmatpush1.bf16.msra.mxu0 %v1793
    %1861 = vmatprep.subr.bf16.mxu0 0
    %1862 = vmatpush1.bf16.msra.mxu0 %v1794
    %1863 = vmatprep.subr.bf16.mxu0 0
    %1864 = vmatpush1.bf16.msra.mxu0 %v1795
    %1865 = vmatprep.subr.bf16.mxu0 0
    %1866 = vmatpush1.bf16.msra.mxu0 %v1796
    %1867 = vmatprep.subr.bf16.mxu0 0
    %1868 = vmatpush1.bf16.msra.mxu0 %v1797
    %1869 = vmatprep.subr.bf16.mxu0 0
    %1870 = vmatpush1.bf16.msra.mxu0 %v1798
    %1871 = vmatprep.subr.bf16.mxu0 0
    %1872 = vmatpush1.bf16.msra.mxu0 %v1799
    %1873 = vmatprep.subr.bf16.mxu0 0
    %1874 = vmatpush1.bf16.msra.mxu0 %v1800
    %1875 = vmatprep.subr.bf16.mxu0 0
    %1876 = vmatpush1.bf16.msra.mxu0 %v1801
    %1877 = vmatprep.subr.bf16.mxu0 0
    %1878 = vmatpush1.bf16.msra.mxu0 %v1802
    %1879 = vmatprep.subr.bf16.mxu0 0
    %1880 = vmatpush1.bf16.msra.mxu0 %v1803
    %1881 = vmatprep.subr.bf16.mxu0 0
    %1882 = vmatpush1.bf16.msra.mxu0 %v1804
    %1883 = vmatprep.subr.bf16.mxu0 0
    %1884 = vmatpush1.bf16.msra.mxu0 %v1805
    %1885 = vmatprep.subr.bf16.mxu0 0
    %1886 = vmatpush1.bf16.msra.mxu0 %v1806
    %1887 = vmatprep.mubr.bf16.mxu0 %v1589
    %1888 = vmatmul.mubr.bf16.gmra.mrb[0].mxu0 %v1588
    %v1889 = vpop.f32.mrb[0].mxu0
    %v1890 = vadd.f32 %v1661, %v1889
    %v1891 = vpop.f32.mrb[0].mxu0
    %v1892 = vpop.f32.mrb[0].mxu0
    %v1893 = vpop.f32.mrb[0].mxu0
    %1894 = vdwg.mxu0
    %1895 = vmatprep.subr.bf16.mxu0 0
    %1896 = vmatpush1.bf16.msra.mxu0 %v1807
    %1897 = vmatprep.subr.bf16.mxu0 0
    %1898 = vmatpush1.bf16.msra.mxu0 %v1808
    %1899 = vmatprep.subr.bf16.mxu0 0
    %1900 = vmatpush1.bf16.msra.mxu0 %v1809
    %1901 = vmatprep.subr.bf16.mxu0 0
    %1902 = vmatpush1.bf16.msra.mxu0 %v1810
    %1903 = vmatprep.subr.bf16.mxu0 0
    %1904 = vmatpush1.bf16.msra.mxu0 %v1811
    %1905 = vmatprep.subr.bf16.mxu0 0
    %1906 = vmatpush1.bf16.msra.mxu0 %v1812
    %1907 = vmatprep.subr.bf16.mxu0 0
    %1908 = vmatpush1.bf16.msra.mxu0 %v1813
    %1909 = vmatprep.subr.bf16.mxu0 0
    %1910 = vmatpush1.bf16.msra.mxu0 %v1814
    %1911 = vmatprep.subr.bf16.mxu0 0
    %1912 = vmatpush1.bf16.msra.mxu0 %v1815
    %1913 = vmatprep.subr.bf16.mxu0 0
    %1914 = vmatpush1.bf16.msra.mxu0 %v1816
    %1915 = vmatprep.subr.bf16.mxu0 0
    %1916 = vmatpush1.bf16.msra.mxu0 %v1817
    %1917 = vmatprep.subr.bf16.mxu0 0
    %1918 = vmatpush1.bf16.msra.mxu0 %v1818
    %1919 = vmatprep.subr.bf16.mxu0 0
    %1920 = vmatpush1.bf16.msra.mxu0 %v1819
    %1921 = vmatprep.subr.bf16.mxu0 0
    %1922 = vmatpush1.bf16.msra.mxu0 %v1820
    %1923 = vmatprep.subr.bf16.mxu0 0
    %1924 = vmatpush1.bf16.msra.mxu0 %v1821
    %1925 = vmatprep.subr.bf16.mxu0 0
    %1926 = vmatpush1.bf16.msra.mxu0 %v1822
    %1927 = vmatprep.mubr.bf16.mxu0 %v1591
    %1928 = vmatmul.mubr.bf16.gmra.mrb[0].mxu0 %v1590
    %v1929 = vpop.f32.mrb[0].mxu0
    %v1930 = vadd.f32 %v1890, %v1929
    %v1931 = vpop.f32.mrb[0].mxu0
    %v1932 = vpop.f32.mrb[0].mxu0
    %v1933 = vpop.f32.mrb[0].mxu0
    %1934 = vdwg.mxu0
    %v1935 = vld [vmem:[%s1] sm:$0xff]
    %v1936 = vmul.f32 %v1930, 0.5
    %v1937 = vmul.f32 %v1936, 1.442695
    %v1938 = vpow.pop %v1937
    %1940 = vrot.lane.b32.xlu0 %v1938, 108
    %v1941 = vpop.permute.xlu0 %1940
    %v1943 = vmul.f32 %v1935, %v1941
    %v1944 = vadd.f32 %v1930, %v1943
    %v1945 = vld [vmem:[%s6] sm:$0xff]
    %v1946 = vld [vmem:[%s6 + $0x8] sm:$0xff]
    %v1947 = vld [vmem:[%s6 + $0x10] sm:$0xff]
    %v1948 = vld [vmem:[%s6 + $0x18] sm:$0xff]
    %v1949 = vld [vmem:[%s6 + $0x20] sm:$0xff]
    %v1950 = vld [vmem:[%s6 + $0x28] sm:$0xff]
    %v1951 = vld [vmem:[%s6 + $0x30] sm:$0xff]
    %v1952 = vld [vmem:[%s6 + $0x38] sm:$0xff]
    %v1953 = vld [vmem:[%s6 + $0x40] sm:$0xf]
    %v1954 = vld [vmem:[%s6 + $0x48] sm:$0xf]
    %v1955 = vld [vmem:[%s6 + $0x50] sm:$0xf]
    %v1956 = vld [vmem:[%s6 + $0x58] sm:$0xf]
    %v1957 = vld [vmem:[%s7] sm:$0xf]
    %v1959 = vlaneseq
    %v1960 = vshrl.u32 %v1959, 7
    %v1961 = vsub.s32 0, %v1960
    %v1962 = vrot.slane %v1957, %v1961
    %v1963 = vlaneseq
    %v1964 = vshrl.u32 %v1963, 7
    %v1965 = vsub.s32 1, %v1964
    %v1966 = vrot.slane %v1957, %v1965
    %v1967 = vlaneseq
    %v1968 = vshrl.u32 %v1967, 7
    %v1969 = vsub.s32 2, %v1968
    %v1970 = vrot.slane %v1957, %v1969
    %v1971 = vlaneseq
    %v1972 = vshrl.u32 %v1971, 7
    %v1973 = vsub.s32 3, %v1972
    %v1974 = vrot.slane %v1957, %v1973
    %vm1979 = vcmask 162816
    %v1981 = vsel %vm1979, %v1944, 0
    %vm1983 = vcmask 1043456
    %v1985 = vsel %vm1983, %v1953, 0
    %v1988 = vsel %vm1983, %v1954, 0
    %v1991 = vsel %vm1983, %v1955, 0
    %v1994 = vsel %vm1983, %v1956, 0
    %1996 = vmatprep.subr.mxu0 %v1946
    %1997 = vmatpush1.msra.mxu0 %v1945
    %1998 = vmatprep.subr.mxu0 %v1950
    %1999 = vmatpush1.msra.mxu0 %v1949
    %2000 = vmatprep.subr.mxu0 %v1988
    %2001 = vmatpush1.msra.mxu0 %v1985
    %2002 = vmatprep.subr.mxu0 0.0
    %2003 = vmatpush1.msra.mxu0 0.0
    %2004 = vmatprep.subr.mxu0 0.0
    %2005 = vmatpush1.msra.mxu0 0.0
    %2006 = vmatprep.subr.mxu0 0.0
    %2007 = vmatpush1.msra.mxu0 0.0
    %2008 = vmatprep.subr.mxu0 0.0
    %2009 = vmatpush1.msra.mxu0 0.0
    %2010 = vmatprep.subr.mxu0 0.0
    %2011 = vmatpush1.msra.mxu0 0.0
    %2012 = vmatprep.subr.mxu0 0.0
    %2013 = vmatpush1.msra.mxu0 0.0
    %2014 = vmatprep.subr.mxu0 0.0
    %2015 = vmatpush1.msra.mxu0 0.0
    %2016 = vmatprep.subr.mxu0 0.0
    %2017 = vmatpush1.msra.mxu0 0.0
    %2018 = vmatprep.subr.mxu0 0.0
    %2019 = vmatpush1.msra.mxu0 0.0
    %2020 = vmatprep.subr.mxu0 0.0
    %2021 = vmatpush1.msra.mxu0 0.0
    %2022 = vmatprep.subr.mxu0 0.0
    %2023 = vmatpush1.msra.mxu0 0.0
    %2024 = vmatprep.subr.mxu0 0.0
    %2025 = vmatpush1.msra.mxu0 0.0
    %2026 = vmatprep.subr.mxu0 0.0
    %2027 = vmatpush1.msra.mxu0 0.0
    %2028 = vmatprep.subr.mxu0 0.0
    %2029 = vmatpush1.msra.mxu0 0.0
    %2030 = vmatprep.subr.mxu0 0.0
    %2031 = vmatpush1.msra.mxu0 0.0
    %2032 = vmatprep.subr.mxu0 0.0
    %2033 = vmatpush1.msra.mxu0 0.0
    %2034 = vmatprep.subr.mxu0 0.0
    %2035 = vmatpush1.msra.mxu0 0.0
    %2036 = vmatprep.subr.mxu0 0.0
    %2037 = vmatpush1.msra.mxu0 0.0
    %2038 = vmatprep.subr.mxu0 0.0
    %2039 = vmatpush1.msra.mxu0 0.0
    %2040 = vmatprep.subr.mxu0 0.0
    %2041 = vmatpush1.msra.mxu0 0.0
    %2042 = vmatprep.subr.mxu0 0.0
    %2043 = vmatpush1.msra.mxu0 0.0
    %2044 = vmatprep.subr.mxu0 0.0
    %2045 = vmatpush1.msra.mxu0 0.0
    %2046 = vmatprep.subr.mxu0 0.0
    %2047 = vmatpush1.msra.mxu0 0.0
    %2048 = vmatprep.subr.mxu0 0.0
    %2049 = vmatpush1.msra.mxu0 0.0
    %2050 = vmatprep.subr.mxu0 0.0
    %2051 = vmatpush1.msra.mxu0 0.0
    %2052 = vmatprep.subr.mxu0 0.0
    %2053 = vmatpush1.msra.mxu0 0.0
    %2054 = vmatprep.subr.mxu0 0.0
    %2055 = vmatpush1.msra.mxu0 0.0
    %2056 = vmatprep.subr.mxu0 0.0
    %2057 = vmatpush1.msra.mxu0 0.0
    %2058 = vmatprep.subr.mxu0 0.0
    %2059 = vmatpush1.msra.mxu0 0.0
    %2060 = vmatprep.mubr.f32.mxu0 0.0
    %2061 = vmatmul.mubr.f32.gmra.mrb[0].mxu0 %v1981
    %v2062 = vpop.f32.mrb[0].mxu0
    %v2063 = vadd.f32 %v1962, %v2062
    %v2064 = vpop.f32.mrb[0].mxu0
    %v2065 = vadd.f32 %v1966, %v2064
    %2066 = vdwg.mxu0
    %2067 = vmatprep.subr.mxu0 %v1948
    %2068 = vmatpush1.msra.mxu0 %v1947
    %2069 = vmatprep.subr.mxu0 %v1952
    %2070 = vmatpush1.msra.mxu0 %v1951
    %2071 = vmatprep.subr.mxu0 %v1994
    %2072 = vmatpush1.msra.mxu0 %v1991
    %2073 = vmatprep.subr.mxu0 0.0
    %2074 = vmatpush1.msra.mxu0 0.0
    %2075 = vmatprep.subr.mxu0 0.0
    %2076 = vmatpush1.msra.mxu0 0.0
    %2077 = vmatprep.subr.mxu0 0.0
    %2078 = vmatpush1.msra.mxu0 0.0
    %2079 = vmatprep.subr.mxu0 0.0
    %2080 = vmatpush1.msra.mxu0 0.0
    %2081 = vmatprep.subr.mxu0 0.0
    %2082 = vmatpush1.msra.mxu0 0.0
    %2083 = vmatprep.subr.mxu0 0.0
    %2084 = vmatpush1.msra.mxu0 0.0
    %2085 = vmatprep.subr.mxu0 0.0
    %2086 = vmatpush1.msra.mxu0 0.0
    %2087 = vmatprep.subr.mxu0 0.0
    %2088 = vmatpush1.msra.mxu0 0.0
    %2089 = vmatprep.subr.mxu0 0.0
    %2090 = vmatpush1.msra.mxu0 0.0
    %2091 = vmatprep.subr.mxu0 0.0
    %2092 = vmatpush1.msra.mxu0 0.0
    %2093 = vmatprep.subr.mxu0 0.0
    %2094 = vmatpush1.msra.mxu0 0.0
    %2095 = vmatprep.subr.mxu0 0.0
    %2096 = vmatpush1.msra.mxu0 0.0
    %2097 = vmatprep.subr.mxu0 0.0
    %2098 = vmatpush1.msra.mxu0 0.0
    %2099 = vmatprep.subr.mxu0 0.0
    %2100 = vmatpush1.msra.mxu0 0.0
    %2101 = vmatprep.subr.mxu0 0.0
    %2102 = vmatpush1.msra.mxu0 0.0
    %2103 = vmatprep.subr.mxu0 0.0
    %2104 = vmatpush1.msra.mxu0 0.0
    %2105 = vmatprep.subr.mxu0 0.0
    %2106 = vmatpush1.msra.mxu0 0.0
    %2107 = vmatprep.subr.mxu0 0.0
    %2108 = vmatpush1.msra.mxu0 0.0
    %2109 = vmatprep.subr.mxu0 0.0
    %2110 = vmatpush1.msra.mxu0 0.0
    %2111 = vmatprep.subr.mxu0 0.0
    %2112 = vmatpush1.msra.mxu0 0.0
    %2113 = vmatprep.subr.mxu0 0.0
    %2114 = vmatpush1.msra.mxu0 0.0
    %2115 = vmatprep.subr.mxu0 0.0
    %2116 = vmatpush1.msra.mxu0 0.0
    %2117 = vmatprep.subr.mxu0 0.0
    %2118 = vmatpush1.msra.mxu0 0.0
    %2119 = vmatprep.subr.mxu0 0.0
    %2120 = vmatpush1.msra.mxu0 0.0
    %2121 = vmatprep.subr.mxu0 0.0
    %2122 = vmatpush1.msra.mxu0 0.0
    %2123 = vmatprep.subr.mxu0 0.0
    %2124 = vmatpush1.msra.mxu0 0.0
    %2125 = vmatprep.subr.mxu0 0.0
    %2126 = vmatpush1.msra.mxu0 0.0
    %2127 = vmatprep.subr.mxu0 0.0
    %2128 = vmatpush1.msra.mxu0 0.0
    %2129 = vmatprep.subr.mxu0 0.0
    %2130 = vmatpush1.msra.mxu0 0.0
    %2131 = vmatprep.mubr.f32.mxu0 0.0
    %2132 = vmatmul.mubr.f32.gmra.mrb[0].mxu0 %v1981
    %v2133 = vpop.f32.mrb[0].mxu0
    %v2134 = vadd.f32 %v1970, %v2133
    %v2135 = vpop.f32.mrb[0].mxu0
    %v2136 = vadd.f32 %v1974, %v2135
    %2137 = vdwg.mxu0
    %v2138 = vmax.f32 %v2063, 0.0
    %v2139 = vmax.f32 %v2065, 0.0
    %v2140 = vmax.f32 %v2134, 0.0
    %v2141 = vmax.f32 %v2136, 0.0
    %v2142 = vpack.c.bf16 %v2138, %v2138
    %v2143 = vpack.c.bf16 %v2139, %v2139
    %v2144 = vpack.c.bf16 %v2140, %v2140
    %v2145 = vpack.c.bf16 %v2141, %v2141
    %v2146 = vld [vmem:[%s8] sm:$0xff]
    %v2147 = vld [vmem:[%s8 + $0x8] sm:$0xff]
    %v2148 = vld [vmem:[%s8 + $0x10] sm:$0xff]
    %v2149 = vld [vmem:[%s8 + $0x18] sm:$0xf]
    %v2150 = vld [vmem:[%s8 + $0x1c] sm:$0xff]
    %v2151 = vld [vmem:[%s8 + $0x24] sm:$0xff]
    %v2152 = vld [vmem:[%s8 + $0x2c] sm:$0xff]
    %v2153 = vld [vmem:[%s8 + $0x34] sm:$0xf]
    %v2154 = vld [vmem:[%s8 + $0x38] sm:$0xff]
    %v2155 = vld [vmem:[%s8 + $0x40] sm:$0xff]
    %v2156 = vld [vmem:[%s8 + $0x48] sm:$0xff]
    %v2157 = vld [vmem:[%s8 + $0x50] sm:$0xf]
    %v2158 = vld [vmem:[%s8 + $0x54] sm:$0xff]
    %v2159 = vld [vmem:[%s8 + $0x5c] sm:$0xff]
    %v2160 = vld [vmem:[%s8 + $0x64] sm:$0xff]
    %v2161 = vld [vmem:[%s8 + $0x6c] sm:$0xf]
    %v2162 = vld [vmem:[%s8 + $0x70] sm:$0xff]
    %v2163 = vld [vmem:[%s8 + $0x78] sm:$0xff]
    %v2164 = vld [vmem:[%s8 + $0x80] sm:$0xff]
    %v2165 = vld [vmem:[%s8 + $0x88] sm:$0xf]
    %v2166 = vld [vmem:[%s8 + $0x8c] sm:$0xff]
    %v2167 = vld [vmem:[%s8 + $0x94] sm:$0xff]
    %v2168 = vld [vmem:[%s8 + $0x9c] sm:$0xff]
    %v2169 = vld [vmem:[%s8 + $0xa4] sm:$0xf]
    %v2170 = vld [vmem:[%s8 + $0xa8] sm:$0xff]
    %v2171 = vld [vmem:[%s8 + $0xb0] sm:$0xff]
    %v2172 = vld [vmem:[%s8 + $0xb8] sm:$0xff]
    %v2173 = vld [vmem:[%s8 + $0xc0] sm:$0xf]
    %v2174 = vld [vmem:[%s8 + $0xc4] sm:$0xff]
    %v2175 = vld [vmem:[%s8 + $0xcc] sm:$0xff]
    %v2176 = vld [vmem:[%s8 + $0xd4] sm:$0xff]
    %v2177 = vld [vmem:[%s8 + $0xdc] sm:$0xf]
    %v2178 = vld [vmem:[%s8 + $0xe0] sm:$0xff]
    %v2179 = vld [vmem:[%s8 + $0xe8] sm:$0xff]
    %v2180 = vld [vmem:[%s8 + $0xf0] sm:$0xff]
    %v2181 = vld [vmem:[%s8 + $0xf8] sm:$0xf]
    %v2182 = vld [vmem:[%s8 + $0xfc] sm:$0xff]
    %v2183 = vld [vmem:[%s8 + $0x104] sm:$0xff]
    %v2184 = vld [vmem:[%s8 + $0x10c] sm:$0xff]
    %v2185 = vld [vmem:[%s8 + $0x114] sm:$0xf]
    %v2186 = vld [vmem:[%s8 + $0x118] sm:$0xff]
    %v2187 = vld [vmem:[%s8 + $0x120] sm:$0xff]
    %v2188 = vld [vmem:[%s8 + $0x128] sm:$0xff]
    %v2189 = vld [vmem:[%s8 + $0x130] sm:$0xf]
    %v2190 = vld [vmem:[%s8 + $0x134] sm:$0xff]
    %v2191 = vld [vmem:[%s8 + $0x13c] sm:$0xff]
    %v2192 = vld [vmem:[%s8 + $0x144] sm:$0xff]
    %v2193 = vld [vmem:[%s8 + $0x14c] sm:$0xf]
    %v2194 = vld [vmem:[%s8 + $0x150] sm:$0xff]
    %v2195 = vld [vmem:[%s8 + $0x158] sm:$0xff]
    %v2196 = vld [vmem:[%s8 + $0x160] sm:$0xff]
    %v2197 = vld [vmem:[%s8 + $0x168] sm:$0xf]
    %v2198 = vld [vmem:[%s8 + $0x16c] sm:$0xff]
    %v2199 = vld [vmem:[%s8 + $0x174] sm:$0xff]
    %v2200 = vld [vmem:[%s8 + $0x17c] sm:$0xff]
    %v2201 = vld [vmem:[%s8 + $0x184] sm:$0xf]
    %v2202 = vld [vmem:[%s8 + $0x188] sm:$0xff]
    %v2203 = vld [vmem:[%s8 + $0x190] sm:$0xff]
    %v2204 = vld [vmem:[%s8 + $0x198] sm:$0xff]
    %v2205 = vld [vmem:[%s8 + $0x1a0] sm:$0xf]
    %v2206 = vld [vmem:[%s8 + $0x1a4] sm:$0xff]
    %v2207 = vld [vmem:[%s8 + $0x1ac] sm:$0xff]
    %v2208 = vld [vmem:[%s8 + $0x1b4] sm:$0xff]
    %v2209 = vld [vmem:[%s8 + $0x1bc] sm:$0xf]
    %v2210 = vld [vmem:[%s8 + $0x1c0] sm:$0xff]
    %v2211 = vld [vmem:[%s8 + $0x1c8] sm:$0xff]
    %v2212 = vld [vmem:[%s8 + $0x1d0] sm:$0xff]
    %v2213 = vld [vmem:[%s8 + $0x1d8] sm:$0xf]
    %v2214 = vld [vmem:[%s8 + $0x1dc] sm:$0xff]
    %v2215 = vld [vmem:[%s8 + $0x1e4] sm:$0xff]
    %v2216 = vld [vmem:[%s8 + $0x1ec] sm:$0xff]
    %v2217 = vld [vmem:[%s8 + $0x1f4] sm:$0xf]
    %v2218 = vld [vmem:[%s8 + $0x1f8] sm:$0xff]
    %v2219 = vld [vmem:[%s8 + $0x200] sm:$0xff]
    %v2220 = vld [vmem:[%s8 + $0x208] sm:$0xff]
    %v2221 = vld [vmem:[%s8 + $0x210] sm:$0xf]
    %v2222 = vld [vmem:[%s8 + $0x214] sm:$0xff]
    %v2223 = vld [vmem:[%s8 + $0x21c] sm:$0xff]
    %v2224 = vld [vmem:[%s8 + $0x224] sm:$0xff]
    %v2225 = vld [vmem:[%s8 + $0x22c] sm:$0xf]
    %v2226 = vld [vmem:[%s8 + $0x230] sm:$0xff]
    %v2227 = vld [vmem:[%s8 + $0x238] sm:$0xff]
    %v2228 = vld [vmem:[%s8 + $0x240] sm:$0xff]
    %v2229 = vld [vmem:[%s8 + $0x248] sm:$0xf]
    %v2230 = vld [vmem:[%s8 + $0x24c] sm:$0xff]
    %v2231 = vld [vmem:[%s8 + $0x254] sm:$0xff]
    %v2232 = vld [vmem:[%s8 + $0x25c] sm:$0xff]
    %v2233 = vld [vmem:[%s8 + $0x264] sm:$0xf]
    %v2234 = vld [vmem:[%s8 + $0x268] sm:$0xff]
    %v2235 = vld [vmem:[%s8 + $0x270] sm:$0xff]
    %v2236 = vld [vmem:[%s8 + $0x278] sm:$0xff]
    %v2237 = vld [vmem:[%s8 + $0x280] sm:$0xf]
    %v2238 = vld [vmem:[%s8 + $0x284] sm:$0xff]
    %v2239 = vld [vmem:[%s8 + $0x28c] sm:$0xff]
    %v2240 = vld [vmem:[%s8 + $0x294] sm:$0xff]
    %v2241 = vld [vmem:[%s8 + $0x29c] sm:$0xf]
    %v2242 = vld [vmem:[%s8 + $0x2a0] sm:$0xff]
    %v2243 = vld [vmem:[%s8 + $0x2a8] sm:$0xff]
    %v2244 = vld [vmem:[%s8 + $0x2b0] sm:$0xff]
    %v2245 = vld [vmem:[%s8 + $0x2b8] sm:$0xf]
    %v2246 = vld [vmem:[%s8 + $0x2bc] sm:$0xff]
    %v2247 = vld [vmem:[%s8 + $0x2c4] sm:$0xff]
    %v2248 = vld [vmem:[%s8 + $0x2cc] sm:$0xff]
    %v2249 = vld [vmem:[%s8 + $0x2d4] sm:$0xf]
    %v2250 = vld [vmem:[%s8 + $0x2d8] sm:$0xff]
    %v2251 = vld [vmem:[%s8 + $0x2e0] sm:$0xff]
    %v2252 = vld [vmem:[%s8 + $0x2e8] sm:$0xff]
    %v2253 = vld [vmem:[%s8 + $0x2f0] sm:$0xf]
    %v2254 = vld [vmem:[%s8 + $0x2f4] sm:$0xff]
    %v2255 = vld [vmem:[%s8 + $0x2fc] sm:$0xff]
    %v2256 = vld [vmem:[%s8 + $0x304] sm:$0xff]
    %v2257 = vld [vmem:[%s8 + $0x30c] sm:$0xf]
    %v2258 = vld [vmem:[%s8 + $0x310] sm:$0xff]
    %v2259 = vld [vmem:[%s8 + $0x318] sm:$0xff]
    %v2260 = vld [vmem:[%s8 + $0x320] sm:$0xff]
    %v2261 = vld [vmem:[%s8 + $0x328] sm:$0xf]
    %v2262 = vld [vmem:[%s8 + $0x32c] sm:$0xff]
    %v2263 = vld [vmem:[%s8 + $0x334] sm:$0xff]
    %v2264 = vld [vmem:[%s8 + $0x33c] sm:$0xff]
    %v2265 = vld [vmem:[%s8 + $0x344] sm:$0xf]
    %v2266 = vld [vmem:[%s8 + $0x348] sm:$0xff]
    %v2267 = vld [vmem:[%s8 + $0x350] sm:$0xff]
    %v2268 = vld [vmem:[%s8 + $0x358] sm:$0xff]
    %v2269 = vld [vmem:[%s8 + $0x360] sm:$0xf]
    %v2270 = vld [vmem:[%s8 + $0x364] sm:$0xff]
    %v2271 = vld [vmem:[%s8 + $0x36c] sm:$0xff]
    %v2272 = vld [vmem:[%s8 + $0x374] sm:$0xff]
    %v2273 = vld [vmem:[%s8 + $0x37c] sm:$0xf]
    %v2274 = vld [vmem:[%s8 + $0x380] sm:$0xff]
    %v2275 = vld [vmem:[%s8 + $0x388] sm:$0xff]
    %v2276 = vld [vmem:[%s8 + $0x390] sm:$0xff]
    %v2277 = vld [vmem:[%s8 + $0x398] sm:$0xf]
    %v2278 = vld [vmem:[%s8 + $0x39c] sm:$0xff]
    %v2279 = vld [vmem:[%s8 + $0x3a4] sm:$0xff]
    %v2280 = vld [vmem:[%s8 + $0x3ac] sm:$0xff]
    %v2281 = vld [vmem:[%s8 + $0x3b4] sm:$0xf]
    %v2282 = vld [vmem:[%s8 + $0x3b8] sm:$0xff]
    %v2283 = vld [vmem:[%s8 + $0x3c0] sm:$0xff]
    %v2284 = vld [vmem:[%s8 + $0x3c8] sm:$0xff]
    %v2285 = vld [vmem:[%s8 + $0x3d0] sm:$0xf]
    %v2286 = vld [vmem:[%s8 + $0x3d4] sm:$0xff]
    %v2287 = vld [vmem:[%s8 + $0x3dc] sm:$0xff]
    %v2288 = vld [vmem:[%s8 + $0x3e4] sm:$0xff]
    %v2289 = vld [vmem:[%s8 + $0x3ec] sm:$0xf]
    %v2290 = vld [vmem:[%s8 + $0x3f0] sm:$0xff]
    %v2291 = vld [vmem:[%s8 + $0x3f8] sm:$0xff]
    %v2292 = vld [vmem:[%s8 + $0x400] sm:$0xff]
    %v2293 = vld [vmem:[%s8 + $0x408] sm:$0xf]
    %v2294 = vld [vmem:[%s8 + $0x40c] sm:$0xff]
    %v2295 = vld [vmem:[%s8 + $0x414] sm:$0xff]
    %v2296 = vld [vmem:[%s8 + $0x41c] sm:$0xff]
    %v2297 = vld [vmem:[%s8 + $0x424] sm:$0xf]
    %v2298 = vld [vmem:[%s8 + $0x428] sm:$0xff]
    %v2299 = vld [vmem:[%s8 + $0x430] sm:$0xff]
    %v2300 = vld [vmem:[%s8 + $0x438] sm:$0xff]
    %v2301 = vld [vmem:[%s8 + $0x440] sm:$0xf]
    %v2302 = vld [vmem:[%s8 + $0x444] sm:$0xff]
    %v2303 = vld [vmem:[%s8 + $0x44c] sm:$0xff]
    %v2304 = vld [vmem:[%s8 + $0x454] sm:$0xff]
    %v2305 = vld [vmem:[%s8 + $0x45c] sm:$0xf]
    %v2306 = vld [vmem:[%s8 + $0x460] sm:$0xff]
    %v2307 = vld [vmem:[%s8 + $0x468] sm:$0xff]
    %v2308 = vld [vmem:[%s8 + $0x470] sm:$0xff]
    %v2309 = vld [vmem:[%s8 + $0x478] sm:$0xf]
    %v2310 = vld [vmem:[%s8 + $0x47c] sm:$0xff]
    %v2311 = vld [vmem:[%s8 + $0x484] sm:$0xff]
    %v2312 = vld [vmem:[%s8 + $0x48c] sm:$0xff]
    %v2313 = vld [vmem:[%s8 + $0x494] sm:$0xf]
    %v2314 = vld [vmem:[%s8 + $0x498] sm:$0xff]
    %v2315 = vld [vmem:[%s8 + $0x4a0] sm:$0xff]
    %v2316 = vld [vmem:[%s8 + $0x4a8] sm:$0xff]
    %v2317 = vld [vmem:[%s8 + $0x4b0] sm:$0xf]
    %v2318 = vld [vmem:[%s8 + $0x4b4] sm:$0xff]
    %v2319 = vld [vmem:[%s8 + $0x4bc] sm:$0xff]
    %v2320 = vld [vmem:[%s8 + $0x4c4] sm:$0xff]
    %v2321 = vld [vmem:[%s8 + $0x4cc] sm:$0xf]
    %v2322 = vld [vmem:[%s8 + $0x4d0] sm:$0xff]
    %v2323 = vld [vmem:[%s8 + $0x4d8] sm:$0xff]
    %v2324 = vld [vmem:[%s8 + $0x4e0] sm:$0xff]
    %v2325 = vld [vmem:[%s8 + $0x4e8] sm:$0xf]
    %v2326 = vld [vmem:[%s8 + $0x4ec] sm:$0xff]
    %v2327 = vld [vmem:[%s8 + $0x4f4] sm:$0xff]
    %v2328 = vld [vmem:[%s8 + $0x4fc] sm:$0xff]
    %v2329 = vld [vmem:[%s8 + $0x504] sm:$0xf]
    %v2330 = vld [vmem:[%s8 + $0x508] sm:$0xff]
    %v2331 = vld [vmem:[%s8 + $0x510] sm:$0xff]
    %v2332 = vld [vmem:[%s8 + $0x518] sm:$0xff]
    %v2333 = vld [vmem:[%s8 + $0x520] sm:$0xf]
    %v2334 = vld [vmem:[%s8 + $0x524] sm:$0xff]
    %v2335 = vld [vmem:[%s8 + $0x52c] sm:$0xff]
    %v2336 = vld [vmem:[%s8 + $0x534] sm:$0xff]
    %v2337 = vld [vmem:[%s8 + $0x53c] sm:$0xf]
    %v2338 = vld [vmem:[%s8 + $0x540] sm:$0xff]
    %v2339 = vld [vmem:[%s8 + $0x548] sm:$0xff]
    %v2340 = vld [vmem:[%s8 + $0x550] sm:$0xff]
    %v2341 = vld [vmem:[%s8 + $0x558] sm:$0xf]
    %v2342 = vld [vmem:[%s8 + $0x55c] sm:$0xff]
    %v2343 = vld [vmem:[%s8 + $0x564] sm:$0xff]
    %v2344 = vld [vmem:[%s8 + $0x56c] sm:$0xff]
    %v2345 = vld [vmem:[%s8 + $0x574] sm:$0xf]
    %v2346 = vld [vmem:[%s8 + $0x578] sm:$0xff]
    %v2347 = vld [vmem:[%s8 + $0x580] sm:$0xff]
    %v2348 = vld [vmem:[%s8 + $0x588] sm:$0xff]
    %v2349 = vld [vmem:[%s8 + $0x590] sm:$0xf]
    %v2350 = vld [vmem:[%s8 + $0x594] sm:$0xff]
    %v2351 = vld [vmem:[%s8 + $0x59c] sm:$0xff]
    %v2352 = vld [vmem:[%s8 + $0x5a4] sm:$0xff]
    %v2353 = vld [vmem:[%s8 + $0x5ac] sm:$0xf]
    %v2354 = vld [vmem:[%s8 + $0x5b0] sm:$0xff]
    %v2355 = vld [vmem:[%s8 + $0x5b8] sm:$0xff]
    %v2356 = vld [vmem:[%s8 + $0x5c0] sm:$0xff]
    %v2357 = vld [vmem:[%s8 + $0x5c8] sm:$0xf]
    %v2358 = vld [vmem:[%s8 + $0x5cc] sm:$0xff]
    %v2359 = vld [vmem:[%s8 + $0x5d4] sm:$0xff]
    %v2360 = vld [vmem:[%s8 + $0x5dc] sm:$0xff]
    %v2361 = vld [vmem:[%s8 + $0x5e4] sm:$0xf]
    %v2362 = vld [vmem:[%s8 + $0x5e8] sm:$0xff]
    %v2363 = vld [vmem:[%s8 + $0x5f0] sm:$0xff]
    %v2364 = vld [vmem:[%s8 + $0x5f8] sm:$0xff]
    %v2365 = vld [vmem:[%s8 + $0x600] sm:$0xf]
    %v2366 = vld [vmem:[%s8 + $0x604] sm:$0xff]
    %v2367 = vld [vmem:[%s8 + $0x60c] sm:$0xff]
    %v2368 = vld [vmem:[%s8 + $0x614] sm:$0xff]
    %v2369 = vld [vmem:[%s8 + $0x61c] sm:$0xf]
    %v2370 = vld [vmem:[%s8 + $0x620] sm:$0xff]
    %v2371 = vld [vmem:[%s8 + $0x628] sm:$0xff]
    %v2372 = vld [vmem:[%s8 + $0x630] sm:$0xff]
    %v2373 = vld [vmem:[%s8 + $0x638] sm:$0xf]
    %v2374 = vld [vmem:[%s8 + $0x63c] sm:$0xff]
    %v2375 = vld [vmem:[%s8 + $0x644] sm:$0xff]
    %v2376 = vld [vmem:[%s8 + $0x64c] sm:$0xff]
    %v2377 = vld [vmem:[%s8 + $0x654] sm:$0xf]
    %v2378 = vld [vmem:[%s8 + $0x658] sm:$0xff]
    %v2379 = vld [vmem:[%s8 + $0x660] sm:$0xff]
    %v2380 = vld [vmem:[%s8 + $0x668] sm:$0xff]
    %v2381 = vld [vmem:[%s8 + $0x670] sm:$0xf]
    %v2382 = vld [vmem:[%s8 + $0x674] sm:$0xff]
    %v2383 = vld [vmem:[%s8 + $0x67c] sm:$0xff]
    %v2384 = vld [vmem:[%s8 + $0x684] sm:$0xff]
    %v2385 = vld [vmem:[%s8 + $0x68c] sm:$0xf]
    %v2386 = vld [vmem:[%s8 + $0x690] sm:$0xff]
    %v2387 = vld [vmem:[%s8 + $0x698] sm:$0xff]
    %v2388 = vld [vmem:[%s8 + $0x6a0] sm:$0xff]
    %v2389 = vld [vmem:[%s8 + $0x6a8] sm:$0xf]
    %v2390 = vld [vmem:[%s8 + $0x6ac] sm:$0xff]
    %v2391 = vld [vmem:[%s8 + $0x6b4] sm:$0xff]
    %v2392 = vld [vmem:[%s8 + $0x6bc] sm:$0xff]
    %v2393 = vld [vmem:[%s8 + $0x6c4] sm:$0xf]
    %v2394 = vld [vmem:[%s8 + $0x6c8] sm:$0xff]
    %v2395 = vld [vmem:[%s8 + $0x6d0] sm:$0xff]
    %v2396 = vld [vmem:[%s8 + $0x6d8] sm:$0xff]
    %v2397 = vld [vmem:[%s8 + $0x6e0] sm:$0xf]
    %v2398 = vld [vmem:[%s8 + $0x6e4] sm:$0xff]
    %v2399 = vld [vmem:[%s8 + $0x6ec] sm:$0xff]
    %v2400 = vld [vmem:[%s8 + $0x6f4] sm:$0xff]
    %v2401 = vld [vmem:[%s8 + $0x6fc] sm:$0xf]
    %v2402 = vld [vmem:[%s9] sm:$0x7f]
    %v2404 = vlaneseq
    %v2405 = vshrl.u32 %v2404, 7
    %v2406 = vsub.s32 0, %v2405
    %v2407 = vrot.slane %v2402, %v2406
    %v2408 = vlaneseq
    %v2409 = vshrl.u32 %v2408, 7
    %v2410 = vsub.s32 1, %v2409
    %v2411 = vrot.slane %v2402, %v2410
    %v2412 = vlaneseq
    %v2413 = vshrl.u32 %v2412, 7
    %v2414 = vsub.s32 2, %v2413
    %v2415 = vrot.slane %v2402, %v2414
    %v2416 = vlaneseq
    %v2417 = vshrl.u32 %v2416, 7
    %v2418 = vsub.s32 3, %v2417
    %v2419 = vrot.slane %v2402, %v2418
    %v2420 = vlaneseq
    %v2421 = vshrl.u32 %v2420, 7
    %v2422 = vsub.s32 4, %v2421
    %v2423 = vrot.slane %v2402, %v2422
    %v2424 = vlaneseq
    %v2425 = vshrl.u32 %v2424, 7
    %v2426 = vsub.s32 5, %v2425
    %v2427 = vrot.slane %v2402, %v2426
    %v2428 = vlaneseq
    %v2429 = vshrl.u32 %v2428, 7
    %v2430 = vsub.s32 6, %v2429
    %v2431 = vrot.slane %v2402, %v2430
    %v2695 = vunpack.c.l.b16 %v2146
    %v2696 = vunpack.c.h.b16 %v2146
    %v2697 = vunpack.c.l.b16 %v2147
    %v2698 = vunpack.c.h.b16 %v2147
    %v2699 = vunpack.c.l.b16 %v2148
    %v2700 = vunpack.c.h.b16 %v2148
    %v2701 = vunpack.c.l.b16 %v2149
    %v2702 = vunpack.c.l.b16 %v2150
    %v2703 = vunpack.c.h.b16 %v2150
    %v2704 = vunpack.c.l.b16 %v2151
    %v2705 = vunpack.c.h.b16 %v2151
    %v2706 = vunpack.c.l.b16 %v2152
    %v2707 = vunpack.c.h.b16 %v2152
    %v2708 = vunpack.c.l.b16 %v2153
    %v2709 = vunpack.c.l.b16 %v2154
    %v2710 = vunpack.c.h.b16 %v2154
    %v2711 = vunpack.c.l.b16 %v2155
    %v2712 = vunpack.c.h.b16 %v2155
    %v2713 = vunpack.c.l.b16 %v2156
    %v2714 = vunpack.c.h.b16 %v2156
    %v2715 = vunpack.c.l.b16 %v2157
    %v2716 = vunpack.c.l.b16 %v2158
    %v2717 = vunpack.c.h.b16 %v2158
    %v2718 = vunpack.c.l.b16 %v2159
    %v2719 = vunpack.c.h.b16 %v2159
    %v2720 = vunpack.c.l.b16 %v2160
    %v2721 = vunpack.c.h.b16 %v2160
    %v2722 = vunpack.c.l.b16 %v2161
    %v2723 = vunpack.c.l.b16 %v2162
    %v2724 = vunpack.c.h.b16 %v2162
    %v2725 = vunpack.c.l.b16 %v2163
    %v2726 = vunpack.c.h.b16 %v2163
    %v2727 = vunpack.c.l.b16 %v2164
    %v2728 = vunpack.c.h.b16 %v2164
    %v2729 = vunpack.c.l.b16 %v2165
    %v2730 = vunpack.c.l.b16 %v2166
    %v2731 = vunpack.c.h.b16 %v2166
    %v2732 = vunpack.c.l.b16 %v2167
    %v2733 = vunpack.c.h.b16 %v2167
    %v2734 = vunpack.c.l.b16 %v2168
    %v2735 = vunpack.c.h.b16 %v2168
    %v2736 = vunpack.c.l.b16 %v2169
    %v2737 = vunpack.c.l.b16 %v2170
    %v2738 = vunpack.c.h.b16 %v2170
    %v2739 = vunpack.c.l.b16 %v2171
    %v2740 = vunpack.c.h.b16 %v2171
    %v2741 = vunpack.c.l.b16 %v2172
    %v2742 = vunpack.c.h.b16 %v2172
    %v2743 = vunpack.c.l.b16 %v2173
    %v2744 = vunpack.c.l.b16 %v2174
    %v2745 = vunpack.c.h.b16 %v2174
    %v2746 = vunpack.c.l.b16 %v2175
    %v2747 = vunpack.c.h.b16 %v2175
    %v2748 = vunpack.c.l.b16 %v2176
    %v2749 = vunpack.c.h.b16 %v2176
    %v2750 = vunpack.c.l.b16 %v2177
    %v2751 = vunpack.c.l.b16 %v2178
    %v2752 = vunpack.c.h.b16 %v2178
    %v2753 = vunpack.c.l.b16 %v2179
    %v2754 = vunpack.c.h.b16 %v2179
    %v2755 = vunpack.c.l.b16 %v2180
    %v2756 = vunpack.c.h.b16 %v2180
    %v2757 = vunpack.c.l.b16 %v2181
    %v2758 = vunpack.c.l.b16 %v2182
    %v2759 = vunpack.c.h.b16 %v2182
    %v2760 = vunpack.c.l.b16 %v2183
    %v2761 = vunpack.c.h.b16 %v2183
    %v2762 = vunpack.c.l.b16 %v2184
    %v2763 = vunpack.c.h.b16 %v2184
    %v2764 = vunpack.c.l.b16 %v2185
    %v2765 = vunpack.c.l.b16 %v2186
    %v2766 = vunpack.c.h.b16 %v2186
    %v2767 = vunpack.c.l.b16 %v2187
    %v2768 = vunpack.c.h.b16 %v2187
    %v2769 = vunpack.c.l.b16 %v2188
    %v2770 = vunpack.c.h.b16 %v2188
    %v2771 = vunpack.c.l.b16 %v2189
    %v2772 = vunpack.c.l.b16 %v2190
    %v2773 = vunpack.c.h.b16 %v2190
    %v2774 = vunpack.c.l.b16 %v2191
    %v2775 = vunpack.c.h.b16 %v2191
    %v2776 = vunpack.c.l.b16 %v2192
    %v2777 = vunpack.c.h.b16 %v2192
    %v2778 = vunpack.c.l.b16 %v2193
    %v2779 = vunpack.c.l.b16 %v2194
    %v2780 = vunpack.c.h.b16 %v2194
    %v2781 = vunpack.c.l.b16 %v2195
    %v2782 = vunpack.c.h.b16 %v2195
    %v2783 = vunpack.c.l.b16 %v2196
    %v2784 = vunpack.c.h.b16 %v2196
    %v2785 = vunpack.c.l.b16 %v2197
    %v2786 = vunpack.c.l.b16 %v2198
    %v2787 = vunpack.c.h.b16 %v2198
    %v2788 = vunpack.c.l.b16 %v2199
    %v2789 = vunpack.c.h.b16 %v2199
    %v2790 = vunpack.c.l.b16 %v2200
    %v2791 = vunpack.c.h.b16 %v2200
    %v2792 = vunpack.c.l.b16 %v2201
    %v2793 = vunpack.c.l.b16 %v2202
    %v2794 = vunpack.c.h.b16 %v2202
    %v2795 = vunpack.c.l.b16 %v2203
    %v2796 = vunpack.c.h.b16 %v2203
    %v2797 = vunpack.c.l.b16 %v2204
    %v2798 = vunpack.c.h.b16 %v2204
    %v2799 = vunpack.c.l.b16 %v2205
    %v2800 = vunpack.c.l.b16 %v2206
    %v2801 = vunpack.c.h.b16 %v2206
    %v2802 = vunpack.c.l.b16 %v2207
    %v2803 = vunpack.c.h.b16 %v2207
    %v2804 = vunpack.c.l.b16 %v2208
    %v2805 = vunpack.c.h.b16 %v2208
    %v2806 = vunpack.c.l.b16 %v2209
    %v2807 = vunpack.c.l.b16 %v2210
    %v2808 = vunpack.c.h.b16 %v2210
    %v2809 = vunpack.c.l.b16 %v2211
    %v2810 = vunpack.c.h.b16 %v2211
    %v2811 = vunpack.c.l.b16 %v2212
    %v2812 = vunpack.c.h.b16 %v2212
    %v2813 = vunpack.c.l.b16 %v2213
    %v2814 = vunpack.c.l.b16 %v2214
    %v2815 = vunpack.c.h.b16 %v2214
    %v2816 = vunpack.c.l.b16 %v2215
    %v2817 = vunpack.c.h.b16 %v2215
    %v2818 = vunpack.c.l.b16 %v2216
    %v2819 = vunpack.c.h.b16 %v2216
    %v2820 = vunpack.c.l.b16 %v2217
    %v2821 = vunpack.c.l.b16 %v2218
    %v2822 = vunpack.c.h.b16 %v2218
    %v2823 = vunpack.c.l.b16 %v2219
    %v2824 = vunpack.c.h.b16 %v2219
    %v2825 = vunpack.c.l.b16 %v2220
    %v2826 = vunpack.c.h.b16 %v2220
    %v2827 = vunpack.c.l.b16 %v2221
    %v2828 = vunpack.c.l.b16 %v2222
    %v2829 = vunpack.c.h.b16 %v2222
    %v2830 = vunpack.c.l.b16 %v2223
    %v2831 = vunpack.c.h.b16 %v2223
    %v2832 = vunpack.c.l.b16 %v2224
    %v2833 = vunpack.c.h.b16 %v2224
    %v2834 = vunpack.c.l.b16 %v2225
    %v2835 = vunpack.c.l.b16 %v2226
    %v2836 = vunpack.c.h.b16 %v2226
    %v2837 = vunpack.c.l.b16 %v2227
    %v2838 = vunpack.c.h.b16 %v2227
    %v2839 = vunpack.c.l.b16 %v2228
    %v2840 = vunpack.c.h.b16 %v2228
    %v2841 = vunpack.c.l.b16 %v2229
    %v2842 = vunpack.c.l.b16 %v2230
    %v2843 = vunpack.c.h.b16 %v2230
    %v2844 = vunpack.c.l.b16 %v2231
    %v2845 = vunpack.c.h.b16 %v2231
    %v2846 = vunpack.c.l.b16 %v2232
    %v2847 = vunpack.c.h.b16 %v2232
    %v2848 = vunpack.c.l.b16 %v2233
    %v2849 = vunpack.c.l.b16 %v2234
    %v2850 = vunpack.c.h.b16 %v2234
    %v2851 = vunpack.c.l.b16 %v2235
    %v2852 = vunpack.c.h.b16 %v2235
    %v2853 = vunpack.c.l.b16 %v2236
    %v2854 = vunpack.c.h.b16 %v2236
    %v2855 = vunpack.c.l.b16 %v2237
    %v2856 = vunpack.c.l.b16 %v2238
    %v2857 = vunpack.c.h.b16 %v2238
    %v2858 = vunpack.c.l.b16 %v2239
    %v2859 = vunpack.c.h.b16 %v2239
    %v2860 = vunpack.c.l.b16 %v2240
    %v2861 = vunpack.c.h.b16 %v2240
    %v2862 = vunpack.c.l.b16 %v2241
    %v2863 = vunpack.c.l.b16 %v2242
    %v2864 = vunpack.c.h.b16 %v2242
    %v2865 = vunpack.c.l.b16 %v2243
    %v2866 = vunpack.c.h.b16 %v2243
    %v2867 = vunpack.c.l.b16 %v2244
    %v2868 = vunpack.c.h.b16 %v2244
    %v2869 = vunpack.c.l.b16 %v2245
    %v2870 = vunpack.c.l.b16 %v2246
    %v2871 = vunpack.c.h.b16 %v2246
    %v2872 = vunpack.c.l.b16 %v2247
    %v2873 = vunpack.c.h.b16 %v2247
    %v2874 = vunpack.c.l.b16 %v2248
    %v2875 = vunpack.c.h.b16 %v2248
    %v2876 = vunpack.c.l.b16 %v2249
    %v2877 = vunpack.c.l.b16 %v2250
    %v2878 = vunpack.c.h.b16 %v2250
    %v2879 = vunpack.c.l.b16 %v2251
    %v2880 = vunpack.c.h.b16 %v2251
    %v2881 = vunpack.c.l.b16 %v2252
    %v2882 = vunpack.c.h.b16 %v2252
    %v2883 = vunpack.c.l.b16 %v2253
    %v2884 = vunpack.c.l.b16 %v2254
    %v2885 = vunpack.c.h.b16 %v2254
    %v2886 = vunpack.c.l.b16 %v2255
    %v2887 = vunpack.c.h.b16 %v2255
    %v2888 = vunpack.c.l.b16 %v2256
    %v2889 = vunpack.c.h.b16 %v2256
    %v2890 = vunpack.c.l.b16 %v2257
    %v2891 = vunpack.c.l.b16 %v2258
    %v2892 = vunpack.c.h.b16 %v2258
    %v2893 = vunpack.c.l.b16 %v2259
    %v2894 = vunpack.c.h.b16 %v2259
    %v2895 = vunpack.c.l.b16 %v2260
    %v2896 = vunpack.c.h.b16 %v2260
    %v2897 = vunpack.c.l.b16 %v2261
    %v2898 = vunpack.c.l.b16 %v2262
    %v2899 = vunpack.c.h.b16 %v2262
    %v2900 = vunpack.c.l.b16 %v2263
    %v2901 = vunpack.c.h.b16 %v2263
    %v2902 = vunpack.c.l.b16 %v2264
    %v2903 = vunpack.c.h.b16 %v2264
    %v2904 = vunpack.c.l.b16 %v2265
    %v2905 = vunpack.c.l.b16 %v2266
    %v2906 = vunpack.c.h.b16 %v2266
    %v2907 = vunpack.c.l.b16 %v2267
    %v2908 = vunpack.c.h.b16 %v2267
    %v2909 = vunpack.c.l.b16 %v2268
    %v2910 = vunpack.c.h.b16 %v2268
    %v2911 = vunpack.c.l.b16 %v2269
    %v2912 = vunpack.c.l.b16 %v2270
    %v2913 = vunpack.c.h.b16 %v2270
    %v2914 = vunpack.c.l.b16 %v2271
    %v2915 = vunpack.c.h.b16 %v2271
    %v2916 = vunpack.c.l.b16 %v2272
    %v2917 = vunpack.c.h.b16 %v2272
    %v2918 = vunpack.c.l.b16 %v2273
    %v2919 = vunpack.c.l.b16 %v2274
    %v2920 = vunpack.c.h.b16 %v2274
    %v2921 = vunpack.c.l.b16 %v2275
    %v2922 = vunpack.c.h.b16 %v2275
    %v2923 = vunpack.c.l.b16 %v2276
    %v2924 = vunpack.c.h.b16 %v2276
    %v2925 = vunpack.c.l.b16 %v2277
    %v2926 = vunpack.c.l.b16 %v2278
    %v2927 = vunpack.c.h.b16 %v2278
    %v2928 = vunpack.c.l.b16 %v2279
    %v2929 = vunpack.c.h.b16 %v2279
    %v2930 = vunpack.c.l.b16 %v2280
    %v2931 = vunpack.c.h.b16 %v2280
    %v2932 = vunpack.c.l.b16 %v2281
    %v2933 = vunpack.c.l.b16 %v2282
    %v2934 = vunpack.c.h.b16 %v2282
    %v2935 = vunpack.c.l.b16 %v2283
    %v2936 = vunpack.c.h.b16 %v2283
    %v2937 = vunpack.c.l.b16 %v2284
    %v2938 = vunpack.c.h.b16 %v2284
    %v2939 = vunpack.c.l.b16 %v2285
    %v2940 = vunpack.c.l.b16 %v2286
    %v2941 = vunpack.c.h.b16 %v2286
    %v2942 = vunpack.c.l.b16 %v2287
    %v2943 = vunpack.c.h.b16 %v2287
    %v2944 = vunpack.c.l.b16 %v2288
    %v2945 = vunpack.c.h.b16 %v2288
    %v2946 = vunpack.c.l.b16 %v2289
    %v2947 = vunpack.c.l.b16 %v2290
    %v2948 = vunpack.c.h.b16 %v2290
    %v2949 = vunpack.c.l.b16 %v2291
    %v2950 = vunpack.c.h.b16 %v2291
    %v2951 = vunpack.c.l.b16 %v2292
    %v2952 = vunpack.c.h.b16 %v2292
    %v2953 = vunpack.c.l.b16 %v2293
    %v2954 = vunpack.c.l.b16 %v2294
    %v2955 = vunpack.c.h.b16 %v2294
    %v2956 = vunpack.c.l.b16 %v2295
    %v2957 = vunpack.c.h.b16 %v2295
    %v2958 = vunpack.c.l.b16 %v2296
    %v2959 = vunpack.c.h.b16 %v2296
    %v2960 = vunpack.c.l.b16 %v2297
    %v2961 = vunpack.c.l.b16 %v2298
    %v2962 = vunpack.c.h.b16 %v2298
    %v2963 = vunpack.c.l.b16 %v2299
    %v2964 = vunpack.c.h.b16 %v2299
    %v2965 = vunpack.c.l.b16 %v2300
    %v2966 = vunpack.c.h.b16 %v2300
    %v2967 = vunpack.c.l.b16 %v2301
    %v2968 = vunpack.c.l.b16 %v2302
    %v2969 = vunpack.c.h.b16 %v2302
    %v2970 = vunpack.c.l.b16 %v2303
    %v2971 = vunpack.c.h.b16 %v2303
    %v2972 = vunpack.c.l.b16 %v2304
    %v2973 = vunpack.c.h.b16 %v2304
    %v2974 = vunpack.c.l.b16 %v2305
    %v2975 = vunpack.c.l.b16 %v2306
    %v2976 = vunpack.c.h.b16 %v2306
    %v2977 = vunpack.c.l.b16 %v2307
    %v2978 = vunpack.c.h.b16 %v2307
    %v2979 = vunpack.c.l.b16 %v2308
    %v2980 = vunpack.c.h.b16 %v2308
    %v2981 = vunpack.c.l.b16 %v2309
    %v2982 = vunpack.c.l.b16 %v2310
    %v2983 = vunpack.c.h.b16 %v2310
    %v2984 = vunpack.c.l.b16 %v2311
    %v2985 = vunpack.c.h.b16 %v2311
    %v2986 = vunpack.c.l.b16 %v2312
    %v2987 = vunpack.c.h.b16 %v2312
    %v2988 = vunpack.c.l.b16 %v2313
    %v2989 = vunpack.c.l.b16 %v2314
    %v2990 = vunpack.c.h.b16 %v2314
    %v2991 = vunpack.c.l.b16 %v2315
    %v2992 = vunpack.c.h.b16 %v2315
    %v2993 = vunpack.c.l.b16 %v2316
    %v2994 = vunpack.c.h.b16 %v2316
    %v2995 = vunpack.c.l.b16 %v2317
    %v2996 = vunpack.c.l.b16 %v2318
    %v2997 = vunpack.c.h.b16 %v2318
    %v2998 = vunpack.c.l.b16 %v2319
    %v2999 = vunpack.c.h.b16 %v2319
    %v3000 = vunpack.c.l.b16 %v2320
    %v3001 = vunpack.c.h.b16 %v2320
    %v3002 = vunpack.c.l.b16 %v2321
    %v3003 = vunpack.c.l.b16 %v2322
    %v3004 = vunpack.c.h.b16 %v2322
    %v3005 = vunpack.c.l.b16 %v2323
    %v3006 = vunpack.c.h.b16 %v2323
    %v3007 = vunpack.c.l.b16 %v2324
    %v3008 = vunpack.c.h.b16 %v2324
    %v3009 = vunpack.c.l.b16 %v2325
    %v3010 = vunpack.c.l.b16 %v2326
    %v3011 = vunpack.c.h.b16 %v2326
    %v3012 = vunpack.c.l.b16 %v2327
    %v3013 = vunpack.c.h.b16 %v2327
    %v3014 = vunpack.c.l.b16 %v2328
    %v3015 = vunpack.c.h.b16 %v2328
    %v3016 = vunpack.c.l.b16 %v2329
    %v3017 = vunpack.c.l.b16 %v2330
    %v3018 = vunpack.c.h.b16 %v2330
    %v3019 = vunpack.c.l.b16 %v2331
    %v3020 = vunpack.c.h.b16 %v2331
    %v3021 = vunpack.c.l.b16 %v2332
    %v3022 = vunpack.c.h.b16 %v2332
    %v3023 = vunpack.c.l.b16 %v2333
    %v3024 = vunpack.c.l.b16 %v2334
    %v3025 = vunpack.c.h.b16 %v2334
    %v3026 = vunpack.c.l.b16 %v2335
    %v3027 = vunpack.c.h.b16 %v2335
    %v3028 = vunpack.c.l.b16 %v2336
    %v3029 = vunpack.c.h.b16 %v2336
    %v3030 = vunpack.c.l.b16 %v2337
    %v3031 = vunpack.c.l.b16 %v2338
    %v3032 = vunpack.c.h.b16 %v2338
    %v3033 = vunpack.c.l.b16 %v2339
    %v3034 = vunpack.c.h.b16 %v2339
    %v3035 = vunpack.c.l.b16 %v2340
    %v3036 = vunpack.c.h.b16 %v2340
    %v3037 = vunpack.c.l.b16 %v2341
    %v3038 = vunpack.c.l.b16 %v2342
    %v3039 = vunpack.c.h.b16 %v2342
    %v3040 = vunpack.c.l.b16 %v2343
    %v3041 = vunpack.c.h.b16 %v2343
    %v3042 = vunpack.c.l.b16 %v2344
    %v3043 = vunpack.c.h.b16 %v2344
    %v3044 = vunpack.c.l.b16 %v2345
    %v3045 = vunpack.c.l.b16 %v2346
    %v3046 = vunpack.c.h.b16 %v2346
    %v3047 = vunpack.c.l.b16 %v2347
    %v3048 = vunpack.c.h.b16 %v2347
    %v3049 = vunpack.c.l.b16 %v2348
    %v3050 = vunpack.c.h.b16 %v2348
    %v3051 = vunpack.c.l.b16 %v2349
    %v3052 = vunpack.c.l.b16 %v2350
    %v3053 = vunpack.c.h.b16 %v2350
    %v3054 = vunpack.c.l.b16 %v2351
    %v3055 = vunpack.c.h.b16 %v2351
    %v3056 = vunpack.c.l.b16 %v2352
    %v3057 = vunpack.c.h.b16 %v2352
    %v3058 = vunpack.c.l.b16 %v2353
    %v3059 = vunpack.c.l.b16 %v2354
    %v3060 = vunpack.c.h.b16 %v2354
    %v3061 = vunpack.c.l.b16 %v2355
    %v3062 = vunpack.c.h.b16 %v2355
    %v3063 = vunpack.c.l.b16 %v2356
    %v3064 = vunpack.c.h.b16 %v2356
    %v3065 = vunpack.c.l.b16 %v2357
    %v3066 = vunpack.c.l.b16 %v2358
    %v3067 = vunpack.c.h.b16 %v2358
    %v3068 = vunpack.c.l.b16 %v2359
    %v3069 = vunpack.c.h.b16 %v2359
    %v3070 = vunpack.c.l.b16 %v2360
    %v3071 = vunpack.c.h.b16 %v2360
    %v3072 = vunpack.c.l.b16 %v2361
    %v3073 = vunpack.c.l.b16 %v2362
    %v3074 = vunpack.c.h.b16 %v2362
    %v3075 = vunpack.c.l.b16 %v2363
    %v3076 = vunpack.c.h.b16 %v2363
    %v3077 = vunpack.c.l.b16 %v2364
    %v3078 = vunpack.c.h.b16 %v2364
    %v3079 = vunpack.c.l.b16 %v2365
    %v3080 = vunpack.c.l.b16 %v2366
    %v3081 = vunpack.c.h.b16 %v2366
    %v3082 = vunpack.c.l.b16 %v2367
    %v3083 = vunpack.c.h.b16 %v2367
    %v3084 = vunpack.c.l.b16 %v2368
    %v3085 = vunpack.c.h.b16 %v2368
    %v3086 = vunpack.c.l.b16 %v2369
    %v3087 = vunpack.c.l.b16 %v2370
    %v3088 = vunpack.c.h.b16 %v2370
    %v3089 = vunpack.c.l.b16 %v2371
    %v3090 = vunpack.c.h.b16 %v2371
    %v3091 = vunpack.c.l.b16 %v2372
    %v3092 = vunpack.c.h.b16 %v2372
    %v3093 = vunpack.c.l.b16 %v2373
    %v3094 = vunpack.c.l.b16 %v2374
    %v3095 = vunpack.c.h.b16 %v2374
    %v3096 = vunpack.c.l.b16 %v2375
    %v3097 = vunpack.c.h.b16 %v2375
    %v3098 = vunpack.c.l.b16 %v2376
    %v3099 = vunpack.c.h.b16 %v2376
    %v3100 = vunpack.c.l.b16 %v2377
    %v3101 = vunpack.c.l.b16 %v2378
    %v3102 = vunpack.c.h.b16 %v2378
    %v3103 = vunpack.c.l.b16 %v2379
    %v3104 = vunpack.c.h.b16 %v2379
    %v3105 = vunpack.c.l.b16 %v2380
    %v3106 = vunpack.c.h.b16 %v2380
    %v3107 = vunpack.c.l.b16 %v2381
    %v3108 = vunpack.c.l.b16 %v2382
    %v3109 = vunpack.c.h.b16 %v2382
    %v3110 = vunpack.c.l.b16 %v2383
    %v3111 = vunpack.c.h.b16 %v2383
    %v3112 = vunpack.c.l.b16 %v2384
    %v3113 = vunpack.c.h.b16 %v2384
    %v3114 = vunpack.c.l.b16 %v2385
    %v3115 = vunpack.c.l.b16 %v2386
    %v3116 = vunpack.c.h.b16 %v2386
    %v3117 = vunpack.c.l.b16 %v2387
    %v3118 = vunpack.c.h.b16 %v2387
    %v3119 = vunpack.c.l.b16 %v2388
    %v3120 = vunpack.c.h.b16 %v2388
    %v3121 = vunpack.c.l.b16 %v2389
    %v3122 = vunpack.c.l.b16 %v2390
    %v3123 = vunpack.c.h.b16 %v2390
    %v3124 = vunpack.c.l.b16 %v2391
    %v3125 = vunpack.c.h.b16 %v2391
    %v3126 = vunpack.c.l.b16 %v2392
    %v3127 = vunpack.c.h.b16 %v2392
    %v3128 = vunpack.c.l.b16 %v2393
    %v3129 = vunpack.c.l.b16 %v2394
    %v3130 = vunpack.c.h.b16 %v2394
    %v3131 = vunpack.c.l.b16 %v2395
    %v3132 = vunpack.c.h.b16 %v2395
    %v3133 = vunpack.c.l.b16 %v2396
    %v3134 = vunpack.c.h.b16 %v2396
    %v3135 = vunpack.c.l.b16 %v2397
    %v3136 = vunpack.c.l.b16 %v2398
    %v3137 = vunpack.c.h.b16 %v2398
    %v3138 = vunpack.c.l.b16 %v2399
    %v3139 = vunpack.c.h.b16 %v2399
    %v3140 = vunpack.c.l.b16 %v2400
    %v3141 = vunpack.c.h.b16 %v2400
    %v3142 = vunpack.c.l.b16 %v2401
    %v3143 = vpack.c.b16 %v2702, %v2695
    %v3144 = vpack.c.b16 %v2703, %v2696
    %v3145 = vpack.c.b16 %v2704, %v2697
    %v3146 = vpack.c.b16 %v2705, %v2698
    %v3147 = vpack.c.b16 %v2706, %v2699
    %v3148 = vpack.c.b16 %v2707, %v2700
    %v3149 = vpack.c.b16 %v2708, %v2701
    %v3150 = vpack.c.b16 %v2716, %v2709
    %v3151 = vpack.c.b16 %v2717, %v2710
    %v3152 = vpack.c.b16 %v2718, %v2711
    %v3153 = vpack.c.b16 %v2719, %v2712
    %v3154 = vpack.c.b16 %v2720, %v2713
    %v3155 = vpack.c.b16 %v2721, %v2714
    %v3156 = vpack.c.b16 %v2722, %v2715
    %v3157 = vpack.c.b16 %v2730, %v2723
    %v3158 = vpack.c.b16 %v2731, %v2724
    %v3159 = vpack.c.b16 %v2732, %v2725
    %v3160 = vpack.c.b16 %v2733, %v2726
    %v3161 = vpack.c.b16 %v2734, %v2727
    %v3162 = vpack.c.b16 %v2735, %v2728
    %v3163 = vpack.c.b16 %v2736, %v2729
    %v3164 = vpack.c.b16 %v2744, %v2737
    %v3165 = vpack.c.b16 %v2745, %v2738
    %v3166 = vpack.c.b16 %v2746, %v2739
    %v3167 = vpack.c.b16 %v2747, %v2740
    %v3168 = vpack.c.b16 %v2748, %v2741
    %v3169 = vpack.c.b16 %v2749, %v2742
    %v3170 = vpack.c.b16 %v2750, %v2743
    %v3171 = vpack.c.b16 %v2758, %v2751
    %v3172 = vpack.c.b16 %v2759, %v2752
    %v3173 = vpack.c.b16 %v2760, %v2753
    %v3174 = vpack.c.b16 %v2761, %v2754
    %v3175 = vpack.c.b16 %v2762, %v2755
    %v3176 = vpack.c.b16 %v2763, %v2756
    %v3177 = vpack.c.b16 %v2764, %v2757
    %v3178 = vpack.c.b16 %v2772, %v2765
    %v3179 = vpack.c.b16 %v2773, %v2766
    %v3180 = vpack.c.b16 %v2774, %v2767
    %v3181 = vpack.c.b16 %v2775, %v2768
    %v3182 = vpack.c.b16 %v2776, %v2769
    %v3183 = vpack.c.b16 %v2777, %v2770
    %v3184 = vpack.c.b16 %v2778, %v2771
    %v3185 = vpack.c.b16 %v2786, %v2779
    %v3186 = vpack.c.b16 %v2787, %v2780
    %v3187 = vpack.c.b16 %v2788, %v2781
    %v3188 = vpack.c.b16 %v2789, %v2782
    %v3189 = vpack.c.b16 %v2790, %v2783
    %v3190 = vpack.c.b16 %v2791, %v2784
    %v3191 = vpack.c.b16 %v2792, %v2785
    %v3192 = vpack.c.b16 %v2800, %v2793
    %v3193 = vpack.c.b16 %v2801, %v2794
    %v3194 = vpack.c.b16 %v2802, %v2795
    %v3195 = vpack.c.b16 %v2803, %v2796
    %v3196 = vpack.c.b16 %v2804, %v2797
    %v3197 = vpack.c.b16 %v2805, %v2798
    %v3198 = vpack.c.b16 %v2806, %v2799
    %v3199 = vpack.c.b16 %v2814, %v2807
    %v3200 = vpack.c.b16 %v2815, %v2808
    %v3201 = vpack.c.b16 %v2816, %v2809
    %v3202 = vpack.c.b16 %v2817, %v2810
    %v3203 = vpack.c.b16 %v2818, %v2811
    %v3204 = vpack.c.b16 %v2819, %v2812
    %v3205 = vpack.c.b16 %v2820, %v2813
    %v3206 = vpack.c.b16 %v2828, %v2821
    %v3207 = vpack.c.b16 %v2829, %v2822
    %v3208 = vpack.c.b16 %v2830, %v2823
    %v3209 = vpack.c.b16 %v2831, %v2824
    %v3210 = vpack.c.b16 %v2832, %v2825
    %v3211 = vpack.c.b16 %v2833, %v2826
    %v3212 = vpack.c.b16 %v2834, %v2827
    %v3213 = vpack.c.b16 %v2842, %v2835
    %v3214 = vpack.c.b16 %v2843, %v2836
    %v3215 = vpack.c.b16 %v2844, %v2837
    %v3216 = vpack.c.b16 %v2845, %v2838
    %v3217 = vpack.c.b16 %v2846, %v2839
    %v3218 = vpack.c.b16 %v2847, %v2840
    %v3219 = vpack.c.b16 %v2848, %v2841
    %v3220 = vpack.c.b16 %v2856, %v2849
    %v3221 = vpack.c.b16 %v2857, %v2850
    %v3222 = vpack.c.b16 %v2858, %v2851
    %v3223 = vpack.c.b16 %v2859, %v2852
    %v3224 = vpack.c.b16 %v2860, %v2853
    %v3225 = vpack.c.b16 %v2861, %v2854
    %v3226 = vpack.c.b16 %v2862, %v2855
    %v3227 = vpack.c.b16 %v2870, %v2863
    %v3228 = vpack.c.b16 %v2871, %v2864
    %v3229 = vpack.c.b16 %v2872, %v2865
    %v3230 = vpack.c.b16 %v2873, %v2866
    %v3231 = vpack.c.b16 %v2874, %v2867
    %v3232 = vpack.c.b16 %v2875, %v2868
    %v3233 = vpack.c.b16 %v2876, %v2869
    %v3234 = vpack.c.b16 %v2884, %v2877
    %v3235 = vpack.c.b16 %v2885, %v2878
    %v3236 = vpack.c.b16 %v2886, %v2879
    %v3237 = vpack.c.b16 %v2887, %v2880
    %v3238 = vpack.c.b16 %v2888, %v2881
    %v3239 = vpack.c.b16 %v2889, %v2882
    %v3240 = vpack.c.b16 %v2890, %v2883
    %v3241 = vpack.c.b16 %v2898, %v2891
    %v3242 = vpack.c.b16 %v2899, %v2892
    %v3243 = vpack.c.b16 %v2900, %v2893
    %v3244 = vpack.c.b16 %v2901, %v2894
    %v3245 = vpack.c.b16 %v2902, %v2895
    %v3246 = vpack.c.b16 %v2903, %v2896
    %v3247 = vpack.c.b16 %v2904, %v2897
    %v3248 = vpack.c.b16 %v2912, %v2905
    %v3249 = vpack.c.b16 %v2913, %v2906
    %v3250 = vpack.c.b16 %v2914, %v2907
    %v3251 = vpack.c.b16 %v2915, %v2908
    %v3252 = vpack.c.b16 %v2916, %v2909
    %v3253 = vpack.c.b16 %v2917, %v2910
    %v3254 = vpack.c.b16 %v2918, %v2911
    %v3255 = vpack.c.b16 %v2926, %v2919
    %v3256 = vpack.c.b16 %v2927, %v2920
    %v3257 = vpack.c.b16 %v2928, %v2921
    %v3258 = vpack.c.b16 %v2929, %v2922
    %v3259 = vpack.c.b16 %v2930, %v2923
    %v3260 = vpack.c.b16 %v2931, %v2924
    %v3261 = vpack.c.b16 %v2932, %v2925
    %v3262 = vpack.c.b16 %v2940, %v2933
    %v3263 = vpack.c.b16 %v2941, %v2934
    %v3264 = vpack.c.b16 %v2942, %v2935
    %v3265 = vpack.c.b16 %v2943, %v2936
    %v3266 = vpack.c.b16 %v2944, %v2937
    %v3267 = vpack.c.b16 %v2945, %v2938
    %v3268 = vpack.c.b16 %v2946, %v2939
    %v3269 = vpack.c.b16 %v2954, %v2947
    %v3270 = vpack.c.b16 %v2955, %v2948
    %v3271 = vpack.c.b16 %v2956, %v2949
    %v3272 = vpack.c.b16 %v2957, %v2950
    %v3273 = vpack.c.b16 %v2958, %v2951
    %v3274 = vpack.c.b16 %v2959, %v2952
    %v3275 = vpack.c.b16 %v2960, %v2953
    %v3276 = vpack.c.b16 %v2968, %v2961
    %v3277 = vpack.c.b16 %v2969, %v2962
    %v3278 = vpack.c.b16 %v2970, %v2963
    %v3279 = vpack.c.b16 %v2971, %v2964
    %v3280 = vpack.c.b16 %v2972, %v2965
    %v3281 = vpack.c.b16 %v2973, %v2966
    %v3282 = vpack.c.b16 %v2974, %v2967
    %v3283 = vpack.c.b16 %v2982, %v2975
    %v3284 = vpack.c.b16 %v2983, %v2976
    %v3285 = vpack.c.b16 %v2984, %v2977
    %v3286 = vpack.c.b16 %v2985, %v2978
    %v3287 = vpack.c.b16 %v2986, %v2979
    %v3288 = vpack.c.b16 %v2987, %v2980
    %v3289 = vpack.c.b16 %v2988, %v2981
    %v3290 = vpack.c.b16 %v2996, %v2989
    %v3291 = vpack.c.b16 %v2997, %v2990
    %v3292 = vpack.c.b16 %v2998, %v2991
    %v3293 = vpack.c.b16 %v2999, %v2992
    %v3294 = vpack.c.b16 %v3000, %v2993
    %v3295 = vpack.c.b16 %v3001, %v2994
    %v3296 = vpack.c.b16 %v3002, %v2995
    %v3297 = vpack.c.b16 %v3010, %v3003
    %v3298 = vpack.c.b16 %v3011, %v3004
    %v3299 = vpack.c.b16 %v3012, %v3005
    %v3300 = vpack.c.b16 %v3013, %v3006
    %v3301 = vpack.c.b16 %v3014, %v3007
    %v3302 = vpack.c.b16 %v3015, %v3008
    %v3303 = vpack.c.b16 %v3016, %v3009
    %v3304 = vpack.c.b16 %v3024, %v3017
    %v3305 = vpack.c.b16 %v3025, %v3018
    %v3306 = vpack.c.b16 %v3026, %v3019
    %v3307 = vpack.c.b16 %v3027, %v3020
    %v3308 = vpack.c.b16 %v3028, %v3021
    %v3309 = vpack.c.b16 %v3029, %v3022
    %v3310 = vpack.c.b16 %v3030, %v3023
    %v3311 = vpack.c.b16 %v3038, %v3031
    %v3312 = vpack.c.b16 %v3039, %v3032
    %v3313 = vpack.c.b16 %v3040, %v3033
    %v3314 = vpack.c.b16 %v3041, %v3034
    %v3315 = vpack.c.b16 %v3042, %v3035
    %v3316 = vpack.c.b16 %v3043, %v3036
    %v3317 = vpack.c.b16 %v3044, %v3037
    %v3318 = vpack.c.b16 %v3052, %v3045
    %v3319 = vpack.c.b16 %v3053, %v3046
    %v3320 = vpack.c.b16 %v3054, %v3047
    %v3321 = vpack.c.b16 %v3055, %v3048
    %v3322 = vpack.c.b16 %v3056, %v3049
    %v3323 = vpack.c.b16 %v3057, %v3050
    %v3324 = vpack.c.b16 %v3058, %v3051
    %v3325 = vpack.c.b16 %v3066, %v3059
    %v3326 = vpack.c.b16 %v3067, %v3060
    %v3327 = vpack.c.b16 %v3068, %v3061
    %v3328 = vpack.c.b16 %v3069, %v3062
    %v3329 = vpack.c.b16 %v3070, %v3063
    %v3330 = vpack.c.b16 %v3071, %v3064
    %v3331 = vpack.c.b16 %v3072, %v3065
    %v3332 = vpack.c.b16 %v3080, %v3073
    %v3333 = vpack.c.b16 %v3081, %v3074
    %v3334 = vpack.c.b16 %v3082, %v3075
    %v3335 = vpack.c.b16 %v3083, %v3076
    %v3336 = vpack.c.b16 %v3084, %v3077
    %v3337 = vpack.c.b16 %v3085, %v3078
    %v3338 = vpack.c.b16 %v3086, %v3079
    %v3339 = vpack.c.b16 %v3094, %v3087
    %v3340 = vpack.c.b16 %v3095, %v3088
    %v3341 = vpack.c.b16 %v3096, %v3089
    %v3342 = vpack.c.b16 %v3097, %v3090
    %v3343 = vpack.c.b16 %v3098, %v3091
    %v3344 = vpack.c.b16 %v3099, %v3092
    %v3345 = vpack.c.b16 %v3100, %v3093
    %v3346 = vpack.c.b16 %v3108, %v3101
    %v3347 = vpack.c.b16 %v3109, %v3102
    %v3348 = vpack.c.b16 %v3110, %v3103
    %v3349 = vpack.c.b16 %v3111, %v3104
    %v3350 = vpack.c.b16 %v3112, %v3105
    %v3351 = vpack.c.b16 %v3113, %v3106
    %v3352 = vpack.c.b16 %v3114, %v3107
    %v3353 = vpack.c.b16 %v3122, %v3115
    %v3354 = vpack.c.b16 %v3123, %v3116
    %v3355 = vpack.c.b16 %v3124, %v3117
    %v3356 = vpack.c.b16 %v3125, %v3118
    %v3357 = vpack.c.b16 %v3126, %v3119
    %v3358 = vpack.c.b16 %v3127, %v3120
    %v3359 = vpack.c.b16 %v3128, %v3121
    %v3360 = vpack.c.b16 %v3136, %v3129
    %v3361 = vpack.c.b16 %v3137, %v3130
    %v3362 = vpack.c.b16 %v3138, %v3131
    %v3363 = vpack.c.b16 %v3139, %v3132
    %v3364 = vpack.c.b16 %v3140, %v3133
    %v3365 = vpack.c.b16 %v3141, %v3134
    %v3366 = vpack.c.b16 %v3142, %v3135
    %3591 = vmatprep.subr.bf16.mxu0 %v3144
    %3592 = vmatpush1.bf16.msra.mxu0 %v3143
    %3593 = vmatprep.subr.bf16.mxu0 %v3151
    %3594 = vmatpush1.bf16.msra.mxu0 %v3150
    %3595 = vmatprep.subr.bf16.mxu0 %v3158
    %3596 = vmatpush1.bf16.msra.mxu0 %v3157
    %3597 = vmatprep.subr.bf16.mxu0 %v3165
    %3598 = vmatpush1.bf16.msra.mxu0 %v3164
    %3599 = vmatprep.subr.bf16.mxu0 %v3172
    %3600 = vmatpush1.bf16.msra.mxu0 %v3171
    %3601 = vmatprep.subr.bf16.mxu0 %v3179
    %3602 = vmatpush1.bf16.msra.mxu0 %v3178
    %3603 = vmatprep.subr.bf16.mxu0 %v3186
    %3604 = vmatpush1.bf16.msra.mxu0 %v3185
    %3605 = vmatprep.subr.bf16.mxu0 %v3193
    %3606 = vmatpush1.bf16.msra.mxu0 %v3192
    %3607 = vmatprep.subr.bf16.mxu0 %v3200
    %3608 = vmatpush1.bf16.msra.mxu0 %v3199
    %3609 = vmatprep.subr.bf16.mxu0 %v3207
    %3610 = vmatpush1.bf16.msra.mxu0 %v3206
    %3611 = vmatprep.subr.bf16.mxu0 %v3214
    %3612 = vmatpush1.bf16.msra.mxu0 %v3213
    %3613 = vmatprep.subr.bf16.mxu0 %v3221
    %3614 = vmatpush1.bf16.msra.mxu0 %v3220
    %3615 = vmatprep.subr.bf16.mxu0 %v3228
    %3616 = vmatpush1.bf16.msra.mxu0 %v3227
    %3617 = vmatprep.subr.bf16.mxu0 %v3235
    %3618 = vmatpush1.bf16.msra.mxu0 %v3234
    %3619 = vmatprep.subr.bf16.mxu0 %v3242
    %3620 = vmatpush1.bf16.msra.mxu0 %v3241
    %3621 = vmatprep.subr.bf16.mxu0 %v3249
    %3622 = vmatpush1.bf16.msra.mxu0 %v3248
    %3623 = vmatprep.mubr.bf16.mxu0 %v2143
    %3624 = vmatmul.mubr.bf16.gmra.mrb[0].mxu0 %v2142
    %v3625 = vpop.f32.mrb[0].mxu0
    %v3626 = vadd.f32 %v2407, %v3625
    %v3627 = vpop.f32.mrb[0].mxu0
    %v3628 = vadd.f32 %v2411, %v3627
    %v3629 = vpop.f32.mrb[0].mxu0
    %v3630 = vpop.f32.mrb[0].mxu0
    %3631 = vdwg.mxu0
    %3632 = vmatprep.subr.bf16.mxu0 %v3256
    %3633 = vmatpush1.bf16.msra.mxu0 %v3255
    %3634 = vmatprep.subr.bf16.mxu0 %v3263
    %3635 = vmatpush1.bf16.msra.mxu0 %v3262
    %3636 = vmatprep.subr.bf16.mxu0 %v3270
    %3637 = vmatpush1.bf16.msra.mxu0 %v3269
    %3638 = vmatprep.subr.bf16.mxu0 %v3277
    %3639 = vmatpush1.bf16.msra.mxu0 %v3276
    %3640 = vmatprep.subr.bf16.mxu0 %v3284
    %3641 = vmatpush1.bf16.msra.mxu0 %v3283
    %3642 = vmatprep.subr.bf16.mxu0 %v3291
    %3643 = vmatpush1.bf16.msra.mxu0 %v3290
    %3644 = vmatprep.subr.bf16.mxu0 %v3298
    %3645 = vmatpush1.bf16.msra.mxu0 %v3297
    %3646 = vmatprep.subr.bf16.mxu0 %v3305
    %3647 = vmatpush1.bf16.msra.mxu0 %v3304
    %3648 = vmatprep.subr.bf16.mxu0 %v3312
    %3649 = vmatpush1.bf16.msra.mxu0 %v3311
    %3650 = vmatprep.subr.bf16.mxu0 %v3319
    %3651 = vmatpush1.bf16.msra.mxu0 %v3318
    %3652 = vmatprep.subr.bf16.mxu0 %v3326
    %3653 = vmatpush1.bf16.msra.mxu0 %v3325
    %3654 = vmatprep.subr.bf16.mxu0 %v3333
    %3655 = vmatpush1.bf16.msra.mxu0 %v3332
    %3656 = vmatprep.subr.bf16.mxu0 %v3340
    %3657 = vmatpush1.bf16.msra.mxu0 %v3339
    %3658 = vmatprep.subr.bf16.mxu0 %v3347
    %3659 = vmatpush1.bf16.msra.mxu0 %v3346
    %3660 = vmatprep.subr.bf16.mxu0 %v3354
    %3661 = vmatpush1.bf16.msra.mxu0 %v3353
    %3662 = vmatprep.subr.bf16.mxu0 %v3361
    %3663 = vmatpush1.bf16.msra.mxu0 %v3360
    %3664 = vmatprep.mubr.bf16.mxu0 %v2145
    %3665 = vmatmul.mubr.bf16.gmra.mrb[0].mxu0 %v2144
    %v3666 = vpop.f32.mrb[0].mxu0
    %v3667 = vadd.f32 %v3626, %v3666
    %v3668 = vpop.f32.mrb[0].mxu0
    %v3669 = vadd.f32 %v3628, %v3668
    %v3670 = vpop.f32.mrb[0].mxu0
    %v3671 = vpop.f32.mrb[0].mxu0
    %3672 = vdwg.mxu0
    %3673 = vmatprep.subr.bf16.mxu0 %v3146
    %3674 = vmatpush1.bf16.msra.mxu0 %v3145
    %3675 = vmatprep.subr.bf16.mxu0 %v3153
    %3676 = vmatpush1.bf16.msra.mxu0 %v3152
    %3677 = vmatprep.subr.bf16.mxu0 %v3160
    %3678 = vmatpush1.bf16.msra.mxu0 %v3159
    %3679 = vmatprep.subr.bf16.mxu0 %v3167
    %3680 = vmatpush1.bf16.msra.mxu0 %v3166
    %3681 = vmatprep.subr.bf16.mxu0 %v3174
    %3682 = vmatpush1.bf16.msra.mxu0 %v3173
    %3683 = vmatprep.subr.bf16.mxu0 %v3181
    %3684 = vmatpush1.bf16.msra.mxu0 %v3180
    %3685 = vmatprep.subr.bf16.mxu0 %v3188
    %3686 = vmatpush1.bf16.msra.mxu0 %v3187
    %3687 = vmatprep.subr.bf16.mxu0 %v3195
    %3688 = vmatpush1.bf16.msra.mxu0 %v3194
    %3689 = vmatprep.subr.bf16.mxu0 %v3202
    %3690 = vmatpush1.bf16.msra.mxu0 %v3201
    %3691 = vmatprep.subr.bf16.mxu0 %v3209
    %3692 = vmatpush1.bf16.msra.mxu0 %v3208
    %3693 = vmatprep.subr.bf16.mxu0 %v3216
    %3694 = vmatpush1.bf16.msra.mxu0 %v3215
    %3695 = vmatprep.subr.bf16.mxu0 %v3223
    %3696 = vmatpush1.bf16.msra.mxu0 %v3222
    %3697 = vmatprep.subr.bf16.mxu0 %v3230
    %3698 = vmatpush1.bf16.msra.mxu0 %v3229
    %3699 = vmatprep.subr.bf16.mxu0 %v3237
    %3700 = vmatpush1.bf16.msra.mxu0 %v3236
    %3701 = vmatprep.subr.bf16.mxu0 %v3244
    %3702 = vmatpush1.bf16.msra.mxu0 %v3243
    %3703 = vmatprep.subr.bf16.mxu0 %v3251
    %3704 = vmatpush1.bf16.msra.mxu0 %v3250
    %3705 = vmatprep.mubr.bf16.mxu0 %v2143
    %3706 = vmatmul.mubr.bf16.gmra.mrb[0].mxu0 %v2142
    %v3707 = vpop.f32.mrb[0].mxu0
    %v3708 = vadd.f32 %v2415, %v3707
    %v3709 = vpop.f32.mrb[0].mxu0
    %v3710 = vadd.f32 %v2419, %v3709
    %v3711 = vpop.f32.mrb[0].mxu0
    %v3712 = vpop.f32.mrb[0].mxu0
    %3713 = vdwg.mxu0
    %3714 = vmatprep.subr.bf16.mxu0 %v3258
    %3715 = vmatpush1.bf16.msra.mxu0 %v3257
    %3716 = vmatprep.subr.bf16.mxu0 %v3265
    %3717 = vmatpush1.bf16.msra.mxu0 %v3264
    %3718 = vmatprep.subr.bf16.mxu0 %v3272
    %3719 = vmatpush1.bf16.msra.mxu0 %v3271
    %3720 = vmatprep.subr.bf16.mxu0 %v3279
    %3721 = vmatpush1.bf16.msra.mxu0 %v3278
    %3722 = vmatprep.subr.bf16.mxu0 %v3286
    %3723 = vmatpush1.bf16.msra.mxu0 %v3285
    %3724 = vmatprep.subr.bf16.mxu0 %v3293
    %3725 = vmatpush1.bf16.msra.mxu0 %v3292
    %3726 = vmatprep.subr.bf16.mxu0 %v3300
    %3727 = vmatpush1.bf16.msra.mxu0 %v3299
    %3728 = vmatprep.subr.bf16.mxu0 %v3307
    %3729 = vmatpush1.bf16.msra.mxu0 %v3306
    %3730 = vmatprep.subr.bf16.mxu0 %v3314
    %3731 = vmatpush1.bf16.msra.mxu0 %v3313
    %3732 = vmatprep.subr.bf16.mxu0 %v3321
    %3733 = vmatpush1.bf16.msra.mxu0 %v3320
    %3734 = vmatprep.subr.bf16.mxu0 %v3328
    %3735 = vmatpush1.bf16.msra.mxu0 %v3327
    %3736 = vmatprep.subr.bf16.mxu0 %v3335
    %3737 = vmatpush1.bf16.msra.mxu0 %v3334
    %3738 = vmatprep.subr.bf16.mxu0 %v3342
    %3739 = vmatpush1.bf16.msra.mxu0 %v3341
    %3740 = vmatprep.subr.bf16.mxu0 %v3349
    %3741 = vmatpush1.bf16.msra.mxu0 %v3348
    %3742 = vmatprep.subr.bf16.mxu0 %v3356
    %3743 = vmatpush1.bf16.msra.mxu0 %v3355
    %3744 = vmatprep.subr.bf16.mxu0 %v3363
    %3745 = vmatpush1.bf16.msra.mxu0 %v3362
    %3746 = vmatprep.mubr.bf16.mxu0 %v2145
    %3747 = vmatmul.mubr.bf16.gmra.mrb[0].mxu0 %v2144
    %v3748 = vpop.f32.mrb[0].mxu0
    %v3749 = vadd.f32 %v3708, %v3748
    %v3750 = vpop.f32.mrb[0].mxu0
    %v3751 = vadd.f32 %v3710, %v3750
    %v3752 = vpop.f32.mrb[0].mxu0
    %v3753 = vpop.f32.mrb[0].mxu0
    %3754 = vdwg.mxu0
    %3755 = vmatprep.subr.bf16.mxu0 %v3148
    %3756 = vmatpush1.bf16.msra.mxu0 %v3147
    %3757 = vmatprep.subr.bf16.mxu0 %v3155
    %3758 = vmatpush1.bf16.msra.mxu0 %v3154
    %3759 = vmatprep.subr.bf16.mxu0 %v3162
    %3760 = vmatpush1.bf16.msra.mxu0 %v3161
    %3761 = vmatprep.subr.bf16.mxu0 %v3169
    %3762 = vmatpush1.bf16.msra.mxu0 %v3168
    %3763 = vmatprep.subr.bf16.mxu0 %v3176
    %3764 = vmatpush1.bf16.msra.mxu0 %v3175
    %3765 = vmatprep.subr.bf16.mxu0 %v3183
    %3766 = vmatpush1.bf16.msra.mxu0 %v3182
    %3767 = vmatprep.subr.bf16.mxu0 %v3190
    %3768 = vmatpush1.bf16.msra.mxu0 %v3189
    %3769 = vmatprep.subr.bf16.mxu0 %v3197
    %3770 = vmatpush1.bf16.msra.mxu0 %v3196
    %3771 = vmatprep.subr.bf16.mxu0 %v3204
    %3772 = vmatpush1.bf16.msra.mxu0 %v3203
    %3773 = vmatprep.subr.bf16.mxu0 %v3211
    %3774 = vmatpush1.bf16.msra.mxu0 %v3210
    %3775 = vmatprep.subr.bf16.mxu0 %v3218
    %3776 = vmatpush1.bf16.msra.mxu0 %v3217
    %3777 = vmatprep.subr.bf16.mxu0 %v3225
    %3778 = vmatpush1.bf16.msra.mxu0 %v3224
    %3779 = vmatprep.subr.bf16.mxu0 %v3232
    %3780 = vmatpush1.bf16.msra.mxu0 %v3231
    %3781 = vmatprep.subr.bf16.mxu0 %v3239
    %3782 = vmatpush1.bf16.msra.mxu0 %v3238
    %3783 = vmatprep.subr.bf16.mxu0 %v3246
    %3784 = vmatpush1.bf16.msra.mxu0 %v3245
    %3785 = vmatprep.subr.bf16.mxu0 %v3253
    %3786 = vmatpush1.bf16.msra.mxu0 %v3252
    %3787 = vmatprep.mubr.bf16.mxu0 %v2143
    %3788 = vmatmul.mubr.bf16.gmra.mrb[0].mxu0 %v2142
    %v3789 = vpop.f32.mrb[0].mxu0
    %v3790 = vadd.f32 %v2423, %v3789
    %v3791 = vpop.f32.mrb[0].mxu0
    %v3792 = vadd.f32 %v2427, %v3791
    %v3793 = vpop.f32.mrb[0].mxu0
    %v3794 = vpop.f32.mrb[0].mxu0
    %3795 = vdwg.mxu0
    %3796 = vmatprep.subr.bf16.mxu0 %v3260
    %3797 = vmatpush1.bf16.msra.mxu0 %v3259
    %3798 = vmatprep.subr.bf16.mxu0 %v3267
    %3799 = vmatpush1.bf16.msra.mxu0 %v3266
    %3800 = vmatprep.subr.bf16.mxu0 %v3274
    %3801 = vmatpush1.bf16.msra.mxu0 %v3273
    %3802 = vmatprep.subr.bf16.mxu0 %v3281
    %3803 = vmatpush1.bf16.msra.mxu0 %v3280
    %3804 = vmatprep.subr.bf16.mxu0 %v3288
    %3805 = vmatpush1.bf16.msra.mxu0 %v3287
    %3806 = vmatprep.subr.bf16.mxu0 %v3295
    %3807 = vmatpush1.bf16.msra.mxu0 %v3294
    %3808 = vmatprep.subr.bf16.mxu0 %v3302
    %3809 = vmatpush1.bf16.msra.mxu0 %v3301
    %3810 = vmatprep.subr.bf16.mxu0 %v3309
    %3811 = vmatpush1.bf16.msra.mxu0 %v3308
    %3812 = vmatprep.subr.bf16.mxu0 %v3316
    %3813 = vmatpush1.bf16.msra.mxu0 %v3315
    %3814 = vmatprep.subr.bf16.mxu0 %v3323
    %3815 = vmatpush1.bf16.msra.mxu0 %v3322
    %3816 = vmatprep.subr.bf16.mxu0 %v3330
    %3817 = vmatpush1.bf16.msra.mxu0 %v3329
    %3818 = vmatprep.subr.bf16.mxu0 %v3337
    %3819 = vmatpush1.bf16.msra.mxu0 %v3336
    %3820 = vmatprep.subr.bf16.mxu0 %v3344
    %3821 = vmatpush1.bf16.msra.mxu0 %v3343
    %3822 = vmatprep.subr.bf16.mxu0 %v3351
    %3823 = vmatpush1.bf16.msra.mxu0 %v3350
    %3824 = vmatprep.subr.bf16.mxu0 %v3358
    %3825 = vmatpush1.bf16.msra.mxu0 %v3357
    %3826 = vmatprep.subr.bf16.mxu0 %v3365
    %3827 = vmatpush1.bf16.msra.mxu0 %v3364
    %3828 = vmatprep.mubr.bf16.mxu0 %v2145
    %3829 = vmatmul.mubr.bf16.gmra.mrb[0].mxu0 %v2144
    %v3830 = vpop.f32.mrb[0].mxu0
    %v3831 = vadd.f32 %v3790, %v3830
    %v3832 = vpop.f32.mrb[0].mxu0
    %v3833 = vadd.f32 %v3792, %v3832
    %v3834 = vpop.f32.mrb[0].mxu0
    %v3835 = vpop.f32.mrb[0].mxu0
    %3836 = vdwg.mxu0
    %3837 = vmatprep.subr.bf16.mxu0 0
    %3838 = vmatpush1.bf16.msra.mxu0 %v3149
    %3839 = vmatprep.subr.bf16.mxu0 0
    %3840 = vmatpush1.bf16.msra.mxu0 %v3156
    %3841 = vmatprep.subr.bf16.mxu0 0
    %3842 = vmatpush1.bf16.msra.mxu0 %v3163
    %3843 = vmatprep.subr.bf16.mxu0 0
    %3844 = vmatpush1.bf16.msra.mxu0 %v3170
    %3845 = vmatprep.subr.bf16.mxu0 0
    %3846 = vmatpush1.bf16.msra.mxu0 %v3177
    %3847 = vmatprep.subr.bf16.mxu0 0
    %3848 = vmatpush1.bf16.msra.mxu0 %v3184
    %3849 = vmatprep.subr.bf16.mxu0 0
    %3850 = vmatpush1.bf16.msra.mxu0 %v3191
    %3851 = vmatprep.subr.bf16.mxu0 0
    %3852 = vmatpush1.bf16.msra.mxu0 %v3198
    %3853 = vmatprep.subr.bf16.mxu0 0
    %3854 = vmatpush1.bf16.msra.mxu0 %v3205
    %3855 = vmatprep.subr.bf16.mxu0 0
    %3856 = vmatpush1.bf16.msra.mxu0 %v3212
    %3857 = vmatprep.subr.bf16.mxu0 0
    %3858 = vmatpush1.bf16.msra.mxu0 %v3219
    %3859 = vmatprep.subr.bf16.mxu0 0
    %3860 = vmatpush1.bf16.msra.mxu0 %v3226
    %3861 = vmatprep.subr.bf16.mxu0 0
    %3862 = vmatpush1.bf16.msra.mxu0 %v3233
    %3863 = vmatprep.subr.bf16.mxu0 0
    %3864 = vmatpush1.bf16.msra.mxu0 %v3240
    %3865 = vmatprep.subr.bf16.mxu0 0
    %3866 = vmatpush1.bf16.msra.mxu0 %v3247
    %3867 = vmatprep.subr.bf16.mxu0 0
    %3868 = vmatpush1.bf16.msra.mxu0 %v3254
    %3869 = vmatprep.mubr.bf16.mxu0 %v2143
    %3870 = vmatmul.mubr.bf16.gmra.mrb[0].mxu0 %v2142
    %v3871 = vpop.f32.mrb[0].mxu0
    %v3872 = vadd.f32 %v2431, %v3871
    %v3873 = vpop.f32.mrb[0].mxu0
    %v3874 = vpop.f32.mrb[0].mxu0
    %v3875 = vpop.f32.mrb[0].mxu0
    %3876 = vdwg.mxu0
    %3877 = vmatprep.subr.bf16.mxu0 0
    %3878 = vmatpush1.bf16.msra.mxu0 %v3261
    %3879 = vmatprep.subr.bf16.mxu0 0
    %3880 = vmatpush1.bf16.msra.mxu0 %v3268
    %3881 = vmatprep.subr.bf16.mxu0 0
    %3882 = vmatpush1.bf16.msra.mxu0 %v3275
    %3883 = vmatprep.subr.bf16.mxu0 0
    %3884 = vmatpush1.bf16.msra.mxu0 %v3282
    %3885 = vmatprep.subr.bf16.mxu0 0
    %3886 = vmatpush1.bf16.msra.mxu0 %v3289
    %3887 = vmatprep.subr.bf16.mxu0 0
    %3888 = vmatpush1.bf16.msra.mxu0 %v3296
    %3889 = vmatprep.subr.bf16.mxu0 0
    %3890 = vmatpush1.bf16.msra.mxu0 %v3303
    %3891 = vmatprep.subr.bf16.mxu0 0
    %3892 = vmatpush1.bf16.msra.mxu0 %v3310
    %3893 = vmatprep.subr.bf16.mxu0 0
    %3894 = vmatpush1.bf16.msra.mxu0 %v3317
    %3895 = vmatprep.subr.bf16.mxu0 0
    %3896 = vmatpush1.bf16.msra.mxu0 %v3324
    %3897 = vmatprep.subr.bf16.mxu0 0
    %3898 = vmatpush1.bf16.msra.mxu0 %v3331
    %3899 = vmatprep.subr.bf16.mxu0 0
    %3900 = vmatpush1.bf16.msra.mxu0 %v3338
    %3901 = vmatprep.subr.bf16.mxu0 0
    %3902 = vmatpush1.bf16.msra.mxu0 %v3345
    %3903 = vmatprep.subr.bf16.mxu0 0
    %3904 = vmatpush1.bf16.msra.mxu0 %v3352
    %3905 = vmatprep.subr.bf16.mxu0 0
    %3906 = vmatpush1.bf16.msra.mxu0 %v3359
    %3907 = vmatprep.subr.bf16.mxu0 0
    %3908 = vmatpush1.bf16.msra.mxu0 %v3366
    %3909 = vmatprep.mubr.bf16.mxu0 %v2145
    %3910 = vmatmul.mubr.bf16.gmra.mrb[0].mxu0 %v2144
    %v3911 = vpop.f32.mrb[0].mxu0
    %v3912 = vadd.f32 %v3872, %v3911
    %v3913 = vpop.f32.mrb[0].mxu0
    %v3914 = vpop.f32.mrb[0].mxu0
    %v3915 = vpop.f32.mrb[0].mxu0
    %3916 = vdwg.mxu0
    %v3917 = vxor.u32 %v3667, 2147483648
    %v3918 = vxor.u32 %v3669, 2147483648
    %v3919 = vxor.u32 %v3749, 2147483648
    %v3920 = vxor.u32 %v3751, 2147483648
    %v3921 = vxor.u32 %v3831, 2147483648
    %v3922 = vxor.u32 %v3833, 2147483648
    %v3923 = vxor.u32 %v3912, 2147483648
    %v3924 = vmul.f32 %v3917, 1.442695
    %v3925 = vpow.pop %v3924
    %v3926 = vmul.f32 %v3918, 1.442695
    %v3927 = vpow.pop %v3926
    %v3928 = vmul.f32 %v3919, 1.442695
    %v3929 = vpow.pop %v3928
    %v3930 = vmul.f32 %v3920, 1.442695
    %v3931 = vpow.pop %v3930
    %v3932 = vmul.f32 %v3921, 1.442695
    %v3933 = vpow.pop %v3932
    %v3934 = vmul.f32 %v3922, 1.442695
    %v3935 = vpow.pop %v3934
    %v3936 = vmul.f32 %v3923, 1.442695
    %v3937 = vpow.pop %v3936
    %v3938 = vadd.f32 %v3925, 1.0
    %v3939 = vadd.f32 %v3927, 1.0
    %v3940 = vadd.f32 %v3929, 1.0
    %v3941 = vadd.f32 %v3931, 1.0
    %v3942 = vadd.f32 %v3933, 1.0
    %v3943 = vadd.f32 %v3935, 1.0
    %v3944 = vadd.f32 %v3937, 1.0
    %v3945 = vrcp.pop %v3938
    %v3946 = vmul.f32 1.0, %v3945
    %v3947 = vrcp.pop %v3939
    %v3948 = vmul.f32 1.0, %v3947
    %v3949 = vrcp.pop %v3940
    %v3950 = vmul.f32 1.0, %v3949
    %v3951 = vrcp.pop %v3941
    %v3952 = vmul.f32 1.0, %v3951
    %v3953 = vrcp.pop %v3942
    %v3954 = vmul.f32 1.0, %v3953
    %v3955 = vrcp.pop %v3943
    %v3956 = vmul.f32 1.0, %v3955
    %v3957 = vrcp.pop %v3944
    %v3958 = vmul.f32 1.0, %v3957
    %3959 = vst [vmem:[#allocation2] sm:$0xff] %v3946
    %3960 = vst [vmem:[#allocation2 + $0x8] sm:$0xff] %v3948
    %3961 = vst [vmem:[#allocation2 + $0x10] sm:$0xff] %v3950
    %3962 = vst [vmem:[#allocation2 + $0x18] sm:$0xff] %v3952
    %3963 = vst [vmem:[#allocation2 + $0x20] sm:$0xff] %v3954
    %3964 = vst [vmem:[#allocation2 + $0x28] sm:$0xff] %v3956
    %3965 = vst.msk [vmem:[#allocation2 + $0x30] sm:$0xff] %vm1252, %v3958
    %vm3966 = vcmask 326656
    %3967 = vst.msk [vmem:[#allocation4] sm:$0xff] %vm3966, %v1930
    // Predicated region
    $region42: #{tpu_custom_call.1} parent=1 // pred_check
      _
    $region43: #{tpu_custom_call.1} parent=1 // pred_check_branch
      %3969 = sbr.rel (0) target = $region45
    $region44: #{tpu_custom_call.1} parent=1 // pred_region
      %s3971 = ssub.s32 896, 896
      %3972 = vsyncadd [#allocation3], %s3971
      %s3974 = sshll.u32 [#allocation2], 4
      %s3975 = int_to_ptr.vmem [resolvable:$true] %s3974
      %3977 = dma.vmem_to_hbm [thread:$0]  %s3975, 896, %s10, [#allocation3]
    $region45: #{tpu_custom_call.1} parent=1 // pred_fallthru
      _
    // Predicated region
    $region46: #{tpu_custom_call.1} parent=1 // pred_check
      _
    $region47: #{tpu_custom_call.1} parent=1 // pred_check_branch
      %3979 = sbr.rel (0) target = $region49
    $region48: #{tpu_custom_call.1} parent=1 // pred_region
      %s3981 = ssub.s32 128, 128
      %3982 = vsyncadd [#allocation5], %s3981
      %s3984 = sshll.u32 [#allocation4], 4
      %s3985 = int_to_ptr.vmem [resolvable:$true] %s3984
      %3987 = dma.vmem_to_hbm [thread:$0]  %s3985, 128, %s11, [#allocation5]
    $region49: #{tpu_custom_call.1} parent=1 // pred_fallthru
      _
    // Predicated region
    $region50: #{tpu_custom_call.1} parent=1 // pred_check
      _
    $region51: #{tpu_custom_call.1} parent=1 // pred_check_branch
      %3989 = sbr.rel (0) target = $region53
    $region52: #{tpu_custom_call.1} parent=1 // pred_region
      %3990 = dma.done [#allocation3], 896
    $region53: #{tpu_custom_call.1} parent=1 // pred_fallthru
      _
    // Predicated region
    $region54: #{tpu_custom_call.1} parent=1 // pred_check
      _
    $region55: #{tpu_custom_call.1} parent=1 // pred_check_branch
      %3992 = sbr.rel (0) target = $region57
    $region56: #{tpu_custom_call.1} parent=1 // pred_region
      %3993 = dma.done [#allocation5], 128
    $region57: #{tpu_custom_call.1} parent=1 // pred_fallthru
      _
    %3994 = vsyncpa [#allocation3], 1
    %3995 = vsyncpa [#allocation5], 1

</llo_original>
